<compile_context>
chip_gen: v7x
topology: tpu7x:2x2x1
jax: 0.10.0
libtpu: 0.0.40
codegen_flags: <defaults>
</compile_context>

<pallas_src>
import functools

import numpy as np
import jax
import jax.numpy as jnp
from jax import lax
from jax.experimental import pallas as pl
from jax.experimental.pallas import tpu as pltpu

EPS = 1e-5


# ------------------------------ fused kernel ---------------------------------


def _rfccsm_fused_kernel(p_ref, wblk_ref, tg_ref, sx_ref, sy_ref,
                         p1_ref, p2_ref, w1x_ref, b1x_ref,
                         whx_ref, bhx_ref, wwx_ref, bwx_ref,
                         rexh_ref, rexw_ref, colh_ref, colw_ref,
                         wc_ref, bc_ref, a_ref, bw_ref,
                         o_ref):
    """Whole RFCCSM forward for one batch element, flat (rows, h*w) layout.

    p_ref   : (1, C*K2, HW)   im2col patches, row = ci*K2 + (p*k+q)
    wblk_ref: (C*K2, C*K2)    block-diagonal depthwise weights (BN scale folded)
    tg_ref  : (C*K2, 1)       folded BN shift
    sx_ref  : (HW, h)  sy_ref: (HW, w)   sum-over-x / sum-over-y matrices
    p1/p2   : (C*k, C*K2)     tap-group mean matrices (1/(w*k), 1/(h*k) folded)
    w1x/b1x : conv1+bn1 folded, kron-expanded with I_k
    whx/bhx, wwx/bwx : conv_h / conv_w kron-expanded with I_k
    rexh/rexw: (C*K2, C*k)    row-expansion of a_h / a_w back to the gen rows
    colh    : (h, HW)  colw : (w, HW)    lane-expansion matrices
    wc_ref  : (OUP, C*K2)  bc_ref: (OUP, 1)   main conv
    a_ref   : (3, h, h)       row-shift matrices (zero padding baked in)
    bw_ref  : (6, w, w)       col-shift matrices pre-weighted by w3 (max|mean)
    o_ref   : (1, OUP, HW)
    """
    f32 = jnp.float32

    # -- 1. depthwise "generate" conv (block-diag matmul) + folded BN + ReLU --
    gen = jnp.dot(wblk_ref[...], p_ref[0], preferred_element_type=f32)
    gen = jnp.maximum(gen + tg_ref[...], 0.0)                      # (CK2, HW)

    # -- 2. coordinate attention, entirely in the flat layout -----------------
    g1 = jnp.dot(gen, sx_ref[...], preferred_element_type=f32)     # (CK2, h)
    g2 = jnp.dot(gen, sy_ref[...], preferred_element_type=f32)     # (CK2, w)
    xh = jnp.dot(p1_ref[...], g1, preferred_element_type=f32)      # (C*k, h)
    xw = jnp.dot(p2_ref[...], g2, preferred_element_type=f32)      # (C*k, w)

    def conv1_bn_hswish(t):
        y = jnp.dot(w1x_ref[...], t, preferred_element_type=f32) + b1x_ref[...]
        return y * jnp.clip(y + 3.0, 0.0, 6.0) * (1.0 / 6.0)       # h_swish

    yh = conv1_bn_hswish(xh)                                       # (mip*k, h)
    yw = conv1_bn_hswish(xw)                                       # (mip*k, w)
    ah = jax.nn.sigmoid(
        jnp.dot(whx_ref[...], yh, preferred_element_type=f32) + bhx_ref[...])
    aw = jax.nn.sigmoid(
        jnp.dot(wwx_ref[...], yw, preferred_element_type=f32) + bwx_ref[...])
    ah_e = jnp.dot(jnp.dot(rexh_ref[...], ah, preferred_element_type=f32),
                   colh_ref[...], preferred_element_type=f32)      # (CK2, HW)
    aw_e = jnp.dot(jnp.dot(rexw_ref[...], aw, preferred_element_type=f32),
                   colw_ref[...], preferred_element_type=f32)      # (CK2, HW)
    mod = gen * (ah_e * aw_e)

    # -- 3. main conv (stride-k conv == plain matmul in this layout) ----------
    ca = jnp.dot(wc_ref[...], mod, preferred_element_type=f32) + bc_ref[...]

    # -- 4. receptive-field attention ------------------------------------------
    mx = jnp.max(ca, axis=0, keepdims=True)                        # (1, HW)
    mn = jnp.mean(ca, axis=0, keepdims=True)                       # (1, HW)
    # flat -> (h, w) via structure matmuls (no in-kernel reshape)
    mx2 = jnp.dot(colh_ref[...] * mx, sy_ref[...], preferred_element_type=f32)
    mn2 = jnp.dot(colh_ref[...] * mn, sy_ref[...], preferred_element_type=f32)
    acc = jnp.zeros_like(mx2)
    for p in range(3):
        acc = acc + jnp.dot(
            jnp.dot(a_ref[p], mx2, preferred_element_type=f32),
            bw_ref[p], preferred_element_type=f32)
        acc = acc + jnp.dot(
            jnp.dot(a_ref[p], mn2, preferred_element_type=f32),
            bw_ref[3 + p], preferred_element_type=f32)
    att2 = jax.nn.sigmoid(acc)                                     # (h, w)
    # (h, w) -> flat (1, HW)
    att = jnp.sum(colh_ref[...] * jnp.dot(att2, colw_ref[...],
                                          preferred_element_type=f32),
                  axis=0, keepdims=True)
    o_ref[0] = ca * att


# --------------------------- forward wrapper ---------------------------------


def _const_spec(shape):
    n = len(shape)
    return pl.BlockSpec(shape, lambda bi, _n=n: (0,) * _n)


def rfccsm_forward(x, params, *, kernel_size=3, stride=2):
    f32 = jnp.float32
    b, c, H, W = x.shape
    k = kernel_size
    k2 = k * k
    pad = k // 2
    mip = params["w1"].shape[0]
    oup = params["wc"].shape[0]
    h = (H + 2 * pad - k) // stride + 1
    w = (W + 2 * pad - k) // stride + 1
    hw = h * w
    ck = c * k
    ck2 = c * k2

    # ---- glue: im2col directly in the lane-dense (b, c*k2, h*w) layout ------
    xpad = jnp.pad(x, ((0, 0), (0, 0), (pad, pad), (pad, pad)))
    cols = [xpad[:, :, p:p + stride * h:stride, q:q + stride * w:stride]
            for p in range(k) for q in range(k)]
    patches = jnp.stack(cols, axis=2).reshape(b, ck2, hw)

    # ---- generate conv: fold BN, build block-diagonal depthwise weight ------
    s_gen = params["bn_g_gamma"] / jnp.sqrt(params["bn_g_var"] + EPS)
    t_gen = (params["bn_g_beta"] - params["bn_g_mean"] * s_gen).reshape(ck2, 1)
    w_dw = params["w_gen"].reshape(c, k2, k2) * s_gen.reshape(c, k2, 1)
    w_blk = (w_dw[:, None, :, :] * jnp.eye(c, dtype=f32)[:, :, None, None])
    w_blk = w_blk.transpose(0, 2, 1, 3).reshape(ck2, ck2)

    # ---- structure matrices (tiny, host-built at trace time) -----------------
    Sx = np.zeros((hw, h), np.float32)     # sum over x within each y
    Sy = np.zeros((hw, w), np.float32)     # sum over y within each x
    for yy in range(h):
        for xx in range(w):
            Sx[yy * w + xx, yy] = 1.0
            Sy[yy * w + xx, xx] = 1.0
    P1 = np.zeros((ck, ck2), np.float32)   # mean over (n2, x) groups
    P2 = np.zeros((ck, ck2), np.float32)   # mean over (n1, y) groups
    RexH = np.zeros((ck2, ck), np.float32)
    RexW = np.zeros((ck2, ck), np.float32)
    for ci in range(c):
        for n1 in range(k):
            for n2 in range(k):
                row = ci * k2 + n1 * k + n2
                P1[ci * k + n1, row] = 1.0 / (w * k)
                P2[ci * k + n2, row] = 1.0 / (h * k)
                RexH[row, ci * k + n1] = 1.0
                RexW[row, ci * k + n2] = 1.0
    ColH = Sx.T                             # (h, hw)
    ColW = Sy.T                             # (w, hw)

    # ---- conv1(+bn1), conv_h, conv_w: fold + kron-expand with I_k ------------
    s1 = params["bn1_gamma"] / jnp.sqrt(params["bn1_var"] + EPS)
    t1 = params["bn1_beta"] - params["bn1_mean"] * s1
    w1_eff = params["w1"].reshape(mip, c) * s1[:, None]
    b1_eff = params["b1"] * s1 + t1
    eye_k = jnp.eye(k, dtype=f32)
    W1x = jnp.kron(w1_eff, eye_k)                               # (mip*k, c*k)
    b1x = jnp.repeat(b1_eff, k).reshape(mip * k, 1)
    Whx = jnp.kron(params["wh"].reshape(c, mip), eye_k)         # (c*k, mip*k)
    bhx = jnp.repeat(params["bh"], k).reshape(ck, 1)
    Wwx = jnp.kron(params["ww"].reshape(c, mip), eye_k)
    bwx = jnp.repeat(params["bw"], k).reshape(ck, 1)

    wc_flat = params["wc"].reshape(oup, ck2)
    bc2 = params["bc"].reshape(oup, 1)

    # ---- RFA 3x3 conv: row shift matrices + w3-pre-weighted col matrices -----
    A = np.zeros((3, h, h), np.float32)
    for p in range(3):
        for i in range(h):
            j = i + p - 1
            if 0 <= j < h:
                A[p, i, j] = 1.0
    Bq = np.zeros((3, w, w), np.float32)
    for q in range(3):
        for xx in range(w):
            j = xx + q - 1
            if 0 <= j < w:
                Bq[q, j, xx] = 1.0
    w3 = params["w3"].reshape(2, 3, 3)
    Bw = jnp.einsum('cpq,qij->cpij', w3, jnp.asarray(Bq)).reshape(6, w, w)

    out_flat = pl.pallas_call(
        _rfccsm_fused_kernel,
        grid=(b,),
        in_specs=[
            pl.BlockSpec((1, ck2, hw), lambda bi: (bi, 0, 0)),   # patches
            _const_spec((ck2, ck2)),        # w_blk
            _const_spec((ck2, 1)),          # t_gen
            _const_spec((hw, h)),           # Sx
            _const_spec((hw, w)),           # Sy (also flat->2D right factor)
            _const_spec((ck, ck2)),         # P1
            _const_spec((ck, ck2)),         # P2
            _const_spec((mip * k, ck)),     # W1x
            _const_spec((mip * k, 1)),      # b1x
            _const_spec((ck, mip * k)),     # Whx
            _const_spec((ck, 1)),           # bhx
            _const_spec((ck, mip * k)),     # Wwx
            _const_spec((ck, 1)),           # bwx
            _const_spec((ck2, ck)),         # RexH
            _const_spec((ck2, ck)),         # RexW
            _const_spec((h, hw)),           # ColH
            _const_spec((w, hw)),           # ColW
            _const_spec((oup, ck2)),        # wc_flat
            _const_spec((oup, 1)),          # bc
            _const_spec((3, h, h)),         # A
            _const_spec((6, w, w)),         # Bw
        ],
        out_specs=pl.BlockSpec((1, oup, hw), lambda bi: (bi, 0, 0)),
        out_shape=jax.ShapeDtypeStruct((b, oup, hw), f32),
        compiler_params=pltpu.CompilerParams(
            dimension_semantics=("parallel",),
            vmem_limit_bytes=48 * 1024 * 1024),
    )(patches, w_blk, t_gen,
      jnp.asarray(Sx), jnp.asarray(Sy), jnp.asarray(P1), jnp.asarray(P2),
      W1x, b1x, Whx, bhx, Wwx, bwx,
      jnp.asarray(RexH), jnp.asarray(RexW), jnp.asarray(ColH), jnp.asarray(ColW),
      wc_flat, bc2, jnp.asarray(A), Bw)

    # contiguous reshape only (no transpose / extra HBM traffic)
    return out_flat.reshape(b, oup, h, w)


# ------------------------- pure-JAX reference --------------------------------


def rfccsm_reference(x, params, *, kernel_size=3, stride=2):
    k = kernel_size
    b, c, _, _ = x.shape
    dn = ("NCHW", "OIHW", "NCHW")

    def bn(v, g, be, m, var):
        return ((v - m[None, :, None, None]) /
                jnp.sqrt(var[None, :, None, None] + EPS)
                * g[None, :, None, None] + be[None, :, None, None])

    y = lax.conv_general_dilated(x, params["w_gen"], (stride, stride),
                                 ((k // 2, k // 2), (k // 2, k // 2)),
                                 dimension_numbers=dn, feature_group_count=c)
    y = jnp.maximum(bn(y, params["bn_g_gamma"], params["bn_g_beta"],
                       params["bn_g_mean"], params["bn_g_var"]), 0.0)
    h, w = y.shape[2:]
    gf = y.reshape(b, c, k, k, h, w).transpose(0, 1, 4, 2, 5, 3)
    gf = gf.reshape(b, c, h * k, w * k)
    Hk = h * k
    xh = jnp.mean(gf, axis=3, keepdims=True)
    xw = jnp.transpose(jnp.mean(gf, axis=2, keepdims=True), (0, 1, 3, 2))
    yy = jnp.concatenate([xh, xw], axis=2)
    yy = lax.conv_general_dilated(yy, params["w1"], (1, 1), "VALID",
                                  dimension_numbers=dn) \
        + params["b1"][None, :, None, None]
    yy = bn(yy, params["bn1_gamma"], params["bn1_beta"],
            params["bn1_mean"], params["bn1_var"])
    yy = yy * jnp.clip(yy + 3.0, 0.0, 6.0) / 6.0
    yh, yw = yy[:, :, :Hk], yy[:, :, Hk:]
    yw = jnp.transpose(yw, (0, 1, 3, 2))
    ah = jax.nn.sigmoid(lax.conv_general_dilated(yh, params["wh"], (1, 1), "VALID",
                                                 dimension_numbers=dn)
                        + params["bh"][None, :, None, None])
    aw = jax.nn.sigmoid(lax.conv_general_dilated(yw, params["ww"], (1, 1), "VALID",
                                                 dimension_numbers=dn)
                        + params["bw"][None, :, None, None])
    mod = gf * aw * ah
    ca = lax.conv_general_dilated(mod, params["wc"], (k, k), "VALID",
                                  dimension_numbers=dn) \
        + params["bc"][None, :, None, None]
    mx = jnp.max(ca, axis=1, keepdims=True)
    mn = jnp.mean(ca, axis=1, keepdims=True)
    att = jax.nn.sigmoid(lax.conv_general_dilated(
        jnp.concatenate([mx, mn], axis=1), params["w3"], (1, 1),
        ((1, 1), (1, 1)), dimension_numbers=dn))
    return ca * att


# ------------------------------ params ---------------------------------------


def init_params(key, inp, oup, kernel_size=3, reduction=32):
    k = kernel_size
    mip = max(8, inp // reduction)
    keys = jax.random.split(key, 18)

    def n(kk, shape, s=0.4):
        return jax.random.normal(kk, shape, jnp.float32) * s

    return dict(
        w_gen=n(keys[0], (inp * k * k, 1, k, k)),
        bn_g_gamma=1.0 + n(keys[1], (inp * k * k,), 0.1),
        bn_g_beta=n(keys[2], (inp * k * k,), 0.1),
        bn_g_mean=n(keys[3], (inp * k * k,), 0.1),
        bn_g_var=0.5 + jax.random.uniform(keys[4], (inp * k * k,), jnp.float32),
        w1=n(keys[5], (mip, inp, 1, 1)),
        b1=n(keys[6], (mip,), 0.1),
        bn1_gamma=1.0 + n(keys[7], (mip,), 0.1),
        bn1_beta=n(keys[8], (mip,), 0.1),
        bn1_mean=n(keys[9], (mip,), 0.1),
        bn1_var=0.5 + jax.random.uniform(keys[10], (mip,), jnp.float32),
        wh=n(keys[11], (inp, mip, 1, 1)),
        bh=n(keys[12], (inp,), 0.1),
        ww=n(keys[13], (inp, mip, 1, 1)),
        bw=n(keys[14], (inp,), 0.1),
        wc=n(keys[15], (oup, inp, k, k)),
        bc=n(keys[16], (oup,), 0.1),
        w3=n(keys[17], (1, 2, 3, 3)),
    )


if __name__ == "__main__":
    key = jax.random.PRNGKey(0)
    kx, kp = jax.random.split(key)
    b, inp, H, W = 2, 4, 16, 16
    oup = 8

    x = jax.random.normal(kx, (b, inp, H, W), jnp.float32)
    params = init_params(kp, inp, oup)

    fwd = jax.jit(functools.partial(rfccsm_forward, kernel_size=3, stride=2))
    out = jax.block_until_ready(fwd(x, params))

    ref = jax.block_until_ready(rfccsm_reference(x, params))

    if out.shape != ref.shape:
        raise SystemExit(f"shape mismatch: {out.shape} vs {ref.shape}")
    max_err = float(jnp.max(jnp.abs(out - ref)))
    if not bool(jnp.allclose(out, ref, atol=1e-2, rtol=1e-2)):
        raise SystemExit(f"mismatch vs reference, max abs err = {max_err}")
    print("KERNEL_OK")
</pallas_src>

<mosaic_0001>
module attributes {stable_mosaic.version = 11 : i64} {
  func.func @_rfccsm_fused_kernel(%arg0: i32, %arg1: memref<1x36x64xf32, #tpu.memory_space<vmem>>, %arg2: memref<36x36xf32, #tpu.memory_space<vmem>>, %arg3: memref<36x1xf32, #tpu.memory_space<vmem>>, %arg4: memref<64x8xf32, #tpu.memory_space<vmem>>, %arg5: memref<64x8xf32, #tpu.memory_space<vmem>>, %arg6: memref<12x36xf32, #tpu.memory_space<vmem>>, %arg7: memref<12x36xf32, #tpu.memory_space<vmem>>, %arg8: memref<24x12xf32, #tpu.memory_space<vmem>>, %arg9: memref<24x1xf32, #tpu.memory_space<vmem>>, %arg10: memref<12x24xf32, #tpu.memory_space<vmem>>, %arg11: memref<12x1xf32, #tpu.memory_space<vmem>>, %arg12: memref<12x24xf32, #tpu.memory_space<vmem>>, %arg13: memref<12x1xf32, #tpu.memory_space<vmem>>, %arg14: memref<36x12xf32, #tpu.memory_space<vmem>>, %arg15: memref<36x12xf32, #tpu.memory_space<vmem>>, %arg16: memref<8x64xf32, #tpu.memory_space<vmem>>, %arg17: memref<8x64xf32, #tpu.memory_space<vmem>>, %arg18: memref<8x36xf32, #tpu.memory_space<vmem>>, %arg19: memref<8x1xf32, #tpu.memory_space<vmem>>, %arg20: memref<3x8x8xf32, #tpu.memory_space<vmem>>, %arg21: memref<6x8x8xf32, #tpu.memory_space<vmem>>, %arg22: memref<1x8x64xf32, #tpu.memory_space<vmem>>) attributes {dimension_semantics = [#tpu.dimension_semantics<parallel>], iteration_bounds = array<i64: 2>, scalar_prefetch = 0 : i64, scratch_operands = 0 : i64, tpu.core_type = #tpu.core_type<tc>, window_params = [{transform_indices = @transform_0, window_bounds = array<i64: 1, 36, 64>}, {pipeline_mode = #tpu.pipeline_mode<synchronous>, transform_indices = @transform_1, window_bounds = array<i64: 36, 36>}, {pipeline_mode = #tpu.pipeline_mode<synchronous>, transform_indices = @transform_2, window_bounds = array<i64: 36, 1>}, {pipeline_mode = #tpu.pipeline_mode<synchronous>, transform_indices = @transform_3, window_bounds = array<i64: 64, 8>}, {pipeline_mode = #tpu.pipeline_mode<synchronous>, transform_indices = @transform_4, window_bounds = array<i64: 64, 8>}, {pipeline_mode = #tpu.pipeline_mode<synchronous>, transform_indices = @transform_5, window_bounds = array<i64: 12, 36>}, {pipeline_mode = #tpu.pipeline_mode<synchronous>, transform_indices = @transform_6, window_bounds = array<i64: 12, 36>}, {pipeline_mode = #tpu.pipeline_mode<synchronous>, transform_indices = @transform_7, window_bounds = array<i64: 24, 12>}, {pipeline_mode = #tpu.pipeline_mode<synchronous>, transform_indices = @transform_8, window_bounds = array<i64: 24, 1>}, {pipeline_mode = #tpu.pipeline_mode<synchronous>, transform_indices = @transform_9, window_bounds = array<i64: 12, 24>}, {pipeline_mode = #tpu.pipeline_mode<synchronous>, transform_indices = @transform_10, window_bounds = array<i64: 12, 1>}, {pipeline_mode = #tpu.pipeline_mode<synchronous>, transform_indices = @transform_11, window_bounds = array<i64: 12, 24>}, {pipeline_mode = #tpu.pipeline_mode<synchronous>, transform_indices = @transform_12, window_bounds = array<i64: 12, 1>}, {pipeline_mode = #tpu.pipeline_mode<synchronous>, transform_indices = @transform_13, window_bounds = array<i64: 36, 12>}, {pipeline_mode = #tpu.pipeline_mode<synchronous>, transform_indices = @transform_14, window_bounds = array<i64: 36, 12>}, {pipeline_mode = #tpu.pipeline_mode<synchronous>, transform_indices = @transform_15, window_bounds = array<i64: 8, 64>}, {pipeline_mode = #tpu.pipeline_mode<synchronous>, transform_indices = @transform_16, window_bounds = array<i64: 8, 64>}, {pipeline_mode = #tpu.pipeline_mode<synchronous>, transform_indices = @transform_17, window_bounds = array<i64: 8, 36>}, {pipeline_mode = #tpu.pipeline_mode<synchronous>, transform_indices = @transform_18, window_bounds = array<i64: 8, 1>}, {pipeline_mode = #tpu.pipeline_mode<synchronous>, transform_indices = @transform_19, window_bounds = array<i64: 3, 8, 8>}, {pipeline_mode = #tpu.pipeline_mode<synchronous>, transform_indices = @transform_20, window_bounds = array<i64: 6, 8, 8>}, {transform_indices = @transform_21, window_bounds = array<i64: 1, 8, 64>}]} {
    %c0 = arith.constant 0 : index
    %c0_0 = arith.constant 0 : index
    %0 = vector.load %arg2[%c0, %c0_0] : memref<36x36xf32, #tpu.memory_space<vmem>>, vector<36x36xf32>
    %c0_1 = arith.constant 0 : index
    %c0_2 = arith.constant 0 : index
    %c0_3 = arith.constant 0 : index
    %1 = vector.load %arg1[%c0_1, %c0_2, %c0_3] : memref<1x36x64xf32, #tpu.memory_space<vmem>>, vector<1x36x64xf32>
    %2 = vector.shape_cast %1 : vector<1x36x64xf32> to vector<36x64xf32>
    %cst = arith.constant dense<0.000000e+00> : vector<36x64xf32>
    %3 = tpu.matmul %0, %2, %cst {dimension_numbers = #tpu.dot_dimension_numbers<[1], [0], [0], [1], [0, 0, 1, 1], [], []>} : vector<36x36xf32>, vector<36x64xf32>, vector<36x64xf32> -> vector<36x64xf32>
    %c0_4 = arith.constant 0 : index
    %c0_5 = arith.constant 0 : index
    %4 = vector.load %arg3[%c0_4, %c0_5] : memref<36x1xf32, #tpu.memory_space<vmem>>, vector<36x1xf32>
    %5 = vector.broadcast %4 : vector<36x1xf32> to vector<36x64xf32>
    %6 = arith.addf %3, %5 : vector<36x64xf32>
    %cst_6 = arith.constant 0.000000e+00 : f32
    %7 = vector.broadcast %cst_6 : f32 to vector<36x64xf32>
    %8 = arith.maximumf %6, %7 : vector<36x64xf32>
    %c0_7 = arith.constant 0 : index
    %c0_8 = arith.constant 0 : index
    %9 = vector.load %arg4[%c0_7, %c0_8] : memref<64x8xf32, #tpu.memory_space<vmem>>, vector<64x8xf32>
    %cst_9 = arith.constant dense<0.000000e+00> : vector<36x8xf32>
    %10 = tpu.matmul %8, %9, %cst_9 {dimension_numbers = #tpu.dot_dimension_numbers<[1], [0], [0], [1], [0, 0, 1, 1], [], []>} : vector<36x64xf32>, vector<64x8xf32>, vector<36x8xf32> -> vector<36x8xf32>
    %c0_10 = arith.constant 0 : index
    %c0_11 = arith.constant 0 : index
    %11 = vector.load %arg5[%c0_10, %c0_11] : memref<64x8xf32, #tpu.memory_space<vmem>>, vector<64x8xf32>
    %cst_12 = arith.constant dense<0.000000e+00> : vector<36x8xf32>
    %12 = tpu.matmul %8, %11, %cst_12 {dimension_numbers = #tpu.dot_dimension_numbers<[1], [0], [0], [1], [0, 0, 1, 1], [], []>} : vector<36x64xf32>, vector<64x8xf32>, vector<36x8xf32> -> vector<36x8xf32>
    %c0_13 = arith.constant 0 : index
    %c0_14 = arith.constant 0 : index
    %13 = vector.load %arg6[%c0_13, %c0_14] : memref<12x36xf32, #tpu.memory_space<vmem>>, vector<12x36xf32>
    %cst_15 = arith.constant dense<0.000000e+00> : vector<12x8xf32>
    %14 = tpu.matmul %13, %10, %cst_15 {dimension_numbers = #tpu.dot_dimension_numbers<[1], [0], [0], [1], [0, 0, 1, 1], [], []>} : vector<12x36xf32>, vector<36x8xf32>, vector<12x8xf32> -> vector<12x8xf32>
    %c0_16 = arith.constant 0 : index
    %c0_17 = arith.constant 0 : index
    %15 = vector.load %arg7[%c0_16, %c0_17] : memref<12x36xf32, #tpu.memory_space<vmem>>, vector<12x36xf32>
    %cst_18 = arith.constant dense<0.000000e+00> : vector<12x8xf32>
    %16 = tpu.matmul %15, %12, %cst_18 {dimension_numbers = #tpu.dot_dimension_numbers<[1], [0], [0], [1], [0, 0, 1, 1], [], []>} : vector<12x36xf32>, vector<36x8xf32>, vector<12x8xf32> -> vector<12x8xf32>
    %c0_19 = arith.constant 0 : index
    %c0_20 = arith.constant 0 : index
    %17 = vector.load %arg8[%c0_19, %c0_20] : memref<24x12xf32, #tpu.memory_space<vmem>>, vector<24x12xf32>
    %cst_21 = arith.constant dense<0.000000e+00> : vector<24x8xf32>
    %18 = tpu.matmul %17, %14, %cst_21 {dimension_numbers = #tpu.dot_dimension_numbers<[1], [0], [0], [1], [0, 0, 1, 1], [], []>} : vector<24x12xf32>, vector<12x8xf32>, vector<24x8xf32> -> vector<24x8xf32>
    %c0_22 = arith.constant 0 : index
    %c0_23 = arith.constant 0 : index
    %19 = vector.load %arg9[%c0_22, %c0_23] : memref<24x1xf32, #tpu.memory_space<vmem>>, vector<24x1xf32>
    %20 = vector.broadcast %19 : vector<24x1xf32> to vector<24x8xf32>
    %21 = arith.addf %18, %20 : vector<24x8xf32>
    %cst_24 = arith.constant 3.000000e+00 : f32
    %22 = vector.broadcast %cst_24 : f32 to vector<24x8xf32>
    %23 = arith.addf %21, %22 : vector<24x8xf32>
    %cst_25 = arith.constant 0.000000e+00 : f32
    %cst_26 = arith.constant 6.000000e+00 : f32
    %24 = vector.broadcast %cst_25 : f32 to vector<24x8xf32>
    %25 = arith.maximumf %24, %23 : vector<24x8xf32>
    %26 = vector.broadcast %cst_26 : f32 to vector<24x8xf32>
    %27 = arith.minimumf %26, %25 : vector<24x8xf32>
    %28 = arith.mulf %21, %27 : vector<24x8xf32>
    %cst_27 = arith.constant 0.166666672 : f32
    %29 = vector.broadcast %cst_27 : f32 to vector<24x8xf32>
    %30 = arith.mulf %28, %29 : vector<24x8xf32>
    %c0_28 = arith.constant 0 : index
    %c0_29 = arith.constant 0 : index
    %31 = vector.load %arg8[%c0_28, %c0_29] : memref<24x12xf32, #tpu.memory_space<vmem>>, vector<24x12xf32>
    %cst_30 = arith.constant dense<0.000000e+00> : vector<24x8xf32>
    %32 = tpu.matmul %31, %16, %cst_30 {dimension_numbers = #tpu.dot_dimension_numbers<[1], [0], [0], [1], [0, 0, 1, 1], [], []>} : vector<24x12xf32>, vector<12x8xf32>, vector<24x8xf32> -> vector<24x8xf32>
    %c0_31 = arith.constant 0 : index
    %c0_32 = arith.constant 0 : index
    %33 = vector.load %arg9[%c0_31, %c0_32] : memref<24x1xf32, #tpu.memory_space<vmem>>, vector<24x1xf32>
    %34 = vector.broadcast %33 : vector<24x1xf32> to vector<24x8xf32>
    %35 = arith.addf %32, %34 : vector<24x8xf32>
    %cst_33 = arith.constant 3.000000e+00 : f32
    %36 = vector.broadcast %cst_33 : f32 to vector<24x8xf32>
    %37 = arith.addf %35, %36 : vector<24x8xf32>
    %cst_34 = arith.constant 0.000000e+00 : f32
    %cst_35 = arith.constant 6.000000e+00 : f32
    %38 = vector.broadcast %cst_34 : f32 to vector<24x8xf32>
    %39 = arith.maximumf %38, %37 : vector<24x8xf32>
    %40 = vector.broadcast %cst_35 : f32 to vector<24x8xf32>
    %41 = arith.minimumf %40, %39 : vector<24x8xf32>
    %42 = arith.mulf %35, %41 : vector<24x8xf32>
    %cst_36 = arith.constant 0.166666672 : f32
    %43 = vector.broadcast %cst_36 : f32 to vector<24x8xf32>
    %44 = arith.mulf %42, %43 : vector<24x8xf32>
    %c0_37 = arith.constant 0 : index
    %c0_38 = arith.constant 0 : index
    %45 = vector.load %arg10[%c0_37, %c0_38] : memref<12x24xf32, #tpu.memory_space<vmem>>, vector<12x24xf32>
    %cst_39 = arith.constant dense<0.000000e+00> : vector<12x8xf32>
    %46 = tpu.matmul %45, %30, %cst_39 {dimension_numbers = #tpu.dot_dimension_numbers<[1], [0], [0], [1], [0, 0, 1, 1], [], []>} : vector<12x24xf32>, vector<24x8xf32>, vector<12x8xf32> -> vector<12x8xf32>
    %c0_40 = arith.constant 0 : index
    %c0_41 = arith.constant 0 : index
    %47 = vector.load %arg11[%c0_40, %c0_41] : memref<12x1xf32, #tpu.memory_space<vmem>>, vector<12x1xf32>
    %48 = vector.broadcast %47 : vector<12x1xf32> to vector<12x8xf32>
    %49 = arith.addf %46, %48 : vector<12x8xf32>
    %50 = arith.negf %49 : vector<12x8xf32>
    %51 = math.exp %50 : vector<12x8xf32>
    %cst_42 = arith.constant 1.000000e+00 : f32
    %52 = vector.broadcast %cst_42 : f32 to vector<12x8xf32>
    %53 = arith.addf %52, %51 : vector<12x8xf32>
    %54 = arith.divf %52, %53 : vector<12x8xf32>
    %c0_43 = arith.constant 0 : index
    %c0_44 = arith.constant 0 : index
    %55 = vector.load %arg12[%c0_43, %c0_44] : memref<12x24xf32, #tpu.memory_space<vmem>>, vector<12x24xf32>
    %cst_45 = arith.constant dense<0.000000e+00> : vector<12x8xf32>
    %56 = tpu.matmul %55, %44, %cst_45 {dimension_numbers = #tpu.dot_dimension_numbers<[1], [0], [0], [1], [0, 0, 1, 1], [], []>} : vector<12x24xf32>, vector<24x8xf32>, vector<12x8xf32> -> vector<12x8xf32>
    %c0_46 = arith.constant 0 : index
    %c0_47 = arith.constant 0 : index
    %57 = vector.load %arg13[%c0_46, %c0_47] : memref<12x1xf32, #tpu.memory_space<vmem>>, vector<12x1xf32>
    %58 = vector.broadcast %57 : vector<12x1xf32> to vector<12x8xf32>
    %59 = arith.addf %56, %58 : vector<12x8xf32>
    %60 = arith.negf %59 : vector<12x8xf32>
    %61 = math.exp %60 : vector<12x8xf32>
    %cst_48 = arith.constant 1.000000e+00 : f32
    %62 = vector.broadcast %cst_48 : f32 to vector<12x8xf32>
    %63 = arith.addf %62, %61 : vector<12x8xf32>
    %64 = arith.divf %62, %63 : vector<12x8xf32>
    %c0_49 = arith.constant 0 : index
    %c0_50 = arith.constant 0 : index
    %65 = vector.load %arg14[%c0_49, %c0_50] : memref<36x12xf32, #tpu.memory_space<vmem>>, vector<36x12xf32>
    %cst_51 = arith.constant dense<0.000000e+00> : vector<36x8xf32>
    %66 = tpu.matmul %65, %54, %cst_51 {dimension_numbers = #tpu.dot_dimension_numbers<[1], [0], [0], [1], [0, 0, 1, 1], [], []>} : vector<36x12xf32>, vector<12x8xf32>, vector<36x8xf32> -> vector<36x8xf32>
    %c0_52 = arith.constant 0 : index
    %c0_53 = arith.constant 0 : index
    %67 = vector.load %arg16[%c0_52, %c0_53] : memref<8x64xf32, #tpu.memory_space<vmem>>, vector<8x64xf32>
    %cst_54 = arith.constant dense<0.000000e+00> : vector<36x64xf32>
    %68 = tpu.matmul %66, %67, %cst_54 {dimension_numbers = #tpu.dot_dimension_numbers<[1], [0], [0], [1], [0, 0, 1, 1], [], []>} : vector<36x8xf32>, vector<8x64xf32>, vector<36x64xf32> -> vector<36x64xf32>
    %c0_55 = arith.constant 0 : index
    %c0_56 = arith.constant 0 : index
    %69 = vector.load %arg15[%c0_55, %c0_56] : memref<36x12xf32, #tpu.memory_space<vmem>>, vector<36x12xf32>
    %cst_57 = arith.constant dense<0.000000e+00> : vector<36x8xf32>
    %70 = tpu.matmul %69, %64, %cst_57 {dimension_numbers = #tpu.dot_dimension_numbers<[1], [0], [0], [1], [0, 0, 1, 1], [], []>} : vector<36x12xf32>, vector<12x8xf32>, vector<36x8xf32> -> vector<36x8xf32>
    %c0_58 = arith.constant 0 : index
    %c0_59 = arith.constant 0 : index
    %71 = vector.load %arg17[%c0_58, %c0_59] : memref<8x64xf32, #tpu.memory_space<vmem>>, vector<8x64xf32>
    %cst_60 = arith.constant dense<0.000000e+00> : vector<36x64xf32>
    %72 = tpu.matmul %70, %71, %cst_60 {dimension_numbers = #tpu.dot_dimension_numbers<[1], [0], [0], [1], [0, 0, 1, 1], [], []>} : vector<36x8xf32>, vector<8x64xf32>, vector<36x64xf32> -> vector<36x64xf32>
    %73 = arith.mulf %68, %72 : vector<36x64xf32>
    %74 = arith.mulf %8, %73 : vector<36x64xf32>
    %c0_61 = arith.constant 0 : index
    %c0_62 = arith.constant 0 : index
    %75 = vector.load %arg18[%c0_61, %c0_62] : memref<8x36xf32, #tpu.memory_space<vmem>>, vector<8x36xf32>
    %cst_63 = arith.constant dense<0.000000e+00> : vector<8x64xf32>
    %76 = tpu.matmul %75, %74, %cst_63 {dimension_numbers = #tpu.dot_dimension_numbers<[1], [0], [0], [1], [0, 0, 1, 1], [], []>} : vector<8x36xf32>, vector<36x64xf32>, vector<8x64xf32> -> vector<8x64xf32>
    %c0_64 = arith.constant 0 : index
    %c0_65 = arith.constant 0 : index
    %77 = vector.load %arg19[%c0_64, %c0_65] : memref<8x1xf32, #tpu.memory_space<vmem>>, vector<8x1xf32>
    %78 = vector.broadcast %77 : vector<8x1xf32> to vector<8x64xf32>
    %79 = arith.addf %76, %78 : vector<8x64xf32>
    %cst_66 = arith.constant dense<0xFF800000> : vector<64xf32>
    %80 = vector.multi_reduction <maximumf>, %79, %cst_66 [0] : vector<8x64xf32> to vector<64xf32>
    %81 = vector.shape_cast %80 : vector<64xf32> to vector<1x64xf32>
    %cst_67 = arith.constant dense<0.000000e+00> : vector<64xf32>
    %82 = vector.multi_reduction <add>, %79, %cst_67 [0] : vector<8x64xf32> to vector<64xf32>
    %83 = vector.shape_cast %82 : vector<64xf32> to vector<1x64xf32>
    %cst_68 = arith.constant 8.000000e+00 : f32
    %84 = vector.broadcast %cst_68 : f32 to vector<1x64xf32>
    %85 = arith.divf %83, %84 : vector<1x64xf32>
    %c0_69 = arith.constant 0 : index
    %c0_70 = arith.constant 0 : index
    %86 = vector.load %arg16[%c0_69, %c0_70] : memref<8x64xf32, #tpu.memory_space<vmem>>, vector<8x64xf32>
    %87 = vector.broadcast %81 : vector<1x64xf32> to vector<8x64xf32>
    %88 = arith.mulf %86, %87 : vector<8x64xf32>
    %c0_71 = arith.constant 0 : index
    %c0_72 = arith.constant 0 : index
    %89 = vector.load %arg5[%c0_71, %c0_72] : memref<64x8xf32, #tpu.memory_space<vmem>>, vector<64x8xf32>
    %cst_73 = arith.constant dense<0.000000e+00> : vector<8x8xf32>
    %90 = tpu.matmul %88, %89, %cst_73 {dimension_numbers = #tpu.dot_dimension_numbers<[1], [0], [0], [1], [0, 0, 1, 1], [], []>} : vector<8x64xf32>, vector<64x8xf32>, vector<8x8xf32> -> vector<8x8xf32>
    %c0_74 = arith.constant 0 : index
    %c0_75 = arith.constant 0 : index
    %91 = vector.load %arg16[%c0_74, %c0_75] : memref<8x64xf32, #tpu.memory_space<vmem>>, vector<8x64xf32>
    %92 = vector.broadcast %85 : vector<1x64xf32> to vector<8x64xf32>
    %93 = arith.mulf %91, %92 : vector<8x64xf32>
    %c0_76 = arith.constant 0 : index
    %c0_77 = arith.constant 0 : index
    %94 = vector.load %arg5[%c0_76, %c0_77] : memref<64x8xf32, #tpu.memory_space<vmem>>, vector<64x8xf32>
    %cst_78 = arith.constant dense<0.000000e+00> : vector<8x8xf32>
    %95 = tpu.matmul %93, %94, %cst_78 {dimension_numbers = #tpu.dot_dimension_numbers<[1], [0], [0], [1], [0, 0, 1, 1], [], []>} : vector<8x64xf32>, vector<64x8xf32>, vector<8x8xf32> -> vector<8x8xf32>
    %cst_79 = arith.constant 0.000000e+00 : f32
    %96 = vector.broadcast %cst_79 : f32 to vector<8x8xf32>
    %c0_80 = arith.constant 0 : index
    %c0_81 = arith.constant 0 : index
    %c0_82 = arith.constant 0 : index
    %97 = vector.load %arg20[%c0_80, %c0_81, %c0_82] : memref<3x8x8xf32, #tpu.memory_space<vmem>>, vector<1x8x8xf32>
    %98 = vector.shape_cast %97 : vector<1x8x8xf32> to vector<8x8xf32>
    %cst_83 = arith.constant dense<0.000000e+00> : vector<8x8xf32>
    %99 = tpu.matmul %98, %90, %cst_83 {dimension_numbers = #tpu.dot_dimension_numbers<[1], [0], [0], [1], [0, 0, 1, 1], [], []>} : vector<8x8xf32>, vector<8x8xf32>, vector<8x8xf32> -> vector<8x8xf32>
    %c0_84 = arith.constant 0 : index
    %c0_85 = arith.constant 0 : index
    %c0_86 = arith.constant 0 : index
    %100 = vector.load %arg21[%c0_84, %c0_85, %c0_86] : memref<6x8x8xf32, #tpu.memory_space<vmem>>, vector<1x8x8xf32>
    %101 = vector.shape_cast %100 : vector<1x8x8xf32> to vector<8x8xf32>
    %cst_87 = arith.constant dense<0.000000e+00> : vector<8x8xf32>
    %102 = tpu.matmul %99, %101, %cst_87 {dimension_numbers = #tpu.dot_dimension_numbers<[1], [0], [0], [1], [0, 0, 1, 1], [], []>} : vector<8x8xf32>, vector<8x8xf32>, vector<8x8xf32> -> vector<8x8xf32>
    %103 = arith.addf %96, %102 : vector<8x8xf32>
    %c0_88 = arith.constant 0 : index
    %c0_89 = arith.constant 0 : index
    %c0_90 = arith.constant 0 : index
    %104 = vector.load %arg20[%c0_88, %c0_89, %c0_90] : memref<3x8x8xf32, #tpu.memory_space<vmem>>, vector<1x8x8xf32>
    %105 = vector.shape_cast %104 : vector<1x8x8xf32> to vector<8x8xf32>
    %cst_91 = arith.constant dense<0.000000e+00> : vector<8x8xf32>
    %106 = tpu.matmul %105, %95, %cst_91 {dimension_numbers = #tpu.dot_dimension_numbers<[1], [0], [0], [1], [0, 0, 1, 1], [], []>} : vector<8x8xf32>, vector<8x8xf32>, vector<8x8xf32> -> vector<8x8xf32>
    %c3 = arith.constant 3 : index
    %c0_92 = arith.constant 0 : index
    %c0_93 = arith.constant 0 : index
    %107 = vector.load %arg21[%c3, %c0_92, %c0_93] : memref<6x8x8xf32, #tpu.memory_space<vmem>>, vector<1x8x8xf32>
    %108 = vector.shape_cast %107 : vector<1x8x8xf32> to vector<8x8xf32>
    %cst_94 = arith.constant dense<0.000000e+00> : vector<8x8xf32>
    %109 = tpu.matmul %106, %108, %cst_94 {dimension_numbers = #tpu.dot_dimension_numbers<[1], [0], [0], [1], [0, 0, 1, 1], [], []>} : vector<8x8xf32>, vector<8x8xf32>, vector<8x8xf32> -> vector<8x8xf32>
    %110 = arith.addf %103, %109 : vector<8x8xf32>
    %c1 = arith.constant 1 : index
    %c0_95 = arith.constant 0 : index
    %c0_96 = arith.constant 0 : index
    %111 = vector.load %arg20[%c1, %c0_95, %c0_96] : memref<3x8x8xf32, #tpu.memory_space<vmem>>, vector<1x8x8xf32>
    %112 = vector.shape_cast %111 : vector<1x8x8xf32> to vector<8x8xf32>
    %cst_97 = arith.constant dense<0.000000e+00> : vector<8x8xf32>
    %113 = tpu.matmul %112, %90, %cst_97 {dimension_numbers = #tpu.dot_dimension_numbers<[1], [0], [0], [1], [0, 0, 1, 1], [], []>} : vector<8x8xf32>, vector<8x8xf32>, vector<8x8xf32> -> vector<8x8xf32>
    %c1_98 = arith.constant 1 : index
    %c0_99 = arith.constant 0 : index
    %c0_100 = arith.constant 0 : index
    %114 = vector.load %arg21[%c1_98, %c0_99, %c0_100] : memref<6x8x8xf32, #tpu.memory_space<vmem>>, vector<1x8x8xf32>
    %115 = vector.shape_cast %114 : vector<1x8x8xf32> to vector<8x8xf32>
    %cst_101 = arith.constant dense<0.000000e+00> : vector<8x8xf32>
    %116 = tpu.matmul %113, %115, %cst_101 {dimension_numbers = #tpu.dot_dimension_numbers<[1], [0], [0], [1], [0, 0, 1, 1], [], []>} : vector<8x8xf32>, vector<8x8xf32>, vector<8x8xf32> -> vector<8x8xf32>
    %117 = arith.addf %110, %116 : vector<8x8xf32>
    %c1_102 = arith.constant 1 : index
    %c0_103 = arith.constant 0 : index
    %c0_104 = arith.constant 0 : index
    %118 = vector.load %arg20[%c1_102, %c0_103, %c0_104] : memref<3x8x8xf32, #tpu.memory_space<vmem>>, vector<1x8x8xf32>
    %119 = vector.shape_cast %118 : vector<1x8x8xf32> to vector<8x8xf32>
    %cst_105 = arith.constant dense<0.000000e+00> : vector<8x8xf32>
    %120 = tpu.matmul %119, %95, %cst_105 {dimension_numbers = #tpu.dot_dimension_numbers<[1], [0], [0], [1], [0, 0, 1, 1], [], []>} : vector<8x8xf32>, vector<8x8xf32>, vector<8x8xf32> -> vector<8x8xf32>
    %c4 = arith.constant 4 : index
    %c0_106 = arith.constant 0 : index
    %c0_107 = arith.constant 0 : index
    %121 = vector.load %arg21[%c4, %c0_106, %c0_107] : memref<6x8x8xf32, #tpu.memory_space<vmem>>, vector<1x8x8xf32>
    %122 = vector.shape_cast %121 : vector<1x8x8xf32> to vector<8x8xf32>
    %cst_108 = arith.constant dense<0.000000e+00> : vector<8x8xf32>
    %123 = tpu.matmul %120, %122, %cst_108 {dimension_numbers = #tpu.dot_dimension_numbers<[1], [0], [0], [1], [0, 0, 1, 1], [], []>} : vector<8x8xf32>, vector<8x8xf32>, vector<8x8xf32> -> vector<8x8xf32>
    %124 = arith.addf %117, %123 : vector<8x8xf32>
    %c2 = arith.constant 2 : index
    %c0_109 = arith.constant 0 : index
    %c0_110 = arith.constant 0 : index
    %125 = vector.load %arg20[%c2, %c0_109, %c0_110] : memref<3x8x8xf32, #tpu.memory_space<vmem>>, vector<1x8x8xf32>
    %126 = vector.shape_cast %125 : vector<1x8x8xf32> to vector<8x8xf32>
    %cst_111 = arith.constant dense<0.000000e+00> : vector<8x8xf32>
    %127 = tpu.matmul %126, %90, %cst_111 {dimension_numbers = #tpu.dot_dimension_numbers<[1], [0], [0], [1], [0, 0, 1, 1], [], []>} : vector<8x8xf32>, vector<8x8xf32>, vector<8x8xf32> -> vector<8x8xf32>
    %c2_112 = arith.constant 2 : index
    %c0_113 = arith.constant 0 : index
    %c0_114 = arith.constant 0 : index
    %128 = vector.load %arg21[%c2_112, %c0_113, %c0_114] : memref<6x8x8xf32, #tpu.memory_space<vmem>>, vector<1x8x8xf32>
    %129 = vector.shape_cast %128 : vector<1x8x8xf32> to vector<8x8xf32>
    %cst_115 = arith.constant dense<0.000000e+00> : vector<8x8xf32>
    %130 = tpu.matmul %127, %129, %cst_115 {dimension_numbers = #tpu.dot_dimension_numbers<[1], [0], [0], [1], [0, 0, 1, 1], [], []>} : vector<8x8xf32>, vector<8x8xf32>, vector<8x8xf32> -> vector<8x8xf32>
    %131 = arith.addf %124, %130 : vector<8x8xf32>
    %c2_116 = arith.constant 2 : index
    %c0_117 = arith.constant 0 : index
    %c0_118 = arith.constant 0 : index
    %132 = vector.load %arg20[%c2_116, %c0_117, %c0_118] : memref<3x8x8xf32, #tpu.memory_space<vmem>>, vector<1x8x8xf32>
    %133 = vector.shape_cast %132 : vector<1x8x8xf32> to vector<8x8xf32>
    %cst_119 = arith.constant dense<0.000000e+00> : vector<8x8xf32>
    %134 = tpu.matmul %133, %95, %cst_119 {dimension_numbers = #tpu.dot_dimension_numbers<[1], [0], [0], [1], [0, 0, 1, 1], [], []>} : vector<8x8xf32>, vector<8x8xf32>, vector<8x8xf32> -> vector<8x8xf32>
    %c5 = arith.constant 5 : index
    %c0_120 = arith.constant 0 : index
    %c0_121 = arith.constant 0 : index
    %135 = vector.load %arg21[%c5, %c0_120, %c0_121] : memref<6x8x8xf32, #tpu.memory_space<vmem>>, vector<1x8x8xf32>
    %136 = vector.shape_cast %135 : vector<1x8x8xf32> to vector<8x8xf32>
    %cst_122 = arith.constant dense<0.000000e+00> : vector<8x8xf32>
    %137 = tpu.matmul %134, %136, %cst_122 {dimension_numbers = #tpu.dot_dimension_numbers<[1], [0], [0], [1], [0, 0, 1, 1], [], []>} : vector<8x8xf32>, vector<8x8xf32>, vector<8x8xf32> -> vector<8x8xf32>
    %138 = arith.addf %131, %137 : vector<8x8xf32>
    %139 = arith.negf %138 : vector<8x8xf32>
    %140 = math.exp %139 : vector<8x8xf32>
    %cst_123 = arith.constant 1.000000e+00 : f32
    %141 = vector.broadcast %cst_123 : f32 to vector<8x8xf32>
    %142 = arith.addf %141, %140 : vector<8x8xf32>
    %143 = arith.divf %141, %142 : vector<8x8xf32>
    %c0_124 = arith.constant 0 : index
    %c0_125 = arith.constant 0 : index
    %144 = vector.load %arg16[%c0_124, %c0_125] : memref<8x64xf32, #tpu.memory_space<vmem>>, vector<8x64xf32>
    %c0_126 = arith.constant 0 : index
    %c0_127 = arith.constant 0 : index
    %145 = vector.load %arg17[%c0_126, %c0_127] : memref<8x64xf32, #tpu.memory_space<vmem>>, vector<8x64xf32>
    %cst_128 = arith.constant dense<0.000000e+00> : vector<8x64xf32>
    %146 = tpu.matmul %143, %145, %cst_128 {dimension_numbers = #tpu.dot_dimension_numbers<[1], [0], [0], [1], [0, 0, 1, 1], [], []>} : vector<8x8xf32>, vector<8x64xf32>, vector<8x64xf32> -> vector<8x64xf32>
    %147 = arith.mulf %144, %146 : vector<8x64xf32>
    %cst_129 = arith.constant dense<0.000000e+00> : vector<64xf32>
    %148 = vector.multi_reduction <add>, %147, %cst_129 [0] : vector<8x64xf32> to vector<64xf32>
    %149 = vector.shape_cast %148 : vector<64xf32> to vector<1x64xf32>
    %150 = vector.broadcast %149 : vector<1x64xf32> to vector<8x64xf32>
    %151 = arith.mulf %79, %150 : vector<8x64xf32>
    %c0_130 = arith.constant 0 : index
    %c0_131 = arith.constant 0 : index
    %c0_132 = arith.constant 0 : index
    %152 = vector.load %arg22[%c0_130, %c0_131, %c0_132] : memref<1x8x64xf32, #tpu.memory_space<vmem>>, vector<1x8x64xf32>
    %153 = vector.shape_cast %152 : vector<1x8x64xf32> to vector<8x64xf32>
    %154 = vector.shape_cast %151 : vector<8x64xf32> to vector<1x8x64xf32>
    tpu.vector_store %arg22[%c0_130, %c0_131, %c0_132], %154 {strides = array<i32>} : memref<1x8x64xf32, #tpu.memory_space<vmem>>, vector<1x8x64xf32>,
    return
  }
  func.func @transform_0(%arg0: i32) -> (i32, i32, i32) {
    %c0_i32 = arith.constant 0 : i32
    %c0_i32_0 = arith.constant 0 : i32
    %c0_i32_1 = arith.constant 0 : i32
    return %arg0, %c0_i32, %c0_i32_0 : i32, i32, i32
  }
  func.func @transform_1(%arg0: i32) -> (i32, i32) {
    %c0_i32 = arith.constant 0 : i32
    %c0_i32_0 = arith.constant 0 : i32
    %c0_i32_1 = arith.constant 0 : i32
    return %c0_i32, %c0_i32_0 : i32, i32
  }
  func.func @transform_2(%arg0: i32) -> (i32, i32) {
    %c0_i32 = arith.constant 0 : i32
    %c0_i32_0 = arith.constant 0 : i32
    %c0_i32_1 = arith.constant 0 : i32
    return %c0_i32, %c0_i32_0 : i32, i32
  }
  func.func @transform_3(%arg0: i32) -> (i32, i32) {
    %c0_i32 = arith.constant 0 : i32
    %c0_i32_0 = arith.constant 0 : i32
    %c0_i32_1 = arith.constant 0 : i32
    return %c0_i32, %c0_i32_0 : i32, i32
  }
  func.func @transform_4(%arg0: i32) -> (i32, i32) {
    %c0_i32 = arith.constant 0 : i32
    %c0_i32_0 = arith.constant 0 : i32
    %c0_i32_1 = arith.constant 0 : i32
    return %c0_i32, %c0_i32_0 : i32, i32
  }
  func.func @transform_5(%arg0: i32) -> (i32, i32) {
    %c0_i32 = arith.constant 0 : i32
    %c0_i32_0 = arith.constant 0 : i32
    %c0_i32_1 = arith.constant 0 : i32
    return %c0_i32, %c0_i32_0 : i32, i32
  }
  func.func @transform_6(%arg0: i32) -> (i32, i32) {
    %c0_i32 = arith.constant 0 : i32
    %c0_i32_0 = arith.constant 0 : i32
    %c0_i32_1 = arith.constant 0 : i32
    return %c0_i32, %c0_i32_0 : i32, i32
  }
  func.func @transform_7(%arg0: i32) -> (i32, i32) {
    %c0_i32 = arith.constant 0 : i32
    %c0_i32_0 = arith.constant 0 : i32
    %c0_i32_1 = arith.constant 0 : i32
    return %c0_i32, %c0_i32_0 : i32, i32
  }
  func.func @transform_8(%arg0: i32) -> (i32, i32) {
    %c0_i32 = arith.constant 0 : i32
    %c0_i32_0 = arith.constant 0 : i32
    %c0_i32_1 = arith.constant 0 : i32
    return %c0_i32, %c0_i32_0 : i32, i32
  }
  func.func @transform_9(%arg0: i32) -> (i32, i32) {
    %c0_i32 = arith.constant 0 : i32
    %c0_i32_0 = arith.constant 0 : i32
    %c0_i32_1 = arith.constant 0 : i32
    return %c0_i32, %c0_i32_0 : i32, i32
  }
  func.func @transform_10(%arg0: i32) -> (i32, i32) {
    %c0_i32 = arith.constant 0 : i32
    %c0_i32_0 = arith.constant 0 : i32
    %c0_i32_1 = arith.constant 0 : i32
    return %c0_i32, %c0_i32_0 : i32, i32
  }
  func.func @transform_11(%arg0: i32) -> (i32, i32) {
    %c0_i32 = arith.constant 0 : i32
    %c0_i32_0 = arith.constant 0 : i32
    %c0_i32_1 = arith.constant 0 : i32
    return %c0_i32, %c0_i32_0 : i32, i32
  }
  func.func @transform_12(%arg0: i32) -> (i32, i32) {
    %c0_i32 = arith.constant 0 : i32
    %c0_i32_0 = arith.constant 0 : i32
    %c0_i32_1 = arith.constant 0 : i32
    return %c0_i32, %c0_i32_0 : i32, i32
  }
  func.func @transform_13(%arg0: i32) -> (i32, i32) {
    %c0_i32 = arith.constant 0 : i32
    %c0_i32_0 = arith.constant 0 : i32
    %c0_i32_1 = arith.constant 0 : i32
    return %c0_i32, %c0_i32_0 : i32, i32
  }
  func.func @transform_14(%arg0: i32) -> (i32, i32) {
    %c0_i32 = arith.constant 0 : i32
    %c0_i32_0 = arith.constant 0 : i32
    %c0_i32_1 = arith.constant 0 : i32
    return %c0_i32, %c0_i32_0 : i32, i32
  }
  func.func @transform_15(%arg0: i32) -> (i32, i32) {
    %c0_i32 = arith.constant 0 : i32
    %c0_i32_0 = arith.constant 0 : i32
    %c0_i32_1 = arith.constant 0 : i32
    return %c0_i32, %c0_i32_0 : i32, i32
  }
  func.func @transform_16(%arg0: i32) -> (i32, i32) {
    %c0_i32 = arith.constant 0 : i32
    %c0_i32_0 = arith.constant 0 : i32
    %c0_i32_1 = arith.constant 0 : i32
    return %c0_i32, %c0_i32_0 : i32, i32
  }
  func.func @transform_17(%arg0: i32) -> (i32, i32) {
    %c0_i32 = arith.constant 0 : i32
    %c0_i32_0 = arith.constant 0 : i32
    %c0_i32_1 = arith.constant 0 : i32
    return %c0_i32, %c0_i32_0 : i32, i32
  }
  func.func @transform_18(%arg0: i32) -> (i32, i32) {
    %c0_i32 = arith.constant 0 : i32
    %c0_i32_0 = arith.constant 0 : i32
    %c0_i32_1 = arith.constant 0 : i32
    return %c0_i32, %c0_i32_0 : i32, i32
  }
  func.func @transform_19(%arg0: i32) -> (i32, i32, i32) {
    %c0_i32 = arith.constant 0 : i32
    %c0_i32_0 = arith.constant 0 : i32
    %c0_i32_1 = arith.constant 0 : i32
    %c0_i32_2 = arith.constant 0 : i32
    return %c0_i32, %c0_i32_0, %c0_i32_1 : i32, i32, i32
  }
  func.func @transform_20(%arg0: i32) -> (i32, i32, i32) {
    %c0_i32 = arith.constant 0 : i32
    %c0_i32_0 = arith.constant 0 : i32
    %c0_i32_1 = arith.constant 0 : i32
    %c0_i32_2 = arith.constant 0 : i32
    return %c0_i32, %c0_i32_0, %c0_i32_1 : i32, i32, i32
  }
  func.func @transform_21(%arg0: i32) -> (i32, i32, i32) {
    %c0_i32 = arith.constant 0 : i32
    %c0_i32_0 = arith.constant 0 : i32
    %c0_i32_1 = arith.constant 0 : i32
    return %arg0, %c0_i32, %c0_i32_0 : i32, i32, i32
  }
}

</mosaic_0001>

<llo_original>
// kernel: mul.48
$region0: #{mul.48}
  %s0 = inlined_call_operand.vmem [shape: f32[36], index: 0, kind: input, shape index: {}]
  %s1 = inlined_call_operand.vmem [shape: f32[4,9], index: 1, kind: output, shape index: {}]
  $region1: #{mul.48} parent=0
    #allocation0 [shape = 'u8[4096]{0}', space=vmem, size = 0x1000, scoped, tag = 'scoped mem for output reshape']
    #allocation1 [shape = 'u8[4096]{0}', space=vmem, size = 0x1000, scoped, tag = 'scoped mem for input reshape']
    %s3 = sshllo.u32 0, 1
    %v4 = vld [vmem:[%s0] sm:%s3]
    %5 = vst [vmem:[#allocation1] sm:%s3] %v4
    %v6 = vld [vmem:[#allocation1] sm:$0x1]
    %vm7 = vcmask 72704
    %8 = vst.msk [vmem:[#allocation0] sm:$0x1] %vm7, %v6
    %v9 = vld [vmem:[#allocation1] sm:$0x1]
    %10 = vrot.lane.b32.xlu0 %v9, 119
    %v11 = vpop.permute.xlu0 %10
    %vm12 = vcmask 72704
    %s13 = scalar_lea.vmem [#allocation0], 1
    %14 = vst.msk [vmem:[%s13] sm:$0x1] %vm12, %v11
    %v15 = vld [vmem:[#allocation1] sm:$0x1]
    %16 = vrot.lane.b32.xlu0 %v15, 110
    %v17 = vpop.permute.xlu0 %16
    %vm18 = vcmask 72704
    %s19 = scalar_lea.vmem [#allocation0], 2
    %20 = vst.msk [vmem:[%s19] sm:$0x1] %vm18, %v17
    %v21 = vld [vmem:[#allocation1] sm:$0x1]
    %22 = vrot.lane.b32.xlu0 %v21, 101
    %v23 = vpop.permute.xlu0 %22
    %vm24 = vcmask 72704
    %s25 = scalar_lea.vmem [#allocation0], 3
    %26 = vst.msk [vmem:[%s25] sm:$0x1] %vm24, %v23
    %s28 = sshllo.u32 0, 4
    %v30 = vld [vmem:[#allocation0] sm:%s28]
    %s31 = sshllo.u32 0, 4
    %32 = vst [vmem:[%s1] sm:%s31] %v30

// kernel: rfccsm_forward.1
$region0: #{rfccsm_forward.1}
  #allocation0 [shape = 'u32[]', space=smem, size = 0x4, offset = 0x4, fixed_abs, tag = 'smem constant byte address 0x4 - core index']
  #allocation1 [shape = 'u32[144,128]{1,0:T(1,128)}', space=vmem, size = 0x12000, scoped, tag = 'internal scratch']
  %s0 = inlined_call_operand.vmem [shape: f32[2,36,64], index: 0, kind: input, shape index: {}]
  %s1 = inlined_call_operand.vmem [shape: f32[36,36], index: 1, kind: input, shape index: {}]
  %s2 = inlined_call_operand.vmem [shape: f32[36,1], index: 2, kind: input, shape index: {}]
  %s3 = inlined_call_operand.vmem [shape: f32[64,8], index: 3, kind: input, shape index: {}]
  %s4 = inlined_call_operand.vmem [shape: f32[64,8], index: 4, kind: input, shape index: {}]
  %s5 = inlined_call_operand.vmem [shape: f32[12,36], index: 5, kind: input, shape index: {}]
  %s6 = inlined_call_operand.vmem [shape: f32[12,36], index: 6, kind: input, shape index: {}]
  %s7 = inlined_call_operand.vmem [shape: f32[24,12], index: 7, kind: input, shape index: {}]
  %s8 = inlined_call_operand.vmem [shape: f32[24,1], index: 8, kind: input, shape index: {}]
  %s9 = inlined_call_operand.vmem [shape: f32[12,24], index: 9, kind: input, shape index: {}]
  %s10 = inlined_call_operand.vmem [shape: f32[12,1], index: 10, kind: input, shape index: {}]
  %s11 = inlined_call_operand.vmem [shape: f32[12,24], index: 11, kind: input, shape index: {}]
  %s12 = inlined_call_operand.vmem [shape: f32[12,1], index: 12, kind: input, shape index: {}]
  %s13 = inlined_call_operand.vmem [shape: f32[36,12], index: 13, kind: input, shape index: {}]
  %s14 = inlined_call_operand.vmem [shape: f32[36,12], index: 14, kind: input, shape index: {}]
  %s15 = inlined_call_operand.vmem [shape: f32[8,64], index: 15, kind: input, shape index: {}]
  %s16 = inlined_call_operand.vmem [shape: f32[8,64], index: 16, kind: input, shape index: {}]
  %s17 = inlined_call_operand.vmem [shape: f32[8,36], index: 17, kind: input, shape index: {}]
  %s18 = inlined_call_operand.vmem [shape: f32[8,1], index: 18, kind: input, shape index: {}]
  %s19 = inlined_call_operand.vmem [shape: f32[3,8,8], index: 19, kind: input, shape index: {}]
  %s20 = inlined_call_operand.vmem [shape: f32[6,8,8], index: 20, kind: input, shape index: {}]
  %s21 = inlined_call_operand.vmem [shape: f32[2,8,64], index: 21, kind: output, shape index: {}]
  %s22 = sld [smem:[#allocation0]]
  $region117: #{rfccsm_forward.1} parent=0
    _
  %s24 = ssub.s32 1, %s22
  %s25 = scalar_select 0, %s24, %s22
  loop: start=0, step=1, limit=4
  $region2: #{rfccsm_forward.1} parent=0 // loop_pre_header
    _
  $region3: #{rfccsm_forward.1} parent=0 // loop_header
    %s27 = sphi 0, %s31
    %p28 = scmp.ge.s32.totalorder %s27, 4
    %s37 = sphi 0, %s39
    %s40 = sphi 0, %s37
    %s41 = sphi 0, %s40
    %s57 = sphi 0, %s41
    %s61 = sphi 0, %s61
    %s63 = sphi 0, %s61
    %s64 = sphi 0, %s63
    %s78 = sphi 0, %s64
    %s82 = sphi 0, %s82
    %s84 = sphi 0, %s82
    %s85 = sphi 0, %s84
    %s99 = sphi 0, %s85
    %s103 = sphi 0, %s103
    %s105 = sphi 0, %s103
    %s106 = sphi 0, %s105
    %s120 = sphi 0, %s106
    %s124 = sphi 0, %s124
    %s126 = sphi 0, %s124
    %s127 = sphi 0, %s126
    %s141 = sphi 0, %s127
    %s145 = sphi 0, %s145
    %s147 = sphi 0, %s145
    %s148 = sphi 0, %s147
    %s162 = sphi 0, %s148
    %s166 = sphi 0, %s166
    %s168 = sphi 0, %s166
    %s169 = sphi 0, %s168
    %s183 = sphi 0, %s169
    %s187 = sphi 0, %s187
    %s189 = sphi 0, %s187
    %s190 = sphi 0, %s189
    %s204 = sphi 0, %s190
    %s208 = sphi 0, %s208
    %s210 = sphi 0, %s208
    %s211 = sphi 0, %s210
    %s225 = sphi 0, %s211
    %s229 = sphi 0, %s229
    %s231 = sphi 0, %s229
    %s232 = sphi 0, %s231
    %s246 = sphi 0, %s232
    %s250 = sphi 0, %s250
    %s252 = sphi 0, %s250
    %s253 = sphi 0, %s252
    %s267 = sphi 0, %s253
    %s271 = sphi 0, %s271
    %s273 = sphi 0, %s271
    %s274 = sphi 0, %s273
    %s288 = sphi 0, %s274
    %s292 = sphi 0, %s292
    %s294 = sphi 0, %s292
    %s295 = sphi 0, %s294
    %s309 = sphi 0, %s295
    %s313 = sphi 0, %s313
    %s315 = sphi 0, %s313
    %s316 = sphi 0, %s315
    %s330 = sphi 0, %s316
    %s334 = sphi 0, %s334
    %s336 = sphi 0, %s334
    %s337 = sphi 0, %s336
    %s351 = sphi 0, %s337
    %s355 = sphi 0, %s355
    %s357 = sphi 0, %s355
    %s358 = sphi 0, %s357
    %s372 = sphi 0, %s358
    %s376 = sphi 0, %s376
    %s378 = sphi 0, %s376
    %s379 = sphi 0, %s378
    %s393 = sphi 0, %s379
    %s397 = sphi 0, %s397
    %s399 = sphi 0, %s397
    %s400 = sphi 0, %s399
    %s414 = sphi 0, %s400
    %s418 = sphi 0, %s418
    %s420 = sphi 0, %s418
    %s421 = sphi 0, %s420
    %s435 = sphi 0, %s421
    %s439 = sphi 0, %s439
    %s441 = sphi 0, %s439
    %s442 = sphi 0, %s441
    %s456 = sphi 0, %s442
    %s460 = sphi 0, %s460
    %s462 = sphi 0, %s460
    %s463 = sphi 0, %s462
    %s477 = sphi 0, %s463
    %s483 = sphi 0, %s485
    %s486 = sphi 0, %s483
    %s487 = sphi 0, %s486
    %s503 = sphi 0, %s487
  $region4: #{rfccsm_forward.1} parent=0 // loop_header_branch
    %30 = sbr.rel (%p28) target = $region8
  $region5: #{rfccsm_forward.1} parent=0 // loop_body
    %s32 = ssub.s32 %s27, 1
    %s33 = ssub.s32 %s27, 2
    %s34 = sadd.s32 %s27, 1
    %s35 = ssub.s32 %s27, %s34
    %p36 = scmp.eq.s32.totalorder %s35, 0
    %s38 = sadd.s32 %s37, 1
    %s39 = scalar_select %p36, %s37, %s38
    %p42 = pneg %p36
    %p43 = scmp.eq.s32.totalorder %s27, 1
    %p44 = por %p42, %p43
    %p45 = scmp.ne.s32.totalorder %s37, %s40
    %p46 = scmp.eq.s32.totalorder %s27, 0
    %p47 = por %p45, %p46
    %p48 = scmp.ne.s32.totalorder %s37, %s40
    %p49 = scmp.eq.s32.totalorder %s32, 1
    %p50 = por %p48, %p49
    %p51 = scmp.ne.s32.totalorder %s40, %s41
    %p52 = scmp.eq.s32.totalorder %s32, 0
    %p53 = por %p51, %p52
    %p54 = scmp.ne.s32.totalorder %s40, %s41
    %p55 = scmp.eq.s32.totalorder %s33, 1
    %p56 = por %p54, %p55
    %p58 = scmp.ne.s32.totalorder %s41, %s57
    %p59 = scmp.eq.s32.totalorder %s33, 0
    %p60 = por %p58, %p59
    %s62 = sadd.s32 %s61, 1
    %p65 = scmp.eq.s32.totalorder %s27, 1
    %p66 = scmp.ne.s32.totalorder %s61, %s63
    %p67 = scmp.eq.s32.totalorder %s27, 0
    %p68 = por %p66, %p67
    %p69 = scmp.ne.s32.totalorder %s61, %s63
    %p70 = scmp.eq.s32.totalorder %s32, 1
    %p71 = por %p69, %p70
    %p72 = scmp.ne.s32.totalorder %s63, %s64
    %p73 = scmp.eq.s32.totalorder %s32, 0
    %p74 = por %p72, %p73
    %p75 = scmp.ne.s32.totalorder %s63, %s64
    %p76 = scmp.eq.s32.totalorder %s33, 1
    %p77 = por %p75, %p76
    %p79 = scmp.ne.s32.totalorder %s64, %s78
    %p80 = scmp.eq.s32.totalorder %s33, 0
    %p81 = por %p79, %p80
    %s83 = sadd.s32 %s82, 1
    %p86 = scmp.eq.s32.totalorder %s27, 1
    %p87 = scmp.ne.s32.totalorder %s82, %s84
    %p88 = scmp.eq.s32.totalorder %s27, 0
    %p89 = por %p87, %p88
    %p90 = scmp.ne.s32.totalorder %s82, %s84
    %p91 = scmp.eq.s32.totalorder %s32, 1
    %p92 = por %p90, %p91
    %p93 = scmp.ne.s32.totalorder %s84, %s85
    %p94 = scmp.eq.s32.totalorder %s32, 0
    %p95 = por %p93, %p94
    %p96 = scmp.ne.s32.totalorder %s84, %s85
    %p97 = scmp.eq.s32.totalorder %s33, 1
    %p98 = por %p96, %p97
    %p100 = scmp.ne.s32.totalorder %s85, %s99
    %p101 = scmp.eq.s32.totalorder %s33, 0
    %p102 = por %p100, %p101
    %s104 = sadd.s32 %s103, 1
    %p107 = scmp.eq.s32.totalorder %s27, 1
    %p108 = scmp.ne.s32.totalorder %s103, %s105
    %p109 = scmp.eq.s32.totalorder %s27, 0
    %p110 = por %p108, %p109
    %p111 = scmp.ne.s32.totalorder %s103, %s105
    %p112 = scmp.eq.s32.totalorder %s32, 1
    %p113 = por %p111, %p112
    %p114 = scmp.ne.s32.totalorder %s105, %s106
    %p115 = scmp.eq.s32.totalorder %s32, 0
    %p116 = por %p114, %p115
    %p117 = scmp.ne.s32.totalorder %s105, %s106
    %p118 = scmp.eq.s32.totalorder %s33, 1
    %p119 = por %p117, %p118
    %p121 = scmp.ne.s32.totalorder %s106, %s120
    %p122 = scmp.eq.s32.totalorder %s33, 0
    %p123 = por %p121, %p122
    %s125 = sadd.s32 %s124, 1
    %p128 = scmp.eq.s32.totalorder %s27, 1
    %p129 = scmp.ne.s32.totalorder %s124, %s126
    %p130 = scmp.eq.s32.totalorder %s27, 0
    %p131 = por %p129, %p130
    %p132 = scmp.ne.s32.totalorder %s124, %s126
    %p133 = scmp.eq.s32.totalorder %s32, 1
    %p134 = por %p132, %p133
    %p135 = scmp.ne.s32.totalorder %s126, %s127
    %p136 = scmp.eq.s32.totalorder %s32, 0
    %p137 = por %p135, %p136
    %p138 = scmp.ne.s32.totalorder %s126, %s127
    %p139 = scmp.eq.s32.totalorder %s33, 1
    %p140 = por %p138, %p139
    %p142 = scmp.ne.s32.totalorder %s127, %s141
    %p143 = scmp.eq.s32.totalorder %s33, 0
    %p144 = por %p142, %p143
    %s146 = sadd.s32 %s145, 1
    %p149 = scmp.eq.s32.totalorder %s27, 1
    %p150 = scmp.ne.s32.totalorder %s145, %s147
    %p151 = scmp.eq.s32.totalorder %s27, 0
    %p152 = por %p150, %p151
    %p153 = scmp.ne.s32.totalorder %s145, %s147
    %p154 = scmp.eq.s32.totalorder %s32, 1
    %p155 = por %p153, %p154
    %p156 = scmp.ne.s32.totalorder %s147, %s148
    %p157 = scmp.eq.s32.totalorder %s32, 0
    %p158 = por %p156, %p157
    %p159 = scmp.ne.s32.totalorder %s147, %s148
    %p160 = scmp.eq.s32.totalorder %s33, 1
    %p161 = por %p159, %p160
    %p163 = scmp.ne.s32.totalorder %s148, %s162
    %p164 = scmp.eq.s32.totalorder %s33, 0
    %p165 = por %p163, %p164
    %s167 = sadd.s32 %s166, 1
    %p170 = scmp.eq.s32.totalorder %s27, 1
    %p171 = scmp.ne.s32.totalorder %s166, %s168
    %p172 = scmp.eq.s32.totalorder %s27, 0
    %p173 = por %p171, %p172
    %p174 = scmp.ne.s32.totalorder %s166, %s168
    %p175 = scmp.eq.s32.totalorder %s32, 1
    %p176 = por %p174, %p175
    %p177 = scmp.ne.s32.totalorder %s168, %s169
    %p178 = scmp.eq.s32.totalorder %s32, 0
    %p179 = por %p177, %p178
    %p180 = scmp.ne.s32.totalorder %s168, %s169
    %p181 = scmp.eq.s32.totalorder %s33, 1
    %p182 = por %p180, %p181
    %p184 = scmp.ne.s32.totalorder %s169, %s183
    %p185 = scmp.eq.s32.totalorder %s33, 0
    %p186 = por %p184, %p185
    %s188 = sadd.s32 %s187, 1
    %p191 = scmp.eq.s32.totalorder %s27, 1
    %p192 = scmp.ne.s32.totalorder %s187, %s189
    %p193 = scmp.eq.s32.totalorder %s27, 0
    %p194 = por %p192, %p193
    %p195 = scmp.ne.s32.totalorder %s187, %s189
    %p196 = scmp.eq.s32.totalorder %s32, 1
    %p197 = por %p195, %p196
    %p198 = scmp.ne.s32.totalorder %s189, %s190
    %p199 = scmp.eq.s32.totalorder %s32, 0
    %p200 = por %p198, %p199
    %p201 = scmp.ne.s32.totalorder %s189, %s190
    %p202 = scmp.eq.s32.totalorder %s33, 1
    %p203 = por %p201, %p202
    %p205 = scmp.ne.s32.totalorder %s190, %s204
    %p206 = scmp.eq.s32.totalorder %s33, 0
    %p207 = por %p205, %p206
    %s209 = sadd.s32 %s208, 1
    %p212 = scmp.eq.s32.totalorder %s27, 1
    %p213 = scmp.ne.s32.totalorder %s208, %s210
    %p214 = scmp.eq.s32.totalorder %s27, 0
    %p215 = por %p213, %p214
    %p216 = scmp.ne.s32.totalorder %s208, %s210
    %p217 = scmp.eq.s32.totalorder %s32, 1
    %p218 = por %p216, %p217
    %p219 = scmp.ne.s32.totalorder %s210, %s211
    %p220 = scmp.eq.s32.totalorder %s32, 0
    %p221 = por %p219, %p220
    %p222 = scmp.ne.s32.totalorder %s210, %s211
    %p223 = scmp.eq.s32.totalorder %s33, 1
    %p224 = por %p222, %p223
    %p226 = scmp.ne.s32.totalorder %s211, %s225
    %p227 = scmp.eq.s32.totalorder %s33, 0
    %p228 = por %p226, %p227
    %s230 = sadd.s32 %s229, 1
    %p233 = scmp.eq.s32.totalorder %s27, 1
    %p234 = scmp.ne.s32.totalorder %s229, %s231
    %p235 = scmp.eq.s32.totalorder %s27, 0
    %p236 = por %p234, %p235
    %p237 = scmp.ne.s32.totalorder %s229, %s231
    %p238 = scmp.eq.s32.totalorder %s32, 1
    %p239 = por %p237, %p238
    %p240 = scmp.ne.s32.totalorder %s231, %s232
    %p241 = scmp.eq.s32.totalorder %s32, 0
    %p242 = por %p240, %p241
    %p243 = scmp.ne.s32.totalorder %s231, %s232
    %p244 = scmp.eq.s32.totalorder %s33, 1
    %p245 = por %p243, %p244
    %p247 = scmp.ne.s32.totalorder %s232, %s246
    %p248 = scmp.eq.s32.totalorder %s33, 0
    %p249 = por %p247, %p248
    %s251 = sadd.s32 %s250, 1
    %p254 = scmp.eq.s32.totalorder %s27, 1
    %p255 = scmp.ne.s32.totalorder %s250, %s252
    %p256 = scmp.eq.s32.totalorder %s27, 0
    %p257 = por %p255, %p256
    %p258 = scmp.ne.s32.totalorder %s250, %s252
    %p259 = scmp.eq.s32.totalorder %s32, 1
    %p260 = por %p258, %p259
    %p261 = scmp.ne.s32.totalorder %s252, %s253
    %p262 = scmp.eq.s32.totalorder %s32, 0
    %p263 = por %p261, %p262
    %p264 = scmp.ne.s32.totalorder %s252, %s253
    %p265 = scmp.eq.s32.totalorder %s33, 1
    %p266 = por %p264, %p265
    %p268 = scmp.ne.s32.totalorder %s253, %s267
    %p269 = scmp.eq.s32.totalorder %s33, 0
    %p270 = por %p268, %p269
    %s272 = sadd.s32 %s271, 1
    %p275 = scmp.eq.s32.totalorder %s27, 1
    %p276 = scmp.ne.s32.totalorder %s271, %s273
    %p277 = scmp.eq.s32.totalorder %s27, 0
    %p278 = por %p276, %p277
    %p279 = scmp.ne.s32.totalorder %s271, %s273
    %p280 = scmp.eq.s32.totalorder %s32, 1
    %p281 = por %p279, %p280
    %p282 = scmp.ne.s32.totalorder %s273, %s274
    %p283 = scmp.eq.s32.totalorder %s32, 0
    %p284 = por %p282, %p283
    %p285 = scmp.ne.s32.totalorder %s273, %s274
    %p286 = scmp.eq.s32.totalorder %s33, 1
    %p287 = por %p285, %p286
    %p289 = scmp.ne.s32.totalorder %s274, %s288
    %p290 = scmp.eq.s32.totalorder %s33, 0
    %p291 = por %p289, %p290
    %s293 = sadd.s32 %s292, 1
    %p296 = scmp.eq.s32.totalorder %s27, 1
    %p297 = scmp.ne.s32.totalorder %s292, %s294
    %p298 = scmp.eq.s32.totalorder %s27, 0
    %p299 = por %p297, %p298
    %p300 = scmp.ne.s32.totalorder %s292, %s294
    %p301 = scmp.eq.s32.totalorder %s32, 1
    %p302 = por %p300, %p301
    %p303 = scmp.ne.s32.totalorder %s294, %s295
    %p304 = scmp.eq.s32.totalorder %s32, 0
    %p305 = por %p303, %p304
    %p306 = scmp.ne.s32.totalorder %s294, %s295
    %p307 = scmp.eq.s32.totalorder %s33, 1
    %p308 = por %p306, %p307
    %p310 = scmp.ne.s32.totalorder %s295, %s309
    %p311 = scmp.eq.s32.totalorder %s33, 0
    %p312 = por %p310, %p311
    %s314 = sadd.s32 %s313, 1
    %p317 = scmp.eq.s32.totalorder %s27, 1
    %p318 = scmp.ne.s32.totalorder %s313, %s315
    %p319 = scmp.eq.s32.totalorder %s27, 0
    %p320 = por %p318, %p319
    %p321 = scmp.ne.s32.totalorder %s313, %s315
    %p322 = scmp.eq.s32.totalorder %s32, 1
    %p323 = por %p321, %p322
    %p324 = scmp.ne.s32.totalorder %s315, %s316
    %p325 = scmp.eq.s32.totalorder %s32, 0
    %p326 = por %p324, %p325
    %p327 = scmp.ne.s32.totalorder %s315, %s316
    %p328 = scmp.eq.s32.totalorder %s33, 1
    %p329 = por %p327, %p328
    %p331 = scmp.ne.s32.totalorder %s316, %s330
    %p332 = scmp.eq.s32.totalorder %s33, 0
    %p333 = por %p331, %p332
    %s335 = sadd.s32 %s334, 1
    %p338 = scmp.eq.s32.totalorder %s27, 1
    %p339 = scmp.ne.s32.totalorder %s334, %s336
    %p340 = scmp.eq.s32.totalorder %s27, 0
    %p341 = por %p339, %p340
    %p342 = scmp.ne.s32.totalorder %s334, %s336
    %p343 = scmp.eq.s32.totalorder %s32, 1
    %p344 = por %p342, %p343
    %p345 = scmp.ne.s32.totalorder %s336, %s337
    %p346 = scmp.eq.s32.totalorder %s32, 0
    %p347 = por %p345, %p346
    %p348 = scmp.ne.s32.totalorder %s336, %s337
    %p349 = scmp.eq.s32.totalorder %s33, 1
    %p350 = por %p348, %p349
    %p352 = scmp.ne.s32.totalorder %s337, %s351
    %p353 = scmp.eq.s32.totalorder %s33, 0
    %p354 = por %p352, %p353
    %s356 = sadd.s32 %s355, 1
    %p359 = scmp.eq.s32.totalorder %s27, 1
    %p360 = scmp.ne.s32.totalorder %s355, %s357
    %p361 = scmp.eq.s32.totalorder %s27, 0
    %p362 = por %p360, %p361
    %p363 = scmp.ne.s32.totalorder %s355, %s357
    %p364 = scmp.eq.s32.totalorder %s32, 1
    %p365 = por %p363, %p364
    %p366 = scmp.ne.s32.totalorder %s357, %s358
    %p367 = scmp.eq.s32.totalorder %s32, 0
    %p368 = por %p366, %p367
    %p369 = scmp.ne.s32.totalorder %s357, %s358
    %p370 = scmp.eq.s32.totalorder %s33, 1
    %p371 = por %p369, %p370
    %p373 = scmp.ne.s32.totalorder %s358, %s372
    %p374 = scmp.eq.s32.totalorder %s33, 0
    %p375 = por %p373, %p374
    %s377 = sadd.s32 %s376, 1
    %p380 = scmp.eq.s32.totalorder %s27, 1
    %p381 = scmp.ne.s32.totalorder %s376, %s378
    %p382 = scmp.eq.s32.totalorder %s27, 0
    %p383 = por %p381, %p382
    %p384 = scmp.ne.s32.totalorder %s376, %s378
    %p385 = scmp.eq.s32.totalorder %s32, 1
    %p386 = por %p384, %p385
    %p387 = scmp.ne.s32.totalorder %s378, %s379
    %p388 = scmp.eq.s32.totalorder %s32, 0
    %p389 = por %p387, %p388
    %p390 = scmp.ne.s32.totalorder %s378, %s379
    %p391 = scmp.eq.s32.totalorder %s33, 1
    %p392 = por %p390, %p391
    %p394 = scmp.ne.s32.totalorder %s379, %s393
    %p395 = scmp.eq.s32.totalorder %s33, 0
    %p396 = por %p394, %p395
    %s398 = sadd.s32 %s397, 1
    %p401 = scmp.eq.s32.totalorder %s27, 1
    %p402 = scmp.ne.s32.totalorder %s397, %s399
    %p403 = scmp.eq.s32.totalorder %s27, 0
    %p404 = por %p402, %p403
    %p405 = scmp.ne.s32.totalorder %s397, %s399
    %p406 = scmp.eq.s32.totalorder %s32, 1
    %p407 = por %p405, %p406
    %p408 = scmp.ne.s32.totalorder %s399, %s400
    %p409 = scmp.eq.s32.totalorder %s32, 0
    %p410 = por %p408, %p409
    %p411 = scmp.ne.s32.totalorder %s399, %s400
    %p412 = scmp.eq.s32.totalorder %s33, 1
    %p413 = por %p411, %p412
    %p415 = scmp.ne.s32.totalorder %s400, %s414
    %p416 = scmp.eq.s32.totalorder %s33, 0
    %p417 = por %p415, %p416
    %s419 = sadd.s32 %s418, 1
    %p422 = scmp.eq.s32.totalorder %s27, 1
    %p423 = scmp.ne.s32.totalorder %s418, %s420
    %p424 = scmp.eq.s32.totalorder %s27, 0
    %p425 = por %p423, %p424
    %p426 = scmp.ne.s32.totalorder %s418, %s420
    %p427 = scmp.eq.s32.totalorder %s32, 1
    %p428 = por %p426, %p427
    %p429 = scmp.ne.s32.totalorder %s420, %s421
    %p430 = scmp.eq.s32.totalorder %s32, 0
    %p431 = por %p429, %p430
    %p432 = scmp.ne.s32.totalorder %s420, %s421
    %p433 = scmp.eq.s32.totalorder %s33, 1
    %p434 = por %p432, %p433
    %p436 = scmp.ne.s32.totalorder %s421, %s435
    %p437 = scmp.eq.s32.totalorder %s33, 0
    %p438 = por %p436, %p437
    %s440 = sadd.s32 %s439, 1
    %p443 = scmp.eq.s32.totalorder %s27, 1
    %p444 = scmp.ne.s32.totalorder %s439, %s441
    %p445 = scmp.eq.s32.totalorder %s27, 0
    %p446 = por %p444, %p445
    %p447 = scmp.ne.s32.totalorder %s439, %s441
    %p448 = scmp.eq.s32.totalorder %s32, 1
    %p449 = por %p447, %p448
    %p450 = scmp.ne.s32.totalorder %s441, %s442
    %p451 = scmp.eq.s32.totalorder %s32, 0
    %p452 = por %p450, %p451
    %p453 = scmp.ne.s32.totalorder %s441, %s442
    %p454 = scmp.eq.s32.totalorder %s33, 1
    %p455 = por %p453, %p454
    %p457 = scmp.ne.s32.totalorder %s442, %s456
    %p458 = scmp.eq.s32.totalorder %s33, 0
    %p459 = por %p457, %p458
    %s461 = sadd.s32 %s460, 1
    %p464 = scmp.eq.s32.totalorder %s27, 1
    %p465 = scmp.ne.s32.totalorder %s460, %s462
    %p466 = scmp.eq.s32.totalorder %s27, 0
    %p467 = por %p465, %p466
    %p468 = scmp.ne.s32.totalorder %s460, %s462
    %p469 = scmp.eq.s32.totalorder %s32, 1
    %p470 = por %p468, %p469
    %p471 = scmp.ne.s32.totalorder %s462, %s463
    %p472 = scmp.eq.s32.totalorder %s32, 0
    %p473 = por %p471, %p472
    %p474 = scmp.ne.s32.totalorder %s462, %s463
    %p475 = scmp.eq.s32.totalorder %s33, 1
    %p476 = por %p474, %p475
    %p478 = scmp.ne.s32.totalorder %s463, %s477
    %p479 = scmp.eq.s32.totalorder %s33, 0
    %p480 = por %p478, %p479
    %s481 = ssub.s32 %s27, %s34
    %p482 = scmp.eq.s32.totalorder %s481, 0
    %s484 = sadd.s32 %s483, 1
    %s485 = scalar_select %p482, %s483, %s484
    %p488 = pneg %p482
    %p489 = scmp.eq.s32.totalorder %s27, 1
    %p490 = por %p488, %p489
    %p491 = scmp.ne.s32.totalorder %s483, %s486
    %p492 = scmp.eq.s32.totalorder %s27, 0
    %p493 = por %p491, %p492
    %p494 = scmp.ne.s32.totalorder %s483, %s486
    %p495 = scmp.eq.s32.totalorder %s32, 1
    %p496 = por %p494, %p495
    %p497 = scmp.ne.s32.totalorder %s486, %s487
    %p498 = scmp.eq.s32.totalorder %s32, 0
    %p499 = por %p497, %p498
    %p500 = scmp.ne.s32.totalorder %s486, %s487
    %p501 = scmp.eq.s32.totalorder %s33, 1
    %p502 = por %p500, %p501
    %p504 = scmp.ne.s32.totalorder %s487, %s503
    %p505 = scmp.eq.s32.totalorder %s33, 0
    %p506 = por %p504, %p505
    %p507 = scmp.le.s32.totalorder 1, %s27
    %p508 = scmp.lt.s32.totalorder %s27, 3
    %p509 = pnand %p507, %p508
    %p510 = pneg %p509
    // Predicated region
    $region9: #{rfccsm_forward.1} parent=5 // pred_check
      _
    $region10: #{rfccsm_forward.1} parent=5 // pred_check_branch
      %512 = sbr.rel (%p509) target = $region12
    $region11: #{rfccsm_forward.1} parent=5 // pred_region
      %s513 = ssub.s32 %s27, 1
      // Predicated region
      $region13: #{rfccsm_forward.1} parent=11 // pred_check
        %p514 = pneg %p74
      $region14: #{rfccsm_forward.1} parent=11 // pred_check_branch
        %516 = sbr.rel (%p514) target = $region16
      $region15: #{rfccsm_forward.1} parent=11 // pred_region
        _
      $region16: #{rfccsm_forward.1} parent=11 // pred_fallthru
        _
      // Predicated region
      $region17: #{rfccsm_forward.1} parent=11 // pred_check
        %p517 = pneg %p95
      $region18: #{rfccsm_forward.1} parent=11 // pred_check_branch
        %519 = sbr.rel (%p517) target = $region20
      $region19: #{rfccsm_forward.1} parent=11 // pred_region
        _
      $region20: #{rfccsm_forward.1} parent=11 // pred_fallthru
        _
      // Predicated region
      $region21: #{rfccsm_forward.1} parent=11 // pred_check
        %p520 = pneg %p116
      $region22: #{rfccsm_forward.1} parent=11 // pred_check_branch
        %522 = sbr.rel (%p520) target = $region24
      $region23: #{rfccsm_forward.1} parent=11 // pred_region
        _
      $region24: #{rfccsm_forward.1} parent=11 // pred_fallthru
        _
      // Predicated region
      $region25: #{rfccsm_forward.1} parent=11 // pred_check
        %p523 = pneg %p137
      $region26: #{rfccsm_forward.1} parent=11 // pred_check_branch
        %525 = sbr.rel (%p523) target = $region28
      $region27: #{rfccsm_forward.1} parent=11 // pred_region
        _
      $region28: #{rfccsm_forward.1} parent=11 // pred_fallthru
        _
      // Predicated region
      $region29: #{rfccsm_forward.1} parent=11 // pred_check
        %p526 = pneg %p158
      $region30: #{rfccsm_forward.1} parent=11 // pred_check_branch
        %528 = sbr.rel (%p526) target = $region32
      $region31: #{rfccsm_forward.1} parent=11 // pred_region
        _
      $region32: #{rfccsm_forward.1} parent=11 // pred_fallthru
        _
      // Predicated region
      $region33: #{rfccsm_forward.1} parent=11 // pred_check
        %p529 = pneg %p179
      $region34: #{rfccsm_forward.1} parent=11 // pred_check_branch
        %531 = sbr.rel (%p529) target = $region36
      $region35: #{rfccsm_forward.1} parent=11 // pred_region
        _
      $region36: #{rfccsm_forward.1} parent=11 // pred_fallthru
        _
      // Predicated region
      $region37: #{rfccsm_forward.1} parent=11 // pred_check
        %p532 = pneg %p200
      $region38: #{rfccsm_forward.1} parent=11 // pred_check_branch
        %534 = sbr.rel (%p532) target = $region40
      $region39: #{rfccsm_forward.1} parent=11 // pred_region
        _
      $region40: #{rfccsm_forward.1} parent=11 // pred_fallthru
        _
      // Predicated region
      $region41: #{rfccsm_forward.1} parent=11 // pred_check
        %p535 = pneg %p221
      $region42: #{rfccsm_forward.1} parent=11 // pred_check_branch
        %537 = sbr.rel (%p535) target = $region44
      $region43: #{rfccsm_forward.1} parent=11 // pred_region
        _
      $region44: #{rfccsm_forward.1} parent=11 // pred_fallthru
        _
      // Predicated region
      $region45: #{rfccsm_forward.1} parent=11 // pred_check
        %p538 = pneg %p242
      $region46: #{rfccsm_forward.1} parent=11 // pred_check_branch
        %540 = sbr.rel (%p538) target = $region48
      $region47: #{rfccsm_forward.1} parent=11 // pred_region
        _
      $region48: #{rfccsm_forward.1} parent=11 // pred_fallthru
        _
      // Predicated region
      $region49: #{rfccsm_forward.1} parent=11 // pred_check
        %p541 = pneg %p263
      $region50: #{rfccsm_forward.1} parent=11 // pred_check_branch
        %543 = sbr.rel (%p541) target = $region52
      $region51: #{rfccsm_forward.1} parent=11 // pred_region
        _
      $region52: #{rfccsm_forward.1} parent=11 // pred_fallthru
        _
      // Predicated region
      $region53: #{rfccsm_forward.1} parent=11 // pred_check
        %p544 = pneg %p284
      $region54: #{rfccsm_forward.1} parent=11 // pred_check_branch
        %546 = sbr.rel (%p544) target = $region56
      $region55: #{rfccsm_forward.1} parent=11 // pred_region
        _
      $region56: #{rfccsm_forward.1} parent=11 // pred_fallthru
        _
      // Predicated region
      $region57: #{rfccsm_forward.1} parent=11 // pred_check
        %p547 = pneg %p305
      $region58: #{rfccsm_forward.1} parent=11 // pred_check_branch
        %549 = sbr.rel (%p547) target = $region60
      $region59: #{rfccsm_forward.1} parent=11 // pred_region
        _
      $region60: #{rfccsm_forward.1} parent=11 // pred_fallthru
        _
      // Predicated region
      $region61: #{rfccsm_forward.1} parent=11 // pred_check
        %p550 = pneg %p326
      $region62: #{rfccsm_forward.1} parent=11 // pred_check_branch
        %552 = sbr.rel (%p550) target = $region64
      $region63: #{rfccsm_forward.1} parent=11 // pred_region
        _
      $region64: #{rfccsm_forward.1} parent=11 // pred_fallthru
        _
      // Predicated region
      $region65: #{rfccsm_forward.1} parent=11 // pred_check
        %p553 = pneg %p347
      $region66: #{rfccsm_forward.1} parent=11 // pred_check_branch
        %555 = sbr.rel (%p553) target = $region68
      $region67: #{rfccsm_forward.1} parent=11 // pred_region
        _
      $region68: #{rfccsm_forward.1} parent=11 // pred_fallthru
        _
      // Predicated region
      $region69: #{rfccsm_forward.1} parent=11 // pred_check
        %p556 = pneg %p368
      $region70: #{rfccsm_forward.1} parent=11 // pred_check_branch
        %558 = sbr.rel (%p556) target = $region72
      $region71: #{rfccsm_forward.1} parent=11 // pred_region
        _
      $region72: #{rfccsm_forward.1} parent=11 // pred_fallthru
        _
      // Predicated region
      $region73: #{rfccsm_forward.1} parent=11 // pred_check
        %p559 = pneg %p389
      $region74: #{rfccsm_forward.1} parent=11 // pred_check_branch
        %561 = sbr.rel (%p559) target = $region76
      $region75: #{rfccsm_forward.1} parent=11 // pred_region
        _
      $region76: #{rfccsm_forward.1} parent=11 // pred_fallthru
        _
      // Predicated region
      $region77: #{rfccsm_forward.1} parent=11 // pred_check
        %p562 = pneg %p410
      $region78: #{rfccsm_forward.1} parent=11 // pred_check_branch
        %564 = sbr.rel (%p562) target = $region80
      $region79: #{rfccsm_forward.1} parent=11 // pred_region
        _
      $region80: #{rfccsm_forward.1} parent=11 // pred_fallthru
        _
      // Predicated region
      $region81: #{rfccsm_forward.1} parent=11 // pred_check
        %p565 = pneg %p431
      $region82: #{rfccsm_forward.1} parent=11 // pred_check_branch
        %567 = sbr.rel (%p565) target = $region84
      $region83: #{rfccsm_forward.1} parent=11 // pred_region
        _
      $region84: #{rfccsm_forward.1} parent=11 // pred_fallthru
        _
      // Predicated region
      $region85: #{rfccsm_forward.1} parent=11 // pred_check
        %p568 = pneg %p452
      $region86: #{rfccsm_forward.1} parent=11 // pred_check_branch
        %570 = sbr.rel (%p568) target = $region88
      $region87: #{rfccsm_forward.1} parent=11 // pred_region
        _
      $region88: #{rfccsm_forward.1} parent=11 // pred_fallthru
        _
      // Predicated region
      $region89: #{rfccsm_forward.1} parent=11 // pred_check
        %p571 = pneg %p473
      $region90: #{rfccsm_forward.1} parent=11 // pred_check_branch
        %573 = sbr.rel (%p571) target = $region92
      $region91: #{rfccsm_forward.1} parent=11 // pred_region
        _
      $region92: #{rfccsm_forward.1} parent=11 // pred_fallthru
        _
    $region12: #{rfccsm_forward.1} parent=5 // pred_fallthru
      _
    %p574 = scmp.lt.s32.totalorder %s27, 2
    // Predicated region
    $region93: #{rfccsm_forward.1} parent=5 // pred_check
      %p575 = pneg %p574
    $region94: #{rfccsm_forward.1} parent=5 // pred_check_branch
      %577 = sbr.rel (%p575) target = $region96
    $region95: #{rfccsm_forward.1} parent=5 // pred_region
      // Predicated region
      $region97: #{rfccsm_forward.1} parent=95 // pred_check
        %p578 = pneg %p47
      $region98: #{rfccsm_forward.1} parent=95 // pred_check_branch
        %580 = sbr.rel (%p578) target = $region100
      $region99: #{rfccsm_forward.1} parent=95 // pred_region
        %p581 = scmp.lt.s32.totalorder %s27, 1
        %s582 = scalar_select %p581, %s27, 1
        %s583 = smul.addr %s582, 5
        %s584 = smul.addr %s583, 8
        %s585 = scalar_lea.vmem %s0, %s584
      $region100: #{rfccsm_forward.1} parent=95 // pred_fallthru
        _
    $region96: #{rfccsm_forward.1} parent=5 // pred_fallthru
      _
    %p586 = scmp.le.s32.totalorder 1, %s27
    %p587 = scmp.lt.s32.totalorder %s27, 3
    %p588 = pnand %p586, %p587
    %p589 = pneg %p588
    // Predicated region
    $region101: #{rfccsm_forward.1} parent=5 // pred_check
      _
    $region102: #{rfccsm_forward.1} parent=5 // pred_check_branch
      %591 = sbr.rel (%p588) target = $region104
    $region103: #{rfccsm_forward.1} parent=5 // pred_region
      %s592 = ssub.s32 %s27, 1
      %p593 = scmp.lt.s32.totalorder %s32, 1
      %s594 = scalar_select %p593, %s32, 1
      %s595 = smul.addr %s594, 5
      %s596 = smul.addr %s595, 8
      %s597 = scalar_lea.vmem %s0, %s596
      %p598 = pneg %p53
      %p599 = pneg %p50
      %p600 = pneg %p74
      %p601 = pneg %p71
      %p602 = pneg %p95
      %p603 = pneg %p92
      %p604 = pneg %p116
      %p605 = pneg %p113
      %p606 = pneg %p137
      %p607 = pneg %p134
      %p608 = pneg %p158
      %p609 = pneg %p155
      %p610 = pneg %p179
      %p611 = pneg %p176
      %p612 = pneg %p200
      %p613 = pneg %p197
      %p614 = pneg %p221
      %p615 = pneg %p218
      %p616 = pneg %p242
      %p617 = pneg %p239
      %p618 = pneg %p263
      %p619 = pneg %p260
      %p620 = pneg %p284
      %p621 = pneg %p281
      %p622 = pneg %p305
      %p623 = pneg %p302
      %p624 = pneg %p326
      %p625 = pneg %p323
      %p626 = pneg %p347
      %p627 = pneg %p344
      %p628 = pneg %p368
      %p629 = pneg %p365
      %p630 = pneg %p389
      %p631 = pneg %p386
      %p632 = pneg %p410
      %p633 = pneg %p407
      %p634 = pneg %p431
      %p635 = pneg %p428
      %p636 = pneg %p452
      %p637 = pneg %p449
      %p638 = pneg %p473
      %p639 = pneg %p470
      %p640 = pneg %p499
      %p641 = pneg %p496
      %p642 = scmp.lt.s32.totalorder %s32, 1
      %s643 = scalar_select %p642, %s32, 1
      %s644 = smul.addr %s643, 8
      %s645 = scalar_lea.vmem %s21, %s644
      %p646 = scmp.lt.s32.totalorder %s32, 1
      %s647 = scalar_select %p646, %s32, 1
      %s648 = smul.addr %s647, 5
      %s649 = smul.addr %s648, 8
      %s650 = scalar_lea.vmem %s0, %s649
      %p651 = scmp.lt.s32.totalorder %s32, 1
      %s652 = scalar_select %p651, %s32, 1
      %s653 = smul.addr %s652, 8
      %s654 = scalar_lea.vmem %s21, %s653
      %v655 = vld [vmem:[%s1] sm:$0xff]
      %v656 = vld [vmem:[%s1 + $0x8] sm:$0xff]
      %v657 = vld [vmem:[%s1 + $0x10] sm:$0xff]
      %v658 = vld [vmem:[%s1 + $0x18] sm:$0xff]
      %v659 = vld [vmem:[%s1 + $0x20] sm:$0xf]
      %v660 = vld [vmem:[%s650] sm:$0xff]
      %v661 = vld [vmem:[%s650 + $0x8] sm:$0xff]
      %v662 = vld [vmem:[%s650 + $0x10] sm:$0xff]
      %v663 = vld [vmem:[%s650 + $0x18] sm:$0xff]
      %v664 = vld [vmem:[%s650 + $0x20] sm:$0xf]
      %v665 = vld [vmem:[%s2] sm:$0xff]
      %v666 = vld [vmem:[%s2 + $0x8] sm:$0xff]
      %v667 = vld [vmem:[%s2 + $0x10] sm:$0xff]
      %v668 = vld [vmem:[%s2 + $0x18] sm:$0xff]
      %v669 = vld [vmem:[%s2 + $0x20] sm:$0xf]
      %671 = vset.pattern.permute.xlu0 0
      %672 = vperm.xlu0 %671, %v665
      %v673 = vpop.permute.xlu0 %672
      %676 = vset.pattern.permute.xlu0 0
      %677 = vperm.xlu0 %676, %v666
      %v678 = vpop.permute.xlu0 %677
      %681 = vset.pattern.permute.xlu0 0
      %682 = vperm.xlu0 %681, %v667
      %v683 = vpop.permute.xlu0 %682
      %686 = vset.pattern.permute.xlu0 0
      %687 = vperm.xlu0 %686, %v668
      %v688 = vpop.permute.xlu0 %687
      %691 = vset.pattern.permute.xlu0 0
      %692 = vperm.xlu0 %691, %v669
      %v693 = vpop.permute.xlu0 %692
      %vm695 = vcmask 293888
      %v697 = vsel %vm695, %v655, 0
      %v700 = vsel %vm695, %v656, 0
      %v703 = vsel %vm695, %v657, 0
      %v706 = vsel %vm695, %v658, 0
      %v709 = vsel %vm695, %v659, 0
      %vm711 = vcmask 1043456
      %v713 = vsel %vm711, %v664, 0
      %715 = vmatprep.subr.mxu0 0.0
      %716 = vmatpush1.msra.mxu0 %v660
      %717 = vmatprep.subr.mxu0 0.0
      %718 = vmatpush1.msra.mxu0 %v661
      %719 = vmatprep.subr.mxu0 0.0
      %720 = vmatpush1.msra.mxu0 %v662
      %721 = vmatprep.subr.mxu0 0.0
      %722 = vmatpush1.msra.mxu0 %v663
      %723 = vmatprep.subr.mxu0 0.0
      %724 = vmatpush1.msra.mxu0 %v713
      %725 = vmatprep.subr.mxu0 0.0
      %726 = vmatpush1.msra.mxu0 0.0
      %727 = vmatprep.subr.mxu0 0.0
      %728 = vmatpush1.msra.mxu0 0.0
      %729 = vmatprep.subr.mxu0 0.0
      %730 = vmatpush1.msra.mxu0 0.0
      %731 = vmatprep.subr.mxu0 0.0
      %732 = vmatpush1.msra.mxu0 0.0
      %733 = vmatprep.subr.mxu0 0.0
      %734 = vmatpush1.msra.mxu0 0.0
      %735 = vmatprep.subr.mxu0 0.0
      %736 = vmatpush1.msra.mxu0 0.0
      %737 = vmatprep.subr.mxu0 0.0
      %738 = vmatpush1.msra.mxu0 0.0
      %739 = vmatprep.subr.mxu0 0.0
      %740 = vmatpush1.msra.mxu0 0.0
      %741 = vmatprep.subr.mxu0 0.0
      %742 = vmatpush1.msra.mxu0 0.0
      %743 = vmatprep.subr.mxu0 0.0
      %744 = vmatpush1.msra.mxu0 0.0
      %745 = vmatprep.subr.mxu0 0.0
      %746 = vmatpush1.msra.mxu0 0.0
      %747 = vmatprep.subr.mxu0 0.0
      %748 = vmatpush1.msra.mxu0 0.0
      %749 = vmatprep.subr.mxu0 0.0
      %750 = vmatpush1.msra.mxu0 0.0
      %751 = vmatprep.subr.mxu0 0.0
      %752 = vmatpush1.msra.mxu0 0.0
      %753 = vmatprep.subr.mxu0 0.0
      %754 = vmatpush1.msra.mxu0 0.0
      %755 = vmatprep.subr.mxu0 0.0
      %756 = vmatpush1.msra.mxu0 0.0
      %757 = vmatprep.subr.mxu0 0.0
      %758 = vmatpush1.msra.mxu0 0.0
      %759 = vmatprep.subr.mxu0 0.0
      %760 = vmatpush1.msra.mxu0 0.0
      %761 = vmatprep.subr.mxu0 0.0
      %762 = vmatpush1.msra.mxu0 0.0
      %763 = vmatprep.subr.mxu0 0.0
      %764 = vmatpush1.msra.mxu0 0.0
      %765 = vmatprep.subr.mxu0 0.0
      %766 = vmatpush1.msra.mxu0 0.0
      %767 = vmatprep.subr.mxu0 0.0
      %768 = vmatpush1.msra.mxu0 0.0
      %769 = vmatprep.subr.mxu0 0.0
      %770 = vmatpush1.msra.mxu0 0.0
      %771 = vmatprep.subr.mxu0 0.0
      %772 = vmatpush1.msra.mxu0 0.0
      %773 = vmatprep.subr.mxu0 0.0
      %774 = vmatpush1.msra.mxu0 0.0
      %775 = vmatprep.subr.mxu0 0.0
      %776 = vmatpush1.msra.mxu0 0.0
      %777 = vmatprep.subr.mxu0 0.0
      %778 = vmatpush1.msra.mxu0 0.0
      %779 = vmatprep.mubr.f32.mxu0 0.0
      %780 = vmatmul.mubr.f32.gmra.mrb[0].mxu0 %v697
      %v781 = vpop.f32.mrb[0].mxu0
      %v782 = vadd.f32 %v673, %v781
      %v783 = vpop.f32.mrb[0].mxu0
      %784 = vmatprep.mubr.f32.mxu0 0.0
      %785 = vmatmul.mubr.f32.gmra.mrb[0].mxu0 %v700
      %v786 = vpop.f32.mrb[0].mxu0
      %v787 = vadd.f32 %v678, %v786
      %v788 = vpop.f32.mrb[0].mxu0
      %789 = vmatprep.mubr.f32.mxu0 0.0
      %790 = vmatmul.mubr.f32.gmra.mrb[0].mxu0 %v703
      %v791 = vpop.f32.mrb[0].mxu0
      %v792 = vadd.f32 %v683, %v791
      %v793 = vpop.f32.mrb[0].mxu0
      %794 = vmatprep.mubr.f32.mxu0 0.0
      %795 = vmatmul.mubr.f32.gmra.mrb[0].mxu0 %v706
      %v796 = vpop.f32.mrb[0].mxu0
      %v797 = vadd.f32 %v688, %v796
      %v798 = vpop.f32.mrb[0].mxu0
      %799 = vmatprep.mubr.f32.mxu0 0.0
      %800 = vmatmul.mubr.f32.gmra.mrb[0].mxu0 %v709
      %v801 = vpop.f32.mrb[0].mxu0
      %v802 = vadd.f32 %v693, %v801
      %v803 = vpop.f32.mrb[0].mxu0
      %804 = vdwg.mxu0
      %v805 = vmax.f32 %v782, 0.0
      %v806 = vmax.f32 %v787, 0.0
      %v807 = vmax.f32 %v792, 0.0
      %v808 = vmax.f32 %v797, 0.0
      %v809 = vmax.f32 %v802, 0.0
      %v810 = vld [vmem:[%s3] sm:$0xff]
      %v811 = vld [vmem:[%s3 + $0x8] sm:$0xff]
      %v812 = vld [vmem:[%s3 + $0x10] sm:$0xff]
      %v813 = vld [vmem:[%s3 + $0x18] sm:$0xff]
      %v814 = vld [vmem:[%s3 + $0x20] sm:$0xff]
      %v815 = vld [vmem:[%s3 + $0x28] sm:$0xff]
      %v816 = vld [vmem:[%s3 + $0x30] sm:$0xff]
      %v817 = vld [vmem:[%s3 + $0x38] sm:$0xff]
      %vm818 = vcmask 523264
      %v820 = vsel %vm818, %v805, 0
      %v823 = vsel %vm818, %v806, 0
      %v826 = vsel %vm818, %v807, 0
      %v829 = vsel %vm818, %v808, 0
      %v832 = vsel %vm818, %v809, 0
      %834 = vmatprep.subr.mxu0 0.0
      %835 = vmatpush1.msra.mxu0 %v810
      %836 = vmatprep.subr.mxu0 0.0
      %837 = vmatpush1.msra.mxu0 %v811
      %838 = vmatprep.subr.mxu0 0.0
      %839 = vmatpush1.msra.mxu0 %v812
      %840 = vmatprep.subr.mxu0 0.0
      %841 = vmatpush1.msra.mxu0 %v813
      %842 = vmatprep.subr.mxu0 0.0
      %843 = vmatpush1.msra.mxu0 %v814
      %844 = vmatprep.subr.mxu0 0.0
      %845 = vmatpush1.msra.mxu0 %v815
      %846 = vmatprep.subr.mxu0 0.0
      %847 = vmatpush1.msra.mxu0 %v816
      %848 = vmatprep.subr.mxu0 0.0
      %849 = vmatpush1.msra.mxu0 %v817
      %850 = vmatprep.subr.mxu0 0.0
      %851 = vmatpush1.msra.mxu0 0.0
      %852 = vmatprep.subr.mxu0 0.0
      %853 = vmatpush1.msra.mxu0 0.0
      %854 = vmatprep.subr.mxu0 0.0
      %855 = vmatpush1.msra.mxu0 0.0
      %856 = vmatprep.subr.mxu0 0.0
      %857 = vmatpush1.msra.mxu0 0.0
      %858 = vmatprep.subr.mxu0 0.0
      %859 = vmatpush1.msra.mxu0 0.0
      %860 = vmatprep.subr.mxu0 0.0
      %861 = vmatpush1.msra.mxu0 0.0
      %862 = vmatprep.subr.mxu0 0.0
      %863 = vmatpush1.msra.mxu0 0.0
      %864 = vmatprep.subr.mxu0 0.0
      %865 = vmatpush1.msra.mxu0 0.0
      %866 = vmatprep.subr.mxu0 0.0
      %867 = vmatpush1.msra.mxu0 0.0
      %868 = vmatprep.subr.mxu0 0.0
      %869 = vmatpush1.msra.mxu0 0.0
      %870 = vmatprep.subr.mxu0 0.0
      %871 = vmatpush1.msra.mxu0 0.0
      %872 = vmatprep.subr.mxu0 0.0
      %873 = vmatpush1.msra.mxu0 0.0
      %874 = vmatprep.subr.mxu0 0.0
      %875 = vmatpush1.msra.mxu0 0.0
      %876 = vmatprep.subr.mxu0 0.0
      %877 = vmatpush1.msra.mxu0 0.0
      %878 = vmatprep.subr.mxu0 0.0
      %879 = vmatpush1.msra.mxu0 0.0
      %880 = vmatprep.subr.mxu0 0.0
      %881 = vmatpush1.msra.mxu0 0.0
      %882 = vmatprep.subr.mxu0 0.0
      %883 = vmatpush1.msra.mxu0 0.0
      %884 = vmatprep.subr.mxu0 0.0
      %885 = vmatpush1.msra.mxu0 0.0
      %886 = vmatprep.subr.mxu0 0.0
      %887 = vmatpush1.msra.mxu0 0.0
      %888 = vmatprep.subr.mxu0 0.0
      %889 = vmatpush1.msra.mxu0 0.0
      %890 = vmatprep.subr.mxu0 0.0
      %891 = vmatpush1.msra.mxu0 0.0
      %892 = vmatprep.subr.mxu0 0.0
      %893 = vmatpush1.msra.mxu0 0.0
      %894 = vmatprep.subr.mxu0 0.0
      %895 = vmatpush1.msra.mxu0 0.0
      %896 = vmatprep.subr.mxu0 0.0
      %897 = vmatpush1.msra.mxu0 0.0
      %898 = vmatprep.mubr.f32.mxu0 0.0
      %899 = vmatmul.mubr.f32.gmra.mrb[0].mxu0 %v820
      %v900 = vpop.f32.mrb[0].mxu0
      %v901 = vadd.f32 0.0, %v900
      %v902 = vpop.f32.mrb[0].mxu0
      %903 = vmatprep.mubr.f32.mxu0 0.0
      %904 = vmatmul.mubr.f32.gmra.mrb[0].mxu0 %v823
      %v905 = vpop.f32.mrb[0].mxu0
      %v906 = vadd.f32 0.0, %v905
      %v907 = vpop.f32.mrb[0].mxu0
      %908 = vmatprep.mubr.f32.mxu0 0.0
      %909 = vmatmul.mubr.f32.gmra.mrb[0].mxu0 %v826
      %v910 = vpop.f32.mrb[0].mxu0
      %v911 = vadd.f32 0.0, %v910
      %v912 = vpop.f32.mrb[0].mxu0
      %913 = vmatprep.mubr.f32.mxu0 0.0
      %914 = vmatmul.mubr.f32.gmra.mrb[0].mxu0 %v829
      %v915 = vpop.f32.mrb[0].mxu0
      %v916 = vadd.f32 0.0, %v915
      %v917 = vpop.f32.mrb[0].mxu0
      %918 = vmatprep.mubr.f32.mxu0 0.0
      %919 = vmatmul.mubr.f32.gmra.mrb[0].mxu0 %v832
      %v920 = vpop.f32.mrb[0].mxu0
      %v921 = vadd.f32 0.0, %v920
      %v922 = vpop.f32.mrb[0].mxu0
      %923 = vdwg.mxu0
      %v924 = vld [vmem:[%s4] sm:$0xff]
      %v925 = vld [vmem:[%s4 + $0x8] sm:$0xff]
      %v926 = vld [vmem:[%s4 + $0x10] sm:$0xff]
      %v927 = vld [vmem:[%s4 + $0x18] sm:$0xff]
      %v928 = vld [vmem:[%s4 + $0x20] sm:$0xff]
      %v929 = vld [vmem:[%s4 + $0x28] sm:$0xff]
      %v930 = vld [vmem:[%s4 + $0x30] sm:$0xff]
      %v931 = vld [vmem:[%s4 + $0x38] sm:$0xff]
      %932 = vmatprep.subr.mxu0 0.0
      %933 = vmatpush1.msra.mxu0 %v924
      %934 = vmatprep.subr.mxu0 0.0
      %935 = vmatpush1.msra.mxu0 %v925
      %936 = vmatprep.subr.mxu0 0.0
      %937 = vmatpush1.msra.mxu0 %v926
      %938 = vmatprep.subr.mxu0 0.0
      %939 = vmatpush1.msra.mxu0 %v927
      %940 = vmatprep.subr.mxu0 0.0
      %941 = vmatpush1.msra.mxu0 %v928
      %942 = vmatprep.subr.mxu0 0.0
      %943 = vmatpush1.msra.mxu0 %v929
      %944 = vmatprep.subr.mxu0 0.0
      %945 = vmatpush1.msra.mxu0 %v930
      %946 = vmatprep.subr.mxu0 0.0
      %947 = vmatpush1.msra.mxu0 %v931
      %948 = vmatprep.subr.mxu0 0.0
      %949 = vmatpush1.msra.mxu0 0.0
      %950 = vmatprep.subr.mxu0 0.0
      %951 = vmatpush1.msra.mxu0 0.0
      %952 = vmatprep.subr.mxu0 0.0
      %953 = vmatpush1.msra.mxu0 0.0
      %954 = vmatprep.subr.mxu0 0.0
      %955 = vmatpush1.msra.mxu0 0.0
      %956 = vmatprep.subr.mxu0 0.0
      %957 = vmatpush1.msra.mxu0 0.0
      %958 = vmatprep.subr.mxu0 0.0
      %959 = vmatpush1.msra.mxu0 0.0
      %960 = vmatprep.subr.mxu0 0.0
      %961 = vmatpush1.msra.mxu0 0.0
      %962 = vmatprep.subr.mxu0 0.0
      %963 = vmatpush1.msra.mxu0 0.0
      %964 = vmatprep.subr.mxu0 0.0
      %965 = vmatpush1.msra.mxu0 0.0
      %966 = vmatprep.subr.mxu0 0.0
      %967 = vmatpush1.msra.mxu0 0.0
      %968 = vmatprep.subr.mxu0 0.0
      %969 = vmatpush1.msra.mxu0 0.0
      %970 = vmatprep.subr.mxu0 0.0
      %971 = vmatpush1.msra.mxu0 0.0
      %972 = vmatprep.subr.mxu0 0.0
      %973 = vmatpush1.msra.mxu0 0.0
      %974 = vmatprep.subr.mxu0 0.0
      %975 = vmatpush1.msra.mxu0 0.0
      %976 = vmatprep.subr.mxu0 0.0
      %977 = vmatpush1.msra.mxu0 0.0
      %978 = vmatprep.subr.mxu0 0.0
      %979 = vmatpush1.msra.mxu0 0.0
      %980 = vmatprep.subr.mxu0 0.0
      %981 = vmatpush1.msra.mxu0 0.0
      %982 = vmatprep.subr.mxu0 0.0
      %983 = vmatpush1.msra.mxu0 0.0
      %984 = vmatprep.subr.mxu0 0.0
      %985 = vmatpush1.msra.mxu0 0.0
      %986 = vmatprep.subr.mxu0 0.0
      %987 = vmatpush1.msra.mxu0 0.0
      %988 = vmatprep.subr.mxu0 0.0
      %989 = vmatpush1.msra.mxu0 0.0
      %990 = vmatprep.subr.mxu0 0.0
      %991 = vmatpush1.msra.mxu0 0.0
      %992 = vmatprep.subr.mxu0 0.0
      %993 = vmatpush1.msra.mxu0 0.0
      %994 = vmatprep.subr.mxu0 0.0
      %995 = vmatpush1.msra.mxu0 0.0
      %996 = vmatprep.mubr.f32.mxu0 0.0
      %997 = vmatmul.mubr.f32.gmra.mrb[0].mxu0 %v820
      %v998 = vpop.f32.mrb[0].mxu0
      %v999 = vadd.f32 0.0, %v998
      %v1000 = vpop.f32.mrb[0].mxu0
      %1001 = vmatprep.mubr.f32.mxu0 0.0
      %1002 = vmatmul.mubr.f32.gmra.mrb[0].mxu0 %v823
      %v1003 = vpop.f32.mrb[0].mxu0
      %v1004 = vadd.f32 0.0, %v1003
      %v1005 = vpop.f32.mrb[0].mxu0
      %1006 = vmatprep.mubr.f32.mxu0 0.0
      %1007 = vmatmul.mubr.f32.gmra.mrb[0].mxu0 %v826
      %v1008 = vpop.f32.mrb[0].mxu0
      %v1009 = vadd.f32 0.0, %v1008
      %v1010 = vpop.f32.mrb[0].mxu0
      %1011 = vmatprep.mubr.f32.mxu0 0.0
      %1012 = vmatmul.mubr.f32.gmra.mrb[0].mxu0 %v829
      %v1013 = vpop.f32.mrb[0].mxu0
      %v1014 = vadd.f32 0.0, %v1013
      %v1015 = vpop.f32.mrb[0].mxu0
      %1016 = vmatprep.mubr.f32.mxu0 0.0
      %1017 = vmatmul.mubr.f32.gmra.mrb[0].mxu0 %v832
      %v1018 = vpop.f32.mrb[0].mxu0
      %v1019 = vadd.f32 0.0, %v1018
      %v1020 = vpop.f32.mrb[0].mxu0
      %1021 = vdwg.mxu0
      %v1022 = vld [vmem:[%s5] sm:$0xff]
      %v1023 = vld [vmem:[%s5 + $0x8] sm:$0xf]
      %v1025 = vsel %vm695, %v1022, 0
      %v1028 = vsel %vm695, %v1023, 0
      %v1031 = vsel %vm711, %v921, 0
      %1033 = vmatprep.subr.mxu0 0.0
      %1034 = vmatpush1.msra.mxu0 %v901
      %1035 = vmatprep.subr.mxu0 0.0
      %1036 = vmatpush1.msra.mxu0 %v906
      %1037 = vmatprep.subr.mxu0 0.0
      %1038 = vmatpush1.msra.mxu0 %v911
      %1039 = vmatprep.subr.mxu0 0.0
      %1040 = vmatpush1.msra.mxu0 %v916
      %1041 = vmatprep.subr.mxu0 0.0
      %1042 = vmatpush1.msra.mxu0 %v1031
      %1043 = vmatprep.subr.mxu0 0.0
      %1044 = vmatpush1.msra.mxu0 0.0
      %1045 = vmatprep.subr.mxu0 0.0
      %1046 = vmatpush1.msra.mxu0 0.0
      %1047 = vmatprep.subr.mxu0 0.0
      %1048 = vmatpush1.msra.mxu0 0.0
      %1049 = vmatprep.subr.mxu0 0.0
      %1050 = vmatpush1.msra.mxu0 0.0
      %1051 = vmatprep.subr.mxu0 0.0
      %1052 = vmatpush1.msra.mxu0 0.0
      %1053 = vmatprep.subr.mxu0 0.0
      %1054 = vmatpush1.msra.mxu0 0.0
      %1055 = vmatprep.subr.mxu0 0.0
      %1056 = vmatpush1.msra.mxu0 0.0
      %1057 = vmatprep.subr.mxu0 0.0
      %1058 = vmatpush1.msra.mxu0 0.0
      %1059 = vmatprep.subr.mxu0 0.0
      %1060 = vmatpush1.msra.mxu0 0.0
      %1061 = vmatprep.subr.mxu0 0.0
      %1062 = vmatpush1.msra.mxu0 0.0
      %1063 = vmatprep.subr.mxu0 0.0
      %1064 = vmatpush1.msra.mxu0 0.0
      %1065 = vmatprep.subr.mxu0 0.0
      %1066 = vmatpush1.msra.mxu0 0.0
      %1067 = vmatprep.subr.mxu0 0.0
      %1068 = vmatpush1.msra.mxu0 0.0
      %1069 = vmatprep.subr.mxu0 0.0
      %1070 = vmatpush1.msra.mxu0 0.0
      %1071 = vmatprep.subr.mxu0 0.0
      %1072 = vmatpush1.msra.mxu0 0.0
      %1073 = vmatprep.subr.mxu0 0.0
      %1074 = vmatpush1.msra.mxu0 0.0
      %1075 = vmatprep.subr.mxu0 0.0
      %1076 = vmatpush1.msra.mxu0 0.0
      %1077 = vmatprep.subr.mxu0 0.0
      %1078 = vmatpush1.msra.mxu0 0.0
      %1079 = vmatprep.subr.mxu0 0.0
      %1080 = vmatpush1.msra.mxu0 0.0
      %1081 = vmatprep.subr.mxu0 0.0
      %1082 = vmatpush1.msra.mxu0 0.0
      %1083 = vmatprep.subr.mxu0 0.0
      %1084 = vmatpush1.msra.mxu0 0.0
      %1085 = vmatprep.subr.mxu0 0.0
      %1086 = vmatpush1.msra.mxu0 0.0
      %1087 = vmatprep.subr.mxu0 0.0
      %1088 = vmatpush1.msra.mxu0 0.0
      %1089 = vmatprep.subr.mxu0 0.0
      %1090 = vmatpush1.msra.mxu0 0.0
      %1091 = vmatprep.subr.mxu0 0.0
      %1092 = vmatpush1.msra.mxu0 0.0
      %1093 = vmatprep.subr.mxu0 0.0
      %1094 = vmatpush1.msra.mxu0 0.0
      %1095 = vmatprep.subr.mxu0 0.0
      %1096 = vmatpush1.msra.mxu0 0.0
      %1097 = vmatprep.mubr.f32.mxu0 0.0
      %1098 = vmatmul.mubr.f32.gmra.mrb[0].mxu0 %v1025
      %v1099 = vpop.f32.mrb[0].mxu0
      %v1100 = vadd.f32 0.0, %v1099
      %v1101 = vpop.f32.mrb[0].mxu0
      %1102 = vmatprep.mubr.f32.mxu0 0.0
      %1103 = vmatmul.mubr.f32.gmra.mrb[0].mxu0 %v1028
      %v1104 = vpop.f32.mrb[0].mxu0
      %v1105 = vadd.f32 0.0, %v1104
      %v1106 = vpop.f32.mrb[0].mxu0
      %1107 = vdwg.mxu0
      %v1108 = vld [vmem:[%s6] sm:$0xff]
      %v1109 = vld [vmem:[%s6 + $0x8] sm:$0xf]
      %v1111 = vsel %vm695, %v1108, 0
      %v1114 = vsel %vm695, %v1109, 0
      %v1117 = vsel %vm711, %v1019, 0
      %1119 = vmatprep.subr.mxu0 0.0
      %1120 = vmatpush1.msra.mxu0 %v999
      %1121 = vmatprep.subr.mxu0 0.0
      %1122 = vmatpush1.msra.mxu0 %v1004
      %1123 = vmatprep.subr.mxu0 0.0
      %1124 = vmatpush1.msra.mxu0 %v1009
      %1125 = vmatprep.subr.mxu0 0.0
      %1126 = vmatpush1.msra.mxu0 %v1014
      %1127 = vmatprep.subr.mxu0 0.0
      %1128 = vmatpush1.msra.mxu0 %v1117
      %1129 = vmatprep.subr.mxu0 0.0
      %1130 = vmatpush1.msra.mxu0 0.0
      %1131 = vmatprep.subr.mxu0 0.0
      %1132 = vmatpush1.msra.mxu0 0.0
      %1133 = vmatprep.subr.mxu0 0.0
      %1134 = vmatpush1.msra.mxu0 0.0
      %1135 = vmatprep.subr.mxu0 0.0
      %1136 = vmatpush1.msra.mxu0 0.0
      %1137 = vmatprep.subr.mxu0 0.0
      %1138 = vmatpush1.msra.mxu0 0.0
      %1139 = vmatprep.subr.mxu0 0.0
      %1140 = vmatpush1.msra.mxu0 0.0
      %1141 = vmatprep.subr.mxu0 0.0
      %1142 = vmatpush1.msra.mxu0 0.0
      %1143 = vmatprep.subr.mxu0 0.0
      %1144 = vmatpush1.msra.mxu0 0.0
      %1145 = vmatprep.subr.mxu0 0.0
      %1146 = vmatpush1.msra.mxu0 0.0
      %1147 = vmatprep.subr.mxu0 0.0
      %1148 = vmatpush1.msra.mxu0 0.0
      %1149 = vmatprep.subr.mxu0 0.0
      %1150 = vmatpush1.msra.mxu0 0.0
      %1151 = vmatprep.subr.mxu0 0.0
      %1152 = vmatpush1.msra.mxu0 0.0
      %1153 = vmatprep.subr.mxu0 0.0
      %1154 = vmatpush1.msra.mxu0 0.0
      %1155 = vmatprep.subr.mxu0 0.0
      %1156 = vmatpush1.msra.mxu0 0.0
      %1157 = vmatprep.subr.mxu0 0.0
      %1158 = vmatpush1.msra.mxu0 0.0
      %1159 = vmatprep.subr.mxu0 0.0
      %1160 = vmatpush1.msra.mxu0 0.0
      %1161 = vmatprep.subr.mxu0 0.0
      %1162 = vmatpush1.msra.mxu0 0.0
      %1163 = vmatprep.subr.mxu0 0.0
      %1164 = vmatpush1.msra.mxu0 0.0
      %1165 = vmatprep.subr.mxu0 0.0
      %1166 = vmatpush1.msra.mxu0 0.0
      %1167 = vmatprep.subr.mxu0 0.0
      %1168 = vmatpush1.msra.mxu0 0.0
      %1169 = vmatprep.subr.mxu0 0.0
      %1170 = vmatpush1.msra.mxu0 0.0
      %1171 = vmatprep.subr.mxu0 0.0
      %1172 = vmatpush1.msra.mxu0 0.0
      %1173 = vmatprep.subr.mxu0 0.0
      %1174 = vmatpush1.msra.mxu0 0.0
      %1175 = vmatprep.subr.mxu0 0.0
      %1176 = vmatpush1.msra.mxu0 0.0
      %1177 = vmatprep.subr.mxu0 0.0
      %1178 = vmatpush1.msra.mxu0 0.0
      %1179 = vmatprep.subr.mxu0 0.0
      %1180 = vmatpush1.msra.mxu0 0.0
      %1181 = vmatprep.subr.mxu0 0.0
      %1182 = vmatpush1.msra.mxu0 0.0
      %1183 = vmatprep.mubr.f32.mxu0 0.0
      %1184 = vmatmul.mubr.f32.gmra.mrb[0].mxu0 %v1111
      %v1185 = vpop.f32.mrb[0].mxu0
      %v1186 = vadd.f32 0.0, %v1185
      %v1187 = vpop.f32.mrb[0].mxu0
      %1188 = vmatprep.mubr.f32.mxu0 0.0
      %1189 = vmatmul.mubr.f32.gmra.mrb[0].mxu0 %v1114
      %v1190 = vpop.f32.mrb[0].mxu0
      %v1191 = vadd.f32 0.0, %v1190
      %v1192 = vpop.f32.mrb[0].mxu0
      %1193 = vdwg.mxu0
      %v1194 = vld [vmem:[%s7] sm:$0xff]
      %v1195 = vld [vmem:[%s7 + $0x8] sm:$0xff]
      %v1196 = vld [vmem:[%s7 + $0x10] sm:$0xff]
      %v1197 = vld [vmem:[%s8] sm:$0xff]
      %v1198 = vld [vmem:[%s8 + $0x8] sm:$0xff]
      %v1199 = vld [vmem:[%s8 + $0x10] sm:$0xff]
      %1201 = vset.pattern.permute.xlu0 0
      %1202 = vperm.xlu0 %1201, %v1197
      %v1203 = vpop.permute.xlu0 %1202
      %1206 = vset.pattern.permute.xlu0 0
      %1207 = vperm.xlu0 %1206, %v1198
      %v1208 = vpop.permute.xlu0 %1207
      %1211 = vset.pattern.permute.xlu0 0
      %1212 = vperm.xlu0 %1211, %v1199
      %v1213 = vpop.permute.xlu0 %1212
      %vm1215 = vcmask 97280
      %v1217 = vsel %vm1215, %v1194, 0
      %v1220 = vsel %vm1215, %v1195, 0
      %v1223 = vsel %vm1215, %v1196, 0
      %v1226 = vsel %vm711, %v1105, 0
      %1228 = vmatprep.subr.mxu0 0.0
      %1229 = vmatpush1.msra.mxu0 %v1100
      %1230 = vmatprep.subr.mxu0 0.0
      %1231 = vmatpush1.msra.mxu0 %v1226
      %1232 = vmatprep.subr.mxu0 0.0
      %1233 = vmatpush1.msra.mxu0 0.0
      %1234 = vmatprep.subr.mxu0 0.0
      %1235 = vmatpush1.msra.mxu0 0.0
      %1236 = vmatprep.subr.mxu0 0.0
      %1237 = vmatpush1.msra.mxu0 0.0
      %1238 = vmatprep.subr.mxu0 0.0
      %1239 = vmatpush1.msra.mxu0 0.0
      %1240 = vmatprep.subr.mxu0 0.0
      %1241 = vmatpush1.msra.mxu0 0.0
      %1242 = vmatprep.subr.mxu0 0.0
      %1243 = vmatpush1.msra.mxu0 0.0
      %1244 = vmatprep.subr.mxu0 0.0
      %1245 = vmatpush1.msra.mxu0 0.0
      %1246 = vmatprep.subr.mxu0 0.0
      %1247 = vmatpush1.msra.mxu0 0.0
      %1248 = vmatprep.subr.mxu0 0.0
      %1249 = vmatpush1.msra.mxu0 0.0
      %1250 = vmatprep.subr.mxu0 0.0
      %1251 = vmatpush1.msra.mxu0 0.0
      %1252 = vmatprep.subr.mxu0 0.0
      %1253 = vmatpush1.msra.mxu0 0.0
      %1254 = vmatprep.subr.mxu0 0.0
      %1255 = vmatpush1.msra.mxu0 0.0
      %1256 = vmatprep.subr.mxu0 0.0
      %1257 = vmatpush1.msra.mxu0 0.0
      %1258 = vmatprep.subr.mxu0 0.0
      %1259 = vmatpush1.msra.mxu0 0.0
      %1260 = vmatprep.subr.mxu0 0.0
      %1261 = vmatpush1.msra.mxu0 0.0
      %1262 = vmatprep.subr.mxu0 0.0
      %1263 = vmatpush1.msra.mxu0 0.0
      %1264 = vmatprep.subr.mxu0 0.0
      %1265 = vmatpush1.msra.mxu0 0.0
      %1266 = vmatprep.subr.mxu0 0.0
      %1267 = vmatpush1.msra.mxu0 0.0
      %1268 = vmatprep.subr.mxu0 0.0
      %1269 = vmatpush1.msra.mxu0 0.0
      %1270 = vmatprep.subr.mxu0 0.0
      %1271 = vmatpush1.msra.mxu0 0.0
      %1272 = vmatprep.subr.mxu0 0.0
      %1273 = vmatpush1.msra.mxu0 0.0
      %1274 = vmatprep.subr.mxu0 0.0
      %1275 = vmatpush1.msra.mxu0 0.0
      %1276 = vmatprep.subr.mxu0 0.0
      %1277 = vmatpush1.msra.mxu0 0.0
      %1278 = vmatprep.subr.mxu0 0.0
      %1279 = vmatpush1.msra.mxu0 0.0
      %1280 = vmatprep.subr.mxu0 0.0
      %1281 = vmatpush1.msra.mxu0 0.0
      %1282 = vmatprep.subr.mxu0 0.0
      %1283 = vmatpush1.msra.mxu0 0.0
      %1284 = vmatprep.subr.mxu0 0.0
      %1285 = vmatpush1.msra.mxu0 0.0
      %1286 = vmatprep.subr.mxu0 0.0
      %1287 = vmatpush1.msra.mxu0 0.0
      %1288 = vmatprep.subr.mxu0 0.0
      %1289 = vmatpush1.msra.mxu0 0.0
      %1290 = vmatprep.subr.mxu0 0.0
      %1291 = vmatpush1.msra.mxu0 0.0
      %1292 = vmatprep.mubr.f32.mxu0 0.0
      %1293 = vmatmul.mubr.f32.gmra.mrb[0].mxu0 %v1217
      %v1294 = vpop.f32.mrb[0].mxu0
      %v1295 = vadd.f32 %v1203, %v1294
      %v1296 = vpop.f32.mrb[0].mxu0
      %1297 = vmatprep.mubr.f32.mxu0 0.0
      %1298 = vmatmul.mubr.f32.gmra.mrb[0].mxu0 %v1220
      %v1299 = vpop.f32.mrb[0].mxu0
      %v1300 = vadd.f32 %v1208, %v1299
      %v1301 = vpop.f32.mrb[0].mxu0
      %1302 = vmatprep.mubr.f32.mxu0 0.0
      %1303 = vmatmul.mubr.f32.gmra.mrb[0].mxu0 %v1223
      %v1304 = vpop.f32.mrb[0].mxu0
      %v1305 = vadd.f32 %v1213, %v1304
      %v1306 = vpop.f32.mrb[0].mxu0
      %1307 = vdwg.mxu0
      %v1308 = vadd.f32 %v1295, 3.0
      %v1309 = vadd.f32 %v1300, 3.0
      %v1310 = vadd.f32 %v1305, 3.0
      %v1311 = vmax.f32 %v1308, 0.0
      %v1312 = vmax.f32 %v1309, 0.0
      %v1313 = vmax.f32 %v1310, 0.0
      %v1314 = vmin.f32 %v1311, 6.0
      %v1315 = vmin.f32 %v1312, 6.0
      %v1316 = vmin.f32 %v1313, 6.0
      %v1317 = vmul.f32 %v1295, %v1314
      %v1318 = vmul.f32 %v1300, %v1315
      %v1319 = vmul.f32 %v1305, %v1316
      %v1320 = vmul.f32 %v1317, 0.16666667
      %v1321 = vmul.f32 %v1318, 0.16666667
      %v1322 = vmul.f32 %v1319, 0.16666667
      %v1324 = vsel %vm711, %v1191, 0
      %1326 = vmatprep.subr.mxu0 0.0
      %1327 = vmatpush1.msra.mxu0 %v1186
      %1328 = vmatprep.subr.mxu0 0.0
      %1329 = vmatpush1.msra.mxu0 %v1324
      %1330 = vmatprep.subr.mxu0 0.0
      %1331 = vmatpush1.msra.mxu0 0.0
      %1332 = vmatprep.subr.mxu0 0.0
      %1333 = vmatpush1.msra.mxu0 0.0
      %1334 = vmatprep.subr.mxu0 0.0
      %1335 = vmatpush1.msra.mxu0 0.0
      %1336 = vmatprep.subr.mxu0 0.0
      %1337 = vmatpush1.msra.mxu0 0.0
      %1338 = vmatprep.subr.mxu0 0.0
      %1339 = vmatpush1.msra.mxu0 0.0
      %1340 = vmatprep.subr.mxu0 0.0
      %1341 = vmatpush1.msra.mxu0 0.0
      %1342 = vmatprep.subr.mxu0 0.0
      %1343 = vmatpush1.msra.mxu0 0.0
      %1344 = vmatprep.subr.mxu0 0.0
      %1345 = vmatpush1.msra.mxu0 0.0
      %1346 = vmatprep.subr.mxu0 0.0
      %1347 = vmatpush1.msra.mxu0 0.0
      %1348 = vmatprep.subr.mxu0 0.0
      %1349 = vmatpush1.msra.mxu0 0.0
      %1350 = vmatprep.subr.mxu0 0.0
      %1351 = vmatpush1.msra.mxu0 0.0
      %1352 = vmatprep.subr.mxu0 0.0
      %1353 = vmatpush1.msra.mxu0 0.0
      %1354 = vmatprep.subr.mxu0 0.0
      %1355 = vmatpush1.msra.mxu0 0.0
      %1356 = vmatprep.subr.mxu0 0.0
      %1357 = vmatpush1.msra.mxu0 0.0
      %1358 = vmatprep.subr.mxu0 0.0
      %1359 = vmatpush1.msra.mxu0 0.0
      %1360 = vmatprep.subr.mxu0 0.0
      %1361 = vmatpush1.msra.mxu0 0.0
      %1362 = vmatprep.subr.mxu0 0.0
      %1363 = vmatpush1.msra.mxu0 0.0
      %1364 = vmatprep.subr.mxu0 0.0
      %1365 = vmatpush1.msra.mxu0 0.0
      %1366 = vmatprep.subr.mxu0 0.0
      %1367 = vmatpush1.msra.mxu0 0.0
      %1368 = vmatprep.subr.mxu0 0.0
      %1369 = vmatpush1.msra.mxu0 0.0
      %1370 = vmatprep.subr.mxu0 0.0
      %1371 = vmatpush1.msra.mxu0 0.0
      %1372 = vmatprep.subr.mxu0 0.0
      %1373 = vmatpush1.msra.mxu0 0.0
      %1374 = vmatprep.subr.mxu0 0.0
      %1375 = vmatpush1.msra.mxu0 0.0
      %1376 = vmatprep.subr.mxu0 0.0
      %1377 = vmatpush1.msra.mxu0 0.0
      %1378 = vmatprep.subr.mxu0 0.0
      %1379 = vmatpush1.msra.mxu0 0.0
      %1380 = vmatprep.subr.mxu0 0.0
      %1381 = vmatpush1.msra.mxu0 0.0
      %1382 = vmatprep.subr.mxu0 0.0
      %1383 = vmatpush1.msra.mxu0 0.0
      %1384 = vmatprep.subr.mxu0 0.0
      %1385 = vmatpush1.msra.mxu0 0.0
      %1386 = vmatprep.subr.mxu0 0.0
      %1387 = vmatpush1.msra.mxu0 0.0
      %1388 = vmatprep.subr.mxu0 0.0
      %1389 = vmatpush1.msra.mxu0 0.0
      %1390 = vmatprep.mubr.f32.mxu0 0.0
      %1391 = vmatmul.mubr.f32.gmra.mrb[0].mxu0 %v1217
      %v1392 = vpop.f32.mrb[0].mxu0
      %v1393 = vadd.f32 %v1203, %v1392
      %v1394 = vpop.f32.mrb[0].mxu0
      %1395 = vmatprep.mubr.f32.mxu0 0.0
      %1396 = vmatmul.mubr.f32.gmra.mrb[0].mxu0 %v1220
      %v1397 = vpop.f32.mrb[0].mxu0
      %v1398 = vadd.f32 %v1208, %v1397
      %v1399 = vpop.f32.mrb[0].mxu0
      %1400 = vmatprep.mubr.f32.mxu0 0.0
      %1401 = vmatmul.mubr.f32.gmra.mrb[0].mxu0 %v1223
      %v1402 = vpop.f32.mrb[0].mxu0
      %v1403 = vadd.f32 %v1213, %v1402
      %v1404 = vpop.f32.mrb[0].mxu0
      %1405 = vdwg.mxu0
      %v1406 = vadd.f32 %v1393, 3.0
      %v1407 = vadd.f32 %v1398, 3.0
      %v1408 = vadd.f32 %v1403, 3.0
      %v1409 = vmax.f32 %v1406, 0.0
      %v1410 = vmax.f32 %v1407, 0.0
      %v1411 = vmax.f32 %v1408, 0.0
      %v1412 = vmin.f32 %v1409, 6.0
      %v1413 = vmin.f32 %v1410, 6.0
      %v1414 = vmin.f32 %v1411, 6.0
      %v1415 = vmul.f32 %v1393, %v1412
      %v1416 = vmul.f32 %v1398, %v1413
      %v1417 = vmul.f32 %v1403, %v1414
      %v1418 = vmul.f32 %v1415, 0.16666667
      %v1419 = vmul.f32 %v1416, 0.16666667
      %v1420 = vmul.f32 %v1417, 0.16666667
      %v1421 = vld [vmem:[%s9] sm:$0xff]
      %v1422 = vld [vmem:[%s9 + $0x8] sm:$0xf]
      %v1423 = vld [vmem:[%s10] sm:$0xff]
      %v1424 = vld [vmem:[%s10 + $0x8] sm:$0xf]
      %1426 = vset.pattern.permute.xlu0 0
      %1427 = vperm.xlu0 %1426, %v1423
      %v1428 = vpop.permute.xlu0 %1427
      %1431 = vset.pattern.permute.xlu0 0
      %1432 = vperm.xlu0 %1431, %v1424
      %v1433 = vpop.permute.xlu0 %1432
      %vm1435 = vcmask 195584
      %v1437 = vsel %vm1435, %v1421, 0
      %v1440 = vsel %vm1435, %v1422, 0
      %1442 = vmatprep.subr.mxu0 0.0
      %1443 = vmatpush1.msra.mxu0 %v1320
      %1444 = vmatprep.subr.mxu0 0.0
      %1445 = vmatpush1.msra.mxu0 %v1321
      %1446 = vmatprep.subr.mxu0 0.0
      %1447 = vmatpush1.msra.mxu0 %v1322
      %1448 = vmatprep.subr.mxu0 0.0
      %1449 = vmatpush1.msra.mxu0 0.0
      %1450 = vmatprep.subr.mxu0 0.0
      %1451 = vmatpush1.msra.mxu0 0.0
      %1452 = vmatprep.subr.mxu0 0.0
      %1453 = vmatpush1.msra.mxu0 0.0
      %1454 = vmatprep.subr.mxu0 0.0
      %1455 = vmatpush1.msra.mxu0 0.0
      %1456 = vmatprep.subr.mxu0 0.0
      %1457 = vmatpush1.msra.mxu0 0.0
      %1458 = vmatprep.subr.mxu0 0.0
      %1459 = vmatpush1.msra.mxu0 0.0
      %1460 = vmatprep.subr.mxu0 0.0
      %1461 = vmatpush1.msra.mxu0 0.0
      %1462 = vmatprep.subr.mxu0 0.0
      %1463 = vmatpush1.msra.mxu0 0.0
      %1464 = vmatprep.subr.mxu0 0.0
      %1465 = vmatpush1.msra.mxu0 0.0
      %1466 = vmatprep.subr.mxu0 0.0
      %1467 = vmatpush1.msra.mxu0 0.0
      %1468 = vmatprep.subr.mxu0 0.0
      %1469 = vmatpush1.msra.mxu0 0.0
      %1470 = vmatprep.subr.mxu0 0.0
      %1471 = vmatpush1.msra.mxu0 0.0
      %1472 = vmatprep.subr.mxu0 0.0
      %1473 = vmatpush1.msra.mxu0 0.0
      %1474 = vmatprep.subr.mxu0 0.0
      %1475 = vmatpush1.msra.mxu0 0.0
      %1476 = vmatprep.subr.mxu0 0.0
      %1477 = vmatpush1.msra.mxu0 0.0
      %1478 = vmatprep.subr.mxu0 0.0
      %1479 = vmatpush1.msra.mxu0 0.0
      %1480 = vmatprep.subr.mxu0 0.0
      %1481 = vmatpush1.msra.mxu0 0.0
      %1482 = vmatprep.subr.mxu0 0.0
      %1483 = vmatpush1.msra.mxu0 0.0
      %1484 = vmatprep.subr.mxu0 0.0
      %1485 = vmatpush1.msra.mxu0 0.0
      %1486 = vmatprep.subr.mxu0 0.0
      %1487 = vmatpush1.msra.mxu0 0.0
      %1488 = vmatprep.subr.mxu0 0.0
      %1489 = vmatpush1.msra.mxu0 0.0
      %1490 = vmatprep.subr.mxu0 0.0
      %1491 = vmatpush1.msra.mxu0 0.0
      %1492 = vmatprep.subr.mxu0 0.0
      %1493 = vmatpush1.msra.mxu0 0.0
      %1494 = vmatprep.subr.mxu0 0.0
      %1495 = vmatpush1.msra.mxu0 0.0
      %1496 = vmatprep.subr.mxu0 0.0
      %1497 = vmatpush1.msra.mxu0 0.0
      %1498 = vmatprep.subr.mxu0 0.0
      %1499 = vmatpush1.msra.mxu0 0.0
      %1500 = vmatprep.subr.mxu0 0.0
      %1501 = vmatpush1.msra.mxu0 0.0
      %1502 = vmatprep.subr.mxu0 0.0
      %1503 = vmatpush1.msra.mxu0 0.0
      %1504 = vmatprep.subr.mxu0 0.0
      %1505 = vmatpush1.msra.mxu0 0.0
      %1506 = vmatprep.mubr.f32.mxu0 0.0
      %1507 = vmatmul.mubr.f32.gmra.mrb[0].mxu0 %v1437
      %v1508 = vpop.f32.mrb[0].mxu0
      %v1509 = vadd.f32 %v1428, %v1508
      %v1510 = vpop.f32.mrb[0].mxu0
      %1511 = vmatprep.mubr.f32.mxu0 0.0
      %1512 = vmatmul.mubr.f32.gmra.mrb[0].mxu0 %v1440
      %v1513 = vpop.f32.mrb[0].mxu0
      %v1514 = vadd.f32 %v1433, %v1513
      %v1515 = vpop.f32.mrb[0].mxu0
      %1516 = vdwg.mxu0
      %v1517 = vxor.u32 %v1509, 2147483648
      %v1518 = vxor.u32 %v1514, 2147483648
      %v1519 = vmul.f32 %v1517, 1.442695
      %v1520 = vpow.pop %v1519
      %v1521 = vmul.f32 %v1518, 1.442695
      %v1522 = vpow.pop %v1521
      %v1523 = vadd.f32 %v1520, 1.0
      %v1524 = vadd.f32 %v1522, 1.0
      %v1525 = vrcp.pop %v1523
      %v1526 = vmul.f32 1.0, %v1525
      %v1527 = vrcp.pop %v1524
      %v1528 = vmul.f32 1.0, %v1527
      %v1529 = vld [vmem:[%s11] sm:$0xff]
      %v1530 = vld [vmem:[%s11 + $0x8] sm:$0xf]
      %v1531 = vld [vmem:[%s12] sm:$0xff]
      %v1532 = vld [vmem:[%s12 + $0x8] sm:$0xf]
      %1534 = vset.pattern.permute.xlu0 0
      %1535 = vperm.xlu0 %1534, %v1531
      %v1536 = vpop.permute.xlu0 %1535
      %1539 = vset.pattern.permute.xlu0 0
      %1540 = vperm.xlu0 %1539, %v1532
      %v1541 = vpop.permute.xlu0 %1540
      %v1544 = vsel %vm1435, %v1529, 0
      %v1547 = vsel %vm1435, %v1530, 0
      %1549 = vmatprep.subr.mxu0 0.0
      %1550 = vmatpush1.msra.mxu0 %v1418
      %1551 = vmatprep.subr.mxu0 0.0
      %1552 = vmatpush1.msra.mxu0 %v1419
      %1553 = vmatprep.subr.mxu0 0.0
      %1554 = vmatpush1.msra.mxu0 %v1420
      %1555 = vmatprep.subr.mxu0 0.0
      %1556 = vmatpush1.msra.mxu0 0.0
      %1557 = vmatprep.subr.mxu0 0.0
      %1558 = vmatpush1.msra.mxu0 0.0
      %1559 = vmatprep.subr.mxu0 0.0
      %1560 = vmatpush1.msra.mxu0 0.0
      %1561 = vmatprep.subr.mxu0 0.0
      %1562 = vmatpush1.msra.mxu0 0.0
      %1563 = vmatprep.subr.mxu0 0.0
      %1564 = vmatpush1.msra.mxu0 0.0
      %1565 = vmatprep.subr.mxu0 0.0
      %1566 = vmatpush1.msra.mxu0 0.0
      %1567 = vmatprep.subr.mxu0 0.0
      %1568 = vmatpush1.msra.mxu0 0.0
      %1569 = vmatprep.subr.mxu0 0.0
      %1570 = vmatpush1.msra.mxu0 0.0
      %1571 = vmatprep.subr.mxu0 0.0
      %1572 = vmatpush1.msra.mxu0 0.0
      %1573 = vmatprep.subr.mxu0 0.0
      %1574 = vmatpush1.msra.mxu0 0.0
      %1575 = vmatprep.subr.mxu0 0.0
      %1576 = vmatpush1.msra.mxu0 0.0
      %1577 = vmatprep.subr.mxu0 0.0
      %1578 = vmatpush1.msra.mxu0 0.0
      %1579 = vmatprep.subr.mxu0 0.0
      %1580 = vmatpush1.msra.mxu0 0.0
      %1581 = vmatprep.subr.mxu0 0.0
      %1582 = vmatpush1.msra.mxu0 0.0
      %1583 = vmatprep.subr.mxu0 0.0
      %1584 = vmatpush1.msra.mxu0 0.0
      %1585 = vmatprep.subr.mxu0 0.0
      %1586 = vmatpush1.msra.mxu0 0.0
      %1587 = vmatprep.subr.mxu0 0.0
      %1588 = vmatpush1.msra.mxu0 0.0
      %1589 = vmatprep.subr.mxu0 0.0
      %1590 = vmatpush1.msra.mxu0 0.0
      %1591 = vmatprep.subr.mxu0 0.0
      %1592 = vmatpush1.msra.mxu0 0.0
      %1593 = vmatprep.subr.mxu0 0.0
      %1594 = vmatpush1.msra.mxu0 0.0
      %1595 = vmatprep.subr.mxu0 0.0
      %1596 = vmatpush1.msra.mxu0 0.0
      %1597 = vmatprep.subr.mxu0 0.0
      %1598 = vmatpush1.msra.mxu0 0.0
      %1599 = vmatprep.subr.mxu0 0.0
      %1600 = vmatpush1.msra.mxu0 0.0
      %1601 = vmatprep.subr.mxu0 0.0
      %1602 = vmatpush1.msra.mxu0 0.0
      %1603 = vmatprep.subr.mxu0 0.0
      %1604 = vmatpush1.msra.mxu0 0.0
      %1605 = vmatprep.subr.mxu0 0.0
      %1606 = vmatpush1.msra.mxu0 0.0
      %1607 = vmatprep.subr.mxu0 0.0
      %1608 = vmatpush1.msra.mxu0 0.0
      %1609 = vmatprep.subr.mxu0 0.0
      %1610 = vmatpush1.msra.mxu0 0.0
      %1611 = vmatprep.subr.mxu0 0.0
      %1612 = vmatpush1.msra.mxu0 0.0
      %1613 = vmatprep.mubr.f32.mxu0 0.0
      %1614 = vmatmul.mubr.f32.gmra.mrb[0].mxu0 %v1544
      %v1615 = vpop.f32.mrb[0].mxu0
      %v1616 = vadd.f32 %v1536, %v1615
      %v1617 = vpop.f32.mrb[0].mxu0
      %1618 = vmatprep.mubr.f32.mxu0 0.0
      %1619 = vmatmul.mubr.f32.gmra.mrb[0].mxu0 %v1547
      %v1620 = vpop.f32.mrb[0].mxu0
      %v1621 = vadd.f32 %v1541, %v1620
      %v1622 = vpop.f32.mrb[0].mxu0
      %1623 = vdwg.mxu0
      %v1624 = vxor.u32 %v1616, 2147483648
      %v1625 = vxor.u32 %v1621, 2147483648
      %v1626 = vmul.f32 %v1624, 1.442695
      %v1627 = vpow.pop %v1626
      %v1628 = vmul.f32 %v1625, 1.442695
      %v1629 = vpow.pop %v1628
      %v1630 = vadd.f32 %v1627, 1.0
      %v1631 = vadd.f32 %v1629, 1.0
      %v1632 = vrcp.pop %v1630
      %v1633 = vmul.f32 1.0, %v1632
      %v1634 = vrcp.pop %v1631
      %v1635 = vmul.f32 1.0, %v1634
      %v1636 = vld [vmem:[%s13] sm:$0xff]
      %v1637 = vld [vmem:[%s13 + $0x8] sm:$0xff]
      %v1638 = vld [vmem:[%s13 + $0x10] sm:$0xff]
      %v1639 = vld [vmem:[%s13 + $0x18] sm:$0xff]
      %v1640 = vld [vmem:[%s13 + $0x20] sm:$0xf]
      %v1642 = vsel %vm1215, %v1636, 0
      %v1645 = vsel %vm1215, %v1637, 0
      %v1648 = vsel %vm1215, %v1638, 0
      %v1651 = vsel %vm1215, %v1639, 0
      %v1654 = vsel %vm1215, %v1640, 0
      %v1657 = vsel %vm711, %v1528, 0
      %1659 = vmatprep.subr.mxu0 0.0
      %1660 = vmatpush1.msra.mxu0 %v1526
      %1661 = vmatprep.subr.mxu0 0.0
      %1662 = vmatpush1.msra.mxu0 %v1657
      %1663 = vmatprep.subr.mxu0 0.0
      %1664 = vmatpush1.msra.mxu0 0.0
      %1665 = vmatprep.subr.mxu0 0.0
      %1666 = vmatpush1.msra.mxu0 0.0
      %1667 = vmatprep.subr.mxu0 0.0
      %1668 = vmatpush1.msra.mxu0 0.0
      %1669 = vmatprep.subr.mxu0 0.0
      %1670 = vmatpush1.msra.mxu0 0.0
      %1671 = vmatprep.subr.mxu0 0.0
      %1672 = vmatpush1.msra.mxu0 0.0
      %1673 = vmatprep.subr.mxu0 0.0
      %1674 = vmatpush1.msra.mxu0 0.0
      %1675 = vmatprep.subr.mxu0 0.0
      %1676 = vmatpush1.msra.mxu0 0.0
      %1677 = vmatprep.subr.mxu0 0.0
      %1678 = vmatpush1.msra.mxu0 0.0
      %1679 = vmatprep.subr.mxu0 0.0
      %1680 = vmatpush1.msra.mxu0 0.0
      %1681 = vmatprep.subr.mxu0 0.0
      %1682 = vmatpush1.msra.mxu0 0.0
      %1683 = vmatprep.subr.mxu0 0.0
      %1684 = vmatpush1.msra.mxu0 0.0
      %1685 = vmatprep.subr.mxu0 0.0
      %1686 = vmatpush1.msra.mxu0 0.0
      %1687 = vmatprep.subr.mxu0 0.0
      %1688 = vmatpush1.msra.mxu0 0.0
      %1689 = vmatprep.subr.mxu0 0.0
      %1690 = vmatpush1.msra.mxu0 0.0
      %1691 = vmatprep.subr.mxu0 0.0
      %1692 = vmatpush1.msra.mxu0 0.0
      %1693 = vmatprep.subr.mxu0 0.0
      %1694 = vmatpush1.msra.mxu0 0.0
      %1695 = vmatprep.subr.mxu0 0.0
      %1696 = vmatpush1.msra.mxu0 0.0
      %1697 = vmatprep.subr.mxu0 0.0
      %1698 = vmatpush1.msra.mxu0 0.0
      %1699 = vmatprep.subr.mxu0 0.0
      %1700 = vmatpush1.msra.mxu0 0.0
      %1701 = vmatprep.subr.mxu0 0.0
      %1702 = vmatpush1.msra.mxu0 0.0
      %1703 = vmatprep.subr.mxu0 0.0
      %1704 = vmatpush1.msra.mxu0 0.0
      %1705 = vmatprep.subr.mxu0 0.0
      %1706 = vmatpush1.msra.mxu0 0.0
      %1707 = vmatprep.subr.mxu0 0.0
      %1708 = vmatpush1.msra.mxu0 0.0
      %1709 = vmatprep.subr.mxu0 0.0
      %1710 = vmatpush1.msra.mxu0 0.0
      %1711 = vmatprep.subr.mxu0 0.0
      %1712 = vmatpush1.msra.mxu0 0.0
      %1713 = vmatprep.subr.mxu0 0.0
      %1714 = vmatpush1.msra.mxu0 0.0
      %1715 = vmatprep.subr.mxu0 0.0
      %1716 = vmatpush1.msra.mxu0 0.0
      %1717 = vmatprep.subr.mxu0 0.0
      %1718 = vmatpush1.msra.mxu0 0.0
      %1719 = vmatprep.subr.mxu0 0.0
      %1720 = vmatpush1.msra.mxu0 0.0
      %1721 = vmatprep.subr.mxu0 0.0
      %1722 = vmatpush1.msra.mxu0 0.0
      %1723 = vmatprep.mubr.f32.mxu0 0.0
      %1724 = vmatmul.mubr.f32.gmra.mrb[0].mxu0 %v1642
      %v1725 = vpop.f32.mrb[0].mxu0
      %v1726 = vadd.f32 0.0, %v1725
      %v1727 = vpop.f32.mrb[0].mxu0
      %1728 = vmatprep.mubr.f32.mxu0 0.0
      %1729 = vmatmul.mubr.f32.gmra.mrb[0].mxu0 %v1645
      %v1730 = vpop.f32.mrb[0].mxu0
      %v1731 = vadd.f32 0.0, %v1730
      %v1732 = vpop.f32.mrb[0].mxu0
      %1733 = vmatprep.mubr.f32.mxu0 0.0
      %1734 = vmatmul.mubr.f32.gmra.mrb[0].mxu0 %v1648
      %v1735 = vpop.f32.mrb[0].mxu0
      %v1736 = vadd.f32 0.0, %v1735
      %v1737 = vpop.f32.mrb[0].mxu0
      %1738 = vmatprep.mubr.f32.mxu0 0.0
      %1739 = vmatmul.mubr.f32.gmra.mrb[0].mxu0 %v1651
      %v1740 = vpop.f32.mrb[0].mxu0
      %v1741 = vadd.f32 0.0, %v1740
      %v1742 = vpop.f32.mrb[0].mxu0
      %1743 = vmatprep.mubr.f32.mxu0 0.0
      %1744 = vmatmul.mubr.f32.gmra.mrb[0].mxu0 %v1654
      %v1745 = vpop.f32.mrb[0].mxu0
      %v1746 = vadd.f32 0.0, %v1745
      %v1747 = vpop.f32.mrb[0].mxu0
      %1748 = vdwg.mxu0
      %v1749 = vld [vmem:[%s15] sm:$0xff]
      %vm1750 = vcmask 64512
      %v1752 = vsel %vm1750, %v1726, 0
      %v1755 = vsel %vm1750, %v1731, 0
      %v1758 = vsel %vm1750, %v1736, 0
      %v1761 = vsel %vm1750, %v1741, 0
      %v1764 = vsel %vm1750, %v1746, 0
      %1766 = vmatprep.subr.mxu0 0.0
      %1767 = vmatpush1.msra.mxu0 %v1749
      %1768 = vmatprep.subr.mxu0 0.0
      %1769 = vmatpush1.msra.mxu0 0.0
      %1770 = vmatprep.subr.mxu0 0.0
      %1771 = vmatpush1.msra.mxu0 0.0
      %1772 = vmatprep.subr.mxu0 0.0
      %1773 = vmatpush1.msra.mxu0 0.0
      %1774 = vmatprep.subr.mxu0 0.0
      %1775 = vmatpush1.msra.mxu0 0.0
      %1776 = vmatprep.subr.mxu0 0.0
      %1777 = vmatpush1.msra.mxu0 0.0
      %1778 = vmatprep.subr.mxu0 0.0
      %1779 = vmatpush1.msra.mxu0 0.0
      %1780 = vmatprep.subr.mxu0 0.0
      %1781 = vmatpush1.msra.mxu0 0.0
      %1782 = vmatprep.subr.mxu0 0.0
      %1783 = vmatpush1.msra.mxu0 0.0
      %1784 = vmatprep.subr.mxu0 0.0
      %1785 = vmatpush1.msra.mxu0 0.0
      %1786 = vmatprep.subr.mxu0 0.0
      %1787 = vmatpush1.msra.mxu0 0.0
      %1788 = vmatprep.subr.mxu0 0.0
      %1789 = vmatpush1.msra.mxu0 0.0
      %1790 = vmatprep.subr.mxu0 0.0
      %1791 = vmatpush1.msra.mxu0 0.0
      %1792 = vmatprep.subr.mxu0 0.0
      %1793 = vmatpush1.msra.mxu0 0.0
      %1794 = vmatprep.subr.mxu0 0.0
      %1795 = vmatpush1.msra.mxu0 0.0
      %1796 = vmatprep.subr.mxu0 0.0
      %1797 = vmatpush1.msra.mxu0 0.0
      %1798 = vmatprep.subr.mxu0 0.0
      %1799 = vmatpush1.msra.mxu0 0.0
      %1800 = vmatprep.subr.mxu0 0.0
      %1801 = vmatpush1.msra.mxu0 0.0
      %1802 = vmatprep.subr.mxu0 0.0
      %1803 = vmatpush1.msra.mxu0 0.0
      %1804 = vmatprep.subr.mxu0 0.0
      %1805 = vmatpush1.msra.mxu0 0.0
      %1806 = vmatprep.subr.mxu0 0.0
      %1807 = vmatpush1.msra.mxu0 0.0
      %1808 = vmatprep.subr.mxu0 0.0
      %1809 = vmatpush1.msra.mxu0 0.0
      %1810 = vmatprep.subr.mxu0 0.0
      %1811 = vmatpush1.msra.mxu0 0.0
      %1812 = vmatprep.subr.mxu0 0.0
      %1813 = vmatpush1.msra.mxu0 0.0
      %1814 = vmatprep.subr.mxu0 0.0
      %1815 = vmatpush1.msra.mxu0 0.0
      %1816 = vmatprep.subr.mxu0 0.0
      %1817 = vmatpush1.msra.mxu0 0.0
      %1818 = vmatprep.subr.mxu0 0.0
      %1819 = vmatpush1.msra.mxu0 0.0
      %1820 = vmatprep.subr.mxu0 0.0
      %1821 = vmatpush1.msra.mxu0 0.0
      %1822 = vmatprep.subr.mxu0 0.0
      %1823 = vmatpush1.msra.mxu0 0.0
      %1824 = vmatprep.subr.mxu0 0.0
      %1825 = vmatpush1.msra.mxu0 0.0
      %1826 = vmatprep.subr.mxu0 0.0
      %1827 = vmatpush1.msra.mxu0 0.0
      %1828 = vmatprep.subr.mxu0 0.0
      %1829 = vmatpush1.msra.mxu0 0.0
      %1830 = vmatprep.mubr.f32.mxu0 0.0
      %1831 = vmatmul.mubr.f32.gmra.mrb[0].mxu0 %v1752
      %v1832 = vpop.f32.mrb[0].mxu0
      %v1833 = vadd.f32 0.0, %v1832
      %v1834 = vpop.f32.mrb[0].mxu0
      %1835 = vmatprep.mubr.f32.mxu0 0.0
      %1836 = vmatmul.mubr.f32.gmra.mrb[0].mxu0 %v1755
      %v1837 = vpop.f32.mrb[0].mxu0
      %v1838 = vadd.f32 0.0, %v1837
      %v1839 = vpop.f32.mrb[0].mxu0
      %1840 = vmatprep.mubr.f32.mxu0 0.0
      %1841 = vmatmul.mubr.f32.gmra.mrb[0].mxu0 %v1758
      %v1842 = vpop.f32.mrb[0].mxu0
      %v1843 = vadd.f32 0.0, %v1842
      %v1844 = vpop.f32.mrb[0].mxu0
      %1845 = vmatprep.mubr.f32.mxu0 0.0
      %1846 = vmatmul.mubr.f32.gmra.mrb[0].mxu0 %v1761
      %v1847 = vpop.f32.mrb[0].mxu0
      %v1848 = vadd.f32 0.0, %v1847
      %v1849 = vpop.f32.mrb[0].mxu0
      %1850 = vmatprep.mubr.f32.mxu0 0.0
      %1851 = vmatmul.mubr.f32.gmra.mrb[0].mxu0 %v1764
      %v1852 = vpop.f32.mrb[0].mxu0
      %v1853 = vadd.f32 0.0, %v1852
      %v1854 = vpop.f32.mrb[0].mxu0
      %1855 = vdwg.mxu0
      %v1856 = vld [vmem:[%s14] sm:$0xff]
      %v1857 = vld [vmem:[%s14 + $0x8] sm:$0xff]
      %v1858 = vld [vmem:[%s14 + $0x10] sm:$0xff]
      %v1859 = vld [vmem:[%s14 + $0x18] sm:$0xff]
      %v1860 = vld [vmem:[%s14 + $0x20] sm:$0xf]
      %v1862 = vsel %vm1215, %v1856, 0
      %v1865 = vsel %vm1215, %v1857, 0
      %v1868 = vsel %vm1215, %v1858, 0
      %v1871 = vsel %vm1215, %v1859, 0
      %v1874 = vsel %vm1215, %v1860, 0
      %v1877 = vsel %vm711, %v1635, 0
      %1879 = vmatprep.subr.mxu0 0.0
      %1880 = vmatpush1.msra.mxu0 %v1633
      %1881 = vmatprep.subr.mxu0 0.0
      %1882 = vmatpush1.msra.mxu0 %v1877
      %1883 = vmatprep.subr.mxu0 0.0
      %1884 = vmatpush1.msra.mxu0 0.0
      %1885 = vmatprep.subr.mxu0 0.0
      %1886 = vmatpush1.msra.mxu0 0.0
      %1887 = vmatprep.subr.mxu0 0.0
      %1888 = vmatpush1.msra.mxu0 0.0
      %1889 = vmatprep.subr.mxu0 0.0
      %1890 = vmatpush1.msra.mxu0 0.0
      %1891 = vmatprep.subr.mxu0 0.0
      %1892 = vmatpush1.msra.mxu0 0.0
      %1893 = vmatprep.subr.mxu0 0.0
      %1894 = vmatpush1.msra.mxu0 0.0
      %1895 = vmatprep.subr.mxu0 0.0
      %1896 = vmatpush1.msra.mxu0 0.0
      %1897 = vmatprep.subr.mxu0 0.0
      %1898 = vmatpush1.msra.mxu0 0.0
      %1899 = vmatprep.subr.mxu0 0.0
      %1900 = vmatpush1.msra.mxu0 0.0
      %1901 = vmatprep.subr.mxu0 0.0
      %1902 = vmatpush1.msra.mxu0 0.0
      %1903 = vmatprep.subr.mxu0 0.0
      %1904 = vmatpush1.msra.mxu0 0.0
      %1905 = vmatprep.subr.mxu0 0.0
      %1906 = vmatpush1.msra.mxu0 0.0
      %1907 = vmatprep.subr.mxu0 0.0
      %1908 = vmatpush1.msra.mxu0 0.0
      %1909 = vmatprep.subr.mxu0 0.0
      %1910 = vmatpush1.msra.mxu0 0.0
      %1911 = vmatprep.subr.mxu0 0.0
      %1912 = vmatpush1.msra.mxu0 0.0
      %1913 = vmatprep.subr.mxu0 0.0
      %1914 = vmatpush1.msra.mxu0 0.0
      %1915 = vmatprep.subr.mxu0 0.0
      %1916 = vmatpush1.msra.mxu0 0.0
      %1917 = vmatprep.subr.mxu0 0.0
      %1918 = vmatpush1.msra.mxu0 0.0
      %1919 = vmatprep.subr.mxu0 0.0
      %1920 = vmatpush1.msra.mxu0 0.0
      %1921 = vmatprep.subr.mxu0 0.0
      %1922 = vmatpush1.msra.mxu0 0.0
      %1923 = vmatprep.subr.mxu0 0.0
      %1924 = vmatpush1.msra.mxu0 0.0
      %1925 = vmatprep.subr.mxu0 0.0
      %1926 = vmatpush1.msra.mxu0 0.0
      %1927 = vmatprep.subr.mxu0 0.0
      %1928 = vmatpush1.msra.mxu0 0.0
      %1929 = vmatprep.subr.mxu0 0.0
      %1930 = vmatpush1.msra.mxu0 0.0
      %1931 = vmatprep.subr.mxu0 0.0
      %1932 = vmatpush1.msra.mxu0 0.0
      %1933 = vmatprep.subr.mxu0 0.0
      %1934 = vmatpush1.msra.mxu0 0.0
      %1935 = vmatprep.subr.mxu0 0.0
      %1936 = vmatpush1.msra.mxu0 0.0
      %1937 = vmatprep.subr.mxu0 0.0
      %1938 = vmatpush1.msra.mxu0 0.0
      %1939 = vmatprep.subr.mxu0 0.0
      %1940 = vmatpush1.msra.mxu0 0.0
      %1941 = vmatprep.subr.mxu0 0.0
      %1942 = vmatpush1.msra.mxu0 0.0
      %1943 = vmatprep.mubr.f32.mxu0 0.0
      %1944 = vmatmul.mubr.f32.gmra.mrb[0].mxu0 %v1862
      %v1945 = vpop.f32.mrb[0].mxu0
      %v1946 = vadd.f32 0.0, %v1945
      %v1947 = vpop.f32.mrb[0].mxu0
      %1948 = vmatprep.mubr.f32.mxu0 0.0
      %1949 = vmatmul.mubr.f32.gmra.mrb[0].mxu0 %v1865
      %v1950 = vpop.f32.mrb[0].mxu0
      %v1951 = vadd.f32 0.0, %v1950
      %v1952 = vpop.f32.mrb[0].mxu0
      %1953 = vmatprep.mubr.f32.mxu0 0.0
      %1954 = vmatmul.mubr.f32.gmra.mrb[0].mxu0 %v1868
      %v1955 = vpop.f32.mrb[0].mxu0
      %v1956 = vadd.f32 0.0, %v1955
      %v1957 = vpop.f32.mrb[0].mxu0
      %1958 = vmatprep.mubr.f32.mxu0 0.0
      %1959 = vmatmul.mubr.f32.gmra.mrb[0].mxu0 %v1871
      %v1960 = vpop.f32.mrb[0].mxu0
      %v1961 = vadd.f32 0.0, %v1960
      %v1962 = vpop.f32.mrb[0].mxu0
      %1963 = vmatprep.mubr.f32.mxu0 0.0
      %1964 = vmatmul.mubr.f32.gmra.mrb[0].mxu0 %v1874
      %v1965 = vpop.f32.mrb[0].mxu0
      %v1966 = vadd.f32 0.0, %v1965
      %v1967 = vpop.f32.mrb[0].mxu0
      %1968 = vdwg.mxu0
      %v1969 = vld [vmem:[%s16] sm:$0xff]
      %v1971 = vsel %vm1750, %v1946, 0
      %v1974 = vsel %vm1750, %v1951, 0
      %v1977 = vsel %vm1750, %v1956, 0
      %v1980 = vsel %vm1750, %v1961, 0
      %v1983 = vsel %vm1750, %v1966, 0
      %1985 = vmatprep.subr.mxu0 0.0
      %1986 = vmatpush1.msra.mxu0 %v1969
      %1987 = vmatprep.subr.mxu0 0.0
      %1988 = vmatpush1.msra.mxu0 0.0
      %1989 = vmatprep.subr.mxu0 0.0
      %1990 = vmatpush1.msra.mxu0 0.0
      %1991 = vmatprep.subr.mxu0 0.0
      %1992 = vmatpush1.msra.mxu0 0.0
      %1993 = vmatprep.subr.mxu0 0.0
      %1994 = vmatpush1.msra.mxu0 0.0
      %1995 = vmatprep.subr.mxu0 0.0
      %1996 = vmatpush1.msra.mxu0 0.0
      %1997 = vmatprep.subr.mxu0 0.0
      %1998 = vmatpush1.msra.mxu0 0.0
      %1999 = vmatprep.subr.mxu0 0.0
      %2000 = vmatpush1.msra.mxu0 0.0
      %2001 = vmatprep.subr.mxu0 0.0
      %2002 = vmatpush1.msra.mxu0 0.0
      %2003 = vmatprep.subr.mxu0 0.0
      %2004 = vmatpush1.msra.mxu0 0.0
      %2005 = vmatprep.subr.mxu0 0.0
      %2006 = vmatpush1.msra.mxu0 0.0
      %2007 = vmatprep.subr.mxu0 0.0
      %2008 = vmatpush1.msra.mxu0 0.0
      %2009 = vmatprep.subr.mxu0 0.0
      %2010 = vmatpush1.msra.mxu0 0.0
      %2011 = vmatprep.subr.mxu0 0.0
      %2012 = vmatpush1.msra.mxu0 0.0
      %2013 = vmatprep.subr.mxu0 0.0
      %2014 = vmatpush1.msra.mxu0 0.0
      %2015 = vmatprep.subr.mxu0 0.0
      %2016 = vmatpush1.msra.mxu0 0.0
      %2017 = vmatprep.subr.mxu0 0.0
      %2018 = vmatpush1.msra.mxu0 0.0
      %2019 = vmatprep.subr.mxu0 0.0
      %2020 = vmatpush1.msra.mxu0 0.0
      %2021 = vmatprep.subr.mxu0 0.0
      %2022 = vmatpush1.msra.mxu0 0.0
      %2023 = vmatprep.subr.mxu0 0.0
      %2024 = vmatpush1.msra.mxu0 0.0
      %2025 = vmatprep.subr.mxu0 0.0
      %2026 = vmatpush1.msra.mxu0 0.0
      %2027 = vmatprep.subr.mxu0 0.0
      %2028 = vmatpush1.msra.mxu0 0.0
      %2029 = vmatprep.subr.mxu0 0.0
      %2030 = vmatpush1.msra.mxu0 0.0
      %2031 = vmatprep.subr.mxu0 0.0
      %2032 = vmatpush1.msra.mxu0 0.0
      %2033 = vmatprep.subr.mxu0 0.0
      %2034 = vmatpush1.msra.mxu0 0.0
      %2035 = vmatprep.subr.mxu0 0.0
      %2036 = vmatpush1.msra.mxu0 0.0
      %2037 = vmatprep.subr.mxu0 0.0
      %2038 = vmatpush1.msra.mxu0 0.0
      %2039 = vmatprep.subr.mxu0 0.0
      %2040 = vmatpush1.msra.mxu0 0.0
      %2041 = vmatprep.subr.mxu0 0.0
      %2042 = vmatpush1.msra.mxu0 0.0
      %2043 = vmatprep.subr.mxu0 0.0
      %2044 = vmatpush1.msra.mxu0 0.0
      %2045 = vmatprep.subr.mxu0 0.0
      %2046 = vmatpush1.msra.mxu0 0.0
      %2047 = vmatprep.subr.mxu0 0.0
      %2048 = vmatpush1.msra.mxu0 0.0
      %2049 = vmatprep.mubr.f32.mxu0 0.0
      %2050 = vmatmul.mubr.f32.gmra.mrb[0].mxu0 %v1971
      %v2051 = vpop.f32.mrb[0].mxu0
      %v2052 = vadd.f32 0.0, %v2051
      %v2053 = vpop.f32.mrb[0].mxu0
      %2054 = vmatprep.mubr.f32.mxu0 0.0
      %2055 = vmatmul.mubr.f32.gmra.mrb[0].mxu0 %v1974
      %v2056 = vpop.f32.mrb[0].mxu0
      %v2057 = vadd.f32 0.0, %v2056
      %v2058 = vpop.f32.mrb[0].mxu0
      %2059 = vmatprep.mubr.f32.mxu0 0.0
      %2060 = vmatmul.mubr.f32.gmra.mrb[0].mxu0 %v1977
      %v2061 = vpop.f32.mrb[0].mxu0
      %v2062 = vadd.f32 0.0, %v2061
      %v2063 = vpop.f32.mrb[0].mxu0
      %2064 = vmatprep.mubr.f32.mxu0 0.0
      %2065 = vmatmul.mubr.f32.gmra.mrb[0].mxu0 %v1980
      %v2066 = vpop.f32.mrb[0].mxu0
      %v2067 = vadd.f32 0.0, %v2066
      %v2068 = vpop.f32.mrb[0].mxu0
      %2069 = vmatprep.mubr.f32.mxu0 0.0
      %2070 = vmatmul.mubr.f32.gmra.mrb[0].mxu0 %v1983
      %v2071 = vpop.f32.mrb[0].mxu0
      %v2072 = vadd.f32 0.0, %v2071
      %v2073 = vpop.f32.mrb[0].mxu0
      %2074 = vdwg.mxu0
      %v2075 = vmul.f32 %v1833, %v2052
      %v2076 = vmul.f32 %v1838, %v2057
      %v2077 = vmul.f32 %v1843, %v2062
      %v2078 = vmul.f32 %v1848, %v2067
      %v2079 = vmul.f32 %v1853, %v2072
      %v2080 = vmul.f32 %v805, %v2075
      %v2081 = vmul.f32 %v806, %v2076
      %v2082 = vmul.f32 %v807, %v2077
      %v2083 = vmul.f32 %v808, %v2078
      %v2084 = vmul.f32 %v809, %v2079
      %v2085 = vld [vmem:[%s17] sm:$0xff]
      %v2086 = vld [vmem:[%s18] sm:$0xff]
      %2088 = vset.pattern.permute.xlu0 0
      %2089 = vperm.xlu0 %2088, %v2086
      %v2090 = vpop.permute.xlu0 %2089
      %v2093 = vsel %vm695, %v2085, 0
      %v2096 = vsel %vm711, %v2084, 0
      %2098 = vmatprep.subr.mxu0 0.0
      %2099 = vmatpush1.msra.mxu0 %v2080
      %2100 = vmatprep.subr.mxu0 0.0
      %2101 = vmatpush1.msra.mxu0 %v2081
      %2102 = vmatprep.subr.mxu0 0.0
      %2103 = vmatpush1.msra.mxu0 %v2082
      %2104 = vmatprep.subr.mxu0 0.0
      %2105 = vmatpush1.msra.mxu0 %v2083
      %2106 = vmatprep.subr.mxu0 0.0
      %2107 = vmatpush1.msra.mxu0 %v2096
      %2108 = vmatprep.subr.mxu0 0.0
      %2109 = vmatpush1.msra.mxu0 0.0
      %2110 = vmatprep.subr.mxu0 0.0
      %2111 = vmatpush1.msra.mxu0 0.0
      %2112 = vmatprep.subr.mxu0 0.0
      %2113 = vmatpush1.msra.mxu0 0.0
      %2114 = vmatprep.subr.mxu0 0.0
      %2115 = vmatpush1.msra.mxu0 0.0
      %2116 = vmatprep.subr.mxu0 0.0
      %2117 = vmatpush1.msra.mxu0 0.0
      %2118 = vmatprep.subr.mxu0 0.0
      %2119 = vmatpush1.msra.mxu0 0.0
      %2120 = vmatprep.subr.mxu0 0.0
      %2121 = vmatpush1.msra.mxu0 0.0
      %2122 = vmatprep.subr.mxu0 0.0
      %2123 = vmatpush1.msra.mxu0 0.0
      %2124 = vmatprep.subr.mxu0 0.0
      %2125 = vmatpush1.msra.mxu0 0.0
      %2126 = vmatprep.subr.mxu0 0.0
      %2127 = vmatpush1.msra.mxu0 0.0
      %2128 = vmatprep.subr.mxu0 0.0
      %2129 = vmatpush1.msra.mxu0 0.0
      %2130 = vmatprep.subr.mxu0 0.0
      %2131 = vmatpush1.msra.mxu0 0.0
      %2132 = vmatprep.subr.mxu0 0.0
      %2133 = vmatpush1.msra.mxu0 0.0
      %2134 = vmatprep.subr.mxu0 0.0
      %2135 = vmatpush1.msra.mxu0 0.0
      %2136 = vmatprep.subr.mxu0 0.0
      %2137 = vmatpush1.msra.mxu0 0.0
      %2138 = vmatprep.subr.mxu0 0.0
      %2139 = vmatpush1.msra.mxu0 0.0
      %2140 = vmatprep.subr.mxu0 0.0
      %2141 = vmatpush1.msra.mxu0 0.0
      %2142 = vmatprep.subr.mxu0 0.0
      %2143 = vmatpush1.msra.mxu0 0.0
      %2144 = vmatprep.subr.mxu0 0.0
      %2145 = vmatpush1.msra.mxu0 0.0
      %2146 = vmatprep.subr.mxu0 0.0
      %2147 = vmatpush1.msra.mxu0 0.0
      %2148 = vmatprep.subr.mxu0 0.0
      %2149 = vmatpush1.msra.mxu0 0.0
      %2150 = vmatprep.subr.mxu0 0.0
      %2151 = vmatpush1.msra.mxu0 0.0
      %2152 = vmatprep.subr.mxu0 0.0
      %2153 = vmatpush1.msra.mxu0 0.0
      %2154 = vmatprep.subr.mxu0 0.0
      %2155 = vmatpush1.msra.mxu0 0.0
      %2156 = vmatprep.subr.mxu0 0.0
      %2157 = vmatpush1.msra.mxu0 0.0
      %2158 = vmatprep.subr.mxu0 0.0
      %2159 = vmatpush1.msra.mxu0 0.0
      %2160 = vmatprep.subr.mxu0 0.0
      %2161 = vmatpush1.msra.mxu0 0.0
      %2162 = vmatprep.mubr.f32.mxu0 0.0
      %2163 = vmatmul.mubr.f32.gmra.mrb[0].mxu0 %v2093
      %v2164 = vpop.f32.mrb[0].mxu0
      %v2165 = vadd.f32 %v2090, %v2164
      %v2166 = vpop.f32.mrb[0].mxu0
      %2167 = vdwg.mxu0
      %v2168 = vsel %vm818, %v2165, -inf
      %v2169 = vrot.slane %v2168, 4
      %v2170 = vmax.f32 %v2168, %v2169
      %v2171 = vrot.slane %v2170, 2
      %v2172 = vmax.f32 %v2170, %v2171
      %v2173 = vrot.slane %v2172, 1
      %v2174 = vmax.f32 %v2172, %v2173
      %v2175 = vsel %vm818, %v2165, 0.0
      %v2176 = vrot.slane %v2175, 4
      %v2177 = vadd.f32 %v2175, %v2176
      %v2178 = vrot.slane %v2177, 2
      %v2179 = vadd.f32 %v2177, %v2178
      %v2180 = vrot.slane %v2179, 1
      %v2181 = vadd.f32 %v2179, %v2180
      %v2182 = vrcp.pop 8.0
      %v2183 = vmul.f32 %v2181, %v2182
      %v2184 = vmul.f32 %v1749, %v2174
      %v2186 = vsel %vm818, %v2184, 0
      %2188 = vmatprep.subr.mxu0 0.0
      %2189 = vmatpush1.msra.mxu0 %v924
      %2190 = vmatprep.subr.mxu0 0.0
      %2191 = vmatpush1.msra.mxu0 %v925
      %2192 = vmatprep.subr.mxu0 0.0
      %2193 = vmatpush1.msra.mxu0 %v926
      %2194 = vmatprep.subr.mxu0 0.0
      %2195 = vmatpush1.msra.mxu0 %v927
      %2196 = vmatprep.subr.mxu0 0.0
      %2197 = vmatpush1.msra.mxu0 %v928
      %2198 = vmatprep.subr.mxu0 0.0
      %2199 = vmatpush1.msra.mxu0 %v929
      %2200 = vmatprep.subr.mxu0 0.0
      %2201 = vmatpush1.msra.mxu0 %v930
      %2202 = vmatprep.subr.mxu0 0.0
      %2203 = vmatpush1.msra.mxu0 %v931
      %2204 = vmatprep.subr.mxu0 0.0
      %2205 = vmatpush1.msra.mxu0 0.0
      %2206 = vmatprep.subr.mxu0 0.0
      %2207 = vmatpush1.msra.mxu0 0.0
      %2208 = vmatprep.subr.mxu0 0.0
      %2209 = vmatpush1.msra.mxu0 0.0
      %2210 = vmatprep.subr.mxu0 0.0
      %2211 = vmatpush1.msra.mxu0 0.0
      %2212 = vmatprep.subr.mxu0 0.0
      %2213 = vmatpush1.msra.mxu0 0.0
      %2214 = vmatprep.subr.mxu0 0.0
      %2215 = vmatpush1.msra.mxu0 0.0
      %2216 = vmatprep.subr.mxu0 0.0
      %2217 = vmatpush1.msra.mxu0 0.0
      %2218 = vmatprep.subr.mxu0 0.0
      %2219 = vmatpush1.msra.mxu0 0.0
      %2220 = vmatprep.subr.mxu0 0.0
      %2221 = vmatpush1.msra.mxu0 0.0
      %2222 = vmatprep.subr.mxu0 0.0
      %2223 = vmatpush1.msra.mxu0 0.0
      %2224 = vmatprep.subr.mxu0 0.0
      %2225 = vmatpush1.msra.mxu0 0.0
      %2226 = vmatprep.subr.mxu0 0.0
      %2227 = vmatpush1.msra.mxu0 0.0
      %2228 = vmatprep.subr.mxu0 0.0
      %2229 = vmatpush1.msra.mxu0 0.0
      %2230 = vmatprep.subr.mxu0 0.0
      %2231 = vmatpush1.msra.mxu0 0.0
      %2232 = vmatprep.subr.mxu0 0.0
      %2233 = vmatpush1.msra.mxu0 0.0
      %2234 = vmatprep.subr.mxu0 0.0
      %2235 = vmatpush1.msra.mxu0 0.0
      %2236 = vmatprep.subr.mxu0 0.0
      %2237 = vmatpush1.msra.mxu0 0.0
      %2238 = vmatprep.subr.mxu0 0.0
      %2239 = vmatpush1.msra.mxu0 0.0
      %2240 = vmatprep.subr.mxu0 0.0
      %2241 = vmatpush1.msra.mxu0 0.0
      %2242 = vmatprep.subr.mxu0 0.0
      %2243 = vmatpush1.msra.mxu0 0.0
      %2244 = vmatprep.subr.mxu0 0.0
      %2245 = vmatpush1.msra.mxu0 0.0
      %2246 = vmatprep.subr.mxu0 0.0
      %2247 = vmatpush1.msra.mxu0 0.0
      %2248 = vmatprep.subr.mxu0 0.0
      %2249 = vmatpush1.msra.mxu0 0.0
      %2250 = vmatprep.subr.mxu0 0.0
      %2251 = vmatpush1.msra.mxu0 0.0
      %2252 = vmatprep.mubr.f32.mxu0 0.0
      %2253 = vmatmul.mubr.f32.gmra.mrb[0].mxu0 %v2186
      %v2254 = vpop.f32.mrb[0].mxu0
      %v2255 = vadd.f32 0.0, %v2254
      %v2256 = vpop.f32.mrb[0].mxu0
      %2257 = vdwg.mxu0
      %v2258 = vmul.f32 %v1749, %v2183
      %v2260 = vsel %vm818, %v2258, 0
      %2262 = vmatprep.subr.mxu0 0.0
      %2263 = vmatpush1.msra.mxu0 %v924
      %2264 = vmatprep.subr.mxu0 0.0
      %2265 = vmatpush1.msra.mxu0 %v925
      %2266 = vmatprep.subr.mxu0 0.0
      %2267 = vmatpush1.msra.mxu0 %v926
      %2268 = vmatprep.subr.mxu0 0.0
      %2269 = vmatpush1.msra.mxu0 %v927
      %2270 = vmatprep.subr.mxu0 0.0
      %2271 = vmatpush1.msra.mxu0 %v928
      %2272 = vmatprep.subr.mxu0 0.0
      %2273 = vmatpush1.msra.mxu0 %v929
      %2274 = vmatprep.subr.mxu0 0.0
      %2275 = vmatpush1.msra.mxu0 %v930
      %2276 = vmatprep.subr.mxu0 0.0
      %2277 = vmatpush1.msra.mxu0 %v931
      %2278 = vmatprep.subr.mxu0 0.0
      %2279 = vmatpush1.msra.mxu0 0.0
      %2280 = vmatprep.subr.mxu0 0.0
      %2281 = vmatpush1.msra.mxu0 0.0
      %2282 = vmatprep.subr.mxu0 0.0
      %2283 = vmatpush1.msra.mxu0 0.0
      %2284 = vmatprep.subr.mxu0 0.0
      %2285 = vmatpush1.msra.mxu0 0.0
      %2286 = vmatprep.subr.mxu0 0.0
      %2287 = vmatpush1.msra.mxu0 0.0
      %2288 = vmatprep.subr.mxu0 0.0
      %2289 = vmatpush1.msra.mxu0 0.0
      %2290 = vmatprep.subr.mxu0 0.0
      %2291 = vmatpush1.msra.mxu0 0.0
      %2292 = vmatprep.subr.mxu0 0.0
      %2293 = vmatpush1.msra.mxu0 0.0
      %2294 = vmatprep.subr.mxu0 0.0
      %2295 = vmatpush1.msra.mxu0 0.0
      %2296 = vmatprep.subr.mxu0 0.0
      %2297 = vmatpush1.msra.mxu0 0.0
      %2298 = vmatprep.subr.mxu0 0.0
      %2299 = vmatpush1.msra.mxu0 0.0
      %2300 = vmatprep.subr.mxu0 0.0
      %2301 = vmatpush1.msra.mxu0 0.0
      %2302 = vmatprep.subr.mxu0 0.0
      %2303 = vmatpush1.msra.mxu0 0.0
      %2304 = vmatprep.subr.mxu0 0.0
      %2305 = vmatpush1.msra.mxu0 0.0
      %2306 = vmatprep.subr.mxu0 0.0
      %2307 = vmatpush1.msra.mxu0 0.0
      %2308 = vmatprep.subr.mxu0 0.0
      %2309 = vmatpush1.msra.mxu0 0.0
      %2310 = vmatprep.subr.mxu0 0.0
      %2311 = vmatpush1.msra.mxu0 0.0
      %2312 = vmatprep.subr.mxu0 0.0
      %2313 = vmatpush1.msra.mxu0 0.0
      %2314 = vmatprep.subr.mxu0 0.0
      %2315 = vmatpush1.msra.mxu0 0.0
      %2316 = vmatprep.subr.mxu0 0.0
      %2317 = vmatpush1.msra.mxu0 0.0
      %2318 = vmatprep.subr.mxu0 0.0
      %2319 = vmatpush1.msra.mxu0 0.0
      %2320 = vmatprep.subr.mxu0 0.0
      %2321 = vmatpush1.msra.mxu0 0.0
      %2322 = vmatprep.subr.mxu0 0.0
      %2323 = vmatpush1.msra.mxu0 0.0
      %2324 = vmatprep.subr.mxu0 0.0
      %2325 = vmatpush1.msra.mxu0 0.0
      %2326 = vmatprep.mubr.f32.mxu0 0.0
      %2327 = vmatmul.mubr.f32.gmra.mrb[0].mxu0 %v2260
      %v2328 = vpop.f32.mrb[0].mxu0
      %v2329 = vadd.f32 0.0, %v2328
      %v2330 = vpop.f32.mrb[0].mxu0
      %2331 = vdwg.mxu0
      %v2332 = vld [vmem:[%s19] sm:$0xff]
      %v2334 = vsel %vm1750, %v2332, 0
      %2336 = vmatprep.subr.mxu0 0.0
      %2337 = vmatpush1.msra.mxu0 %v2255
      %2338 = vmatprep.subr.mxu0 0.0
      %2339 = vmatpush1.msra.mxu0 0.0
      %2340 = vmatprep.subr.mxu0 0.0
      %2341 = vmatpush1.msra.mxu0 0.0
      %2342 = vmatprep.subr.mxu0 0.0
      %2343 = vmatpush1.msra.mxu0 0.0
      %2344 = vmatprep.subr.mxu0 0.0
      %2345 = vmatpush1.msra.mxu0 0.0
      %2346 = vmatprep.subr.mxu0 0.0
      %2347 = vmatpush1.msra.mxu0 0.0
      %2348 = vmatprep.subr.mxu0 0.0
      %2349 = vmatpush1.msra.mxu0 0.0
      %2350 = vmatprep.subr.mxu0 0.0
      %2351 = vmatpush1.msra.mxu0 0.0
      %2352 = vmatprep.subr.mxu0 0.0
      %2353 = vmatpush1.msra.mxu0 0.0
      %2354 = vmatprep.subr.mxu0 0.0
      %2355 = vmatpush1.msra.mxu0 0.0
      %2356 = vmatprep.subr.mxu0 0.0
      %2357 = vmatpush1.msra.mxu0 0.0
      %2358 = vmatprep.subr.mxu0 0.0
      %2359 = vmatpush1.msra.mxu0 0.0
      %2360 = vmatprep.subr.mxu0 0.0
      %2361 = vmatpush1.msra.mxu0 0.0
      %2362 = vmatprep.subr.mxu0 0.0
      %2363 = vmatpush1.msra.mxu0 0.0
      %2364 = vmatprep.subr.mxu0 0.0
      %2365 = vmatpush1.msra.mxu0 0.0
      %2366 = vmatprep.subr.mxu0 0.0
      %2367 = vmatpush1.msra.mxu0 0.0
      %2368 = vmatprep.subr.mxu0 0.0
      %2369 = vmatpush1.msra.mxu0 0.0
      %2370 = vmatprep.subr.mxu0 0.0
      %2371 = vmatpush1.msra.mxu0 0.0
      %2372 = vmatprep.subr.mxu0 0.0
      %2373 = vmatpush1.msra.mxu0 0.0
      %2374 = vmatprep.subr.mxu0 0.0
      %2375 = vmatpush1.msra.mxu0 0.0
      %2376 = vmatprep.subr.mxu0 0.0
      %2377 = vmatpush1.msra.mxu0 0.0
      %2378 = vmatprep.subr.mxu0 0.0
      %2379 = vmatpush1.msra.mxu0 0.0
      %2380 = vmatprep.subr.mxu0 0.0
      %2381 = vmatpush1.msra.mxu0 0.0
      %2382 = vmatprep.subr.mxu0 0.0
      %2383 = vmatpush1.msra.mxu0 0.0
      %2384 = vmatprep.subr.mxu0 0.0
      %2385 = vmatpush1.msra.mxu0 0.0
      %2386 = vmatprep.subr.mxu0 0.0
      %2387 = vmatpush1.msra.mxu0 0.0
      %2388 = vmatprep.subr.mxu0 0.0
      %2389 = vmatpush1.msra.mxu0 0.0
      %2390 = vmatprep.subr.mxu0 0.0
      %2391 = vmatpush1.msra.mxu0 0.0
      %2392 = vmatprep.subr.mxu0 0.0
      %2393 = vmatpush1.msra.mxu0 0.0
      %2394 = vmatprep.subr.mxu0 0.0
      %2395 = vmatpush1.msra.mxu0 0.0
      %2396 = vmatprep.subr.mxu0 0.0
      %2397 = vmatpush1.msra.mxu0 0.0
      %2398 = vmatprep.subr.mxu0 0.0
      %2399 = vmatpush1.msra.mxu0 0.0
      %2400 = vmatprep.mubr.f32.mxu0 0.0
      %2401 = vmatmul.mubr.f32.gmra.mrb[0].mxu0 %v2334
      %v2402 = vpop.f32.mrb[0].mxu0
      %v2403 = vadd.f32 0.0, %v2402
      %v2404 = vpop.f32.mrb[0].mxu0
      %2405 = vdwg.mxu0
      %v2406 = vld [vmem:[%s20] sm:$0xff]
      %2407 = vmatprep.subr.mxu0 0.0
      %2408 = vmatpush1.msra.mxu0 %v2329
      %2409 = vmatprep.subr.mxu0 0.0
      %2410 = vmatpush1.msra.mxu0 0.0
      %2411 = vmatprep.subr.mxu0 0.0
      %2412 = vmatpush1.msra.mxu0 0.0
      %2413 = vmatprep.subr.mxu0 0.0
      %2414 = vmatpush1.msra.mxu0 0.0
      %2415 = vmatprep.subr.mxu0 0.0
      %2416 = vmatpush1.msra.mxu0 0.0
      %2417 = vmatprep.subr.mxu0 0.0
      %2418 = vmatpush1.msra.mxu0 0.0
      %2419 = vmatprep.subr.mxu0 0.0
      %2420 = vmatpush1.msra.mxu0 0.0
      %2421 = vmatprep.subr.mxu0 0.0
      %2422 = vmatpush1.msra.mxu0 0.0
      %2423 = vmatprep.subr.mxu0 0.0
      %2424 = vmatpush1.msra.mxu0 0.0
      %2425 = vmatprep.subr.mxu0 0.0
      %2426 = vmatpush1.msra.mxu0 0.0
      %2427 = vmatprep.subr.mxu0 0.0
      %2428 = vmatpush1.msra.mxu0 0.0
      %2429 = vmatprep.subr.mxu0 0.0
      %2430 = vmatpush1.msra.mxu0 0.0
      %2431 = vmatprep.subr.mxu0 0.0
      %2432 = vmatpush1.msra.mxu0 0.0
      %2433 = vmatprep.subr.mxu0 0.0
      %2434 = vmatpush1.msra.mxu0 0.0
      %2435 = vmatprep.subr.mxu0 0.0
      %2436 = vmatpush1.msra.mxu0 0.0
      %2437 = vmatprep.subr.mxu0 0.0
      %2438 = vmatpush1.msra.mxu0 0.0
      %2439 = vmatprep.subr.mxu0 0.0
      %2440 = vmatpush1.msra.mxu0 0.0
      %2441 = vmatprep.subr.mxu0 0.0
      %2442 = vmatpush1.msra.mxu0 0.0
      %2443 = vmatprep.subr.mxu0 0.0
      %2444 = vmatpush1.msra.mxu0 0.0
      %2445 = vmatprep.subr.mxu0 0.0
      %2446 = vmatpush1.msra.mxu0 0.0
      %2447 = vmatprep.subr.mxu0 0.0
      %2448 = vmatpush1.msra.mxu0 0.0
      %2449 = vmatprep.subr.mxu0 0.0
      %2450 = vmatpush1.msra.mxu0 0.0
      %2451 = vmatprep.subr.mxu0 0.0
      %2452 = vmatpush1.msra.mxu0 0.0
      %2453 = vmatprep.subr.mxu0 0.0
      %2454 = vmatpush1.msra.mxu0 0.0
      %2455 = vmatprep.subr.mxu0 0.0
      %2456 = vmatpush1.msra.mxu0 0.0
      %2457 = vmatprep.subr.mxu0 0.0
      %2458 = vmatpush1.msra.mxu0 0.0
      %2459 = vmatprep.subr.mxu0 0.0
      %2460 = vmatpush1.msra.mxu0 0.0
      %2461 = vmatprep.subr.mxu0 0.0
      %2462 = vmatpush1.msra.mxu0 0.0
      %2463 = vmatprep.subr.mxu0 0.0
      %2464 = vmatpush1.msra.mxu0 0.0
      %2465 = vmatprep.subr.mxu0 0.0
      %2466 = vmatpush1.msra.mxu0 0.0
      %2467 = vmatprep.subr.mxu0 0.0
      %2468 = vmatpush1.msra.mxu0 0.0
      %2469 = vmatprep.subr.mxu0 0.0
      %2470 = vmatpush1.msra.mxu0 0.0
      %2471 = vmatprep.mubr.f32.mxu0 0.0
      %2472 = vmatmul.mubr.f32.gmra.mrb[0].mxu0 %v2334
      %v2473 = vpop.f32.mrb[0].mxu0
      %v2474 = vadd.f32 0.0, %v2473
      %v2475 = vpop.f32.mrb[0].mxu0
      %2476 = vdwg.mxu0
      %s2477 = scalar_lea.vmem %s20, 24
      %v2478 = vld [vmem:[%s2477] sm:$0xff]
      %v2480 = vsel %vm1750, %v2474, 0
      %2482 = vmatprep.subr.mxu0 0.0
      %2483 = vmatpush1.msra.mxu0 %v2478
      %2484 = vmatprep.subr.mxu0 0.0
      %2485 = vmatpush1.msra.mxu0 0.0
      %2486 = vmatprep.subr.mxu0 0.0
      %2487 = vmatpush1.msra.mxu0 0.0
      %2488 = vmatprep.subr.mxu0 0.0
      %2489 = vmatpush1.msra.mxu0 0.0
      %2490 = vmatprep.subr.mxu0 0.0
      %2491 = vmatpush1.msra.mxu0 0.0
      %2492 = vmatprep.subr.mxu0 0.0
      %2493 = vmatpush1.msra.mxu0 0.0
      %2494 = vmatprep.subr.mxu0 0.0
      %2495 = vmatpush1.msra.mxu0 0.0
      %2496 = vmatprep.subr.mxu0 0.0
      %2497 = vmatpush1.msra.mxu0 0.0
      %2498 = vmatprep.subr.mxu0 0.0
      %2499 = vmatpush1.msra.mxu0 0.0
      %2500 = vmatprep.subr.mxu0 0.0
      %2501 = vmatpush1.msra.mxu0 0.0
      %2502 = vmatprep.subr.mxu0 0.0
      %2503 = vmatpush1.msra.mxu0 0.0
      %2504 = vmatprep.subr.mxu0 0.0
      %2505 = vmatpush1.msra.mxu0 0.0
      %2506 = vmatprep.subr.mxu0 0.0
      %2507 = vmatpush1.msra.mxu0 0.0
      %2508 = vmatprep.subr.mxu0 0.0
      %2509 = vmatpush1.msra.mxu0 0.0
      %2510 = vmatprep.subr.mxu0 0.0
      %2511 = vmatpush1.msra.mxu0 0.0
      %2512 = vmatprep.subr.mxu0 0.0
      %2513 = vmatpush1.msra.mxu0 0.0
      %2514 = vmatprep.subr.mxu0 0.0
      %2515 = vmatpush1.msra.mxu0 0.0
      %2516 = vmatprep.subr.mxu0 0.0
      %2517 = vmatpush1.msra.mxu0 0.0
      %2518 = vmatprep.subr.mxu0 0.0
      %2519 = vmatpush1.msra.mxu0 0.0
      %2520 = vmatprep.subr.mxu0 0.0
      %2521 = vmatpush1.msra.mxu0 0.0
      %2522 = vmatprep.subr.mxu0 0.0
      %2523 = vmatpush1.msra.mxu0 0.0
      %2524 = vmatprep.subr.mxu0 0.0
      %2525 = vmatpush1.msra.mxu0 0.0
      %2526 = vmatprep.subr.mxu0 0.0
      %2527 = vmatpush1.msra.mxu0 0.0
      %2528 = vmatprep.subr.mxu0 0.0
      %2529 = vmatpush1.msra.mxu0 0.0
      %2530 = vmatprep.subr.mxu0 0.0
      %2531 = vmatpush1.msra.mxu0 0.0
      %2532 = vmatprep.subr.mxu0 0.0
      %2533 = vmatpush1.msra.mxu0 0.0
      %2534 = vmatprep.subr.mxu0 0.0
      %2535 = vmatpush1.msra.mxu0 0.0
      %2536 = vmatprep.subr.mxu0 0.0
      %2537 = vmatpush1.msra.mxu0 0.0
      %2538 = vmatprep.subr.mxu0 0.0
      %2539 = vmatpush1.msra.mxu0 0.0
      %2540 = vmatprep.subr.mxu0 0.0
      %2541 = vmatpush1.msra.mxu0 0.0
      %2542 = vmatprep.subr.mxu0 0.0
      %2543 = vmatpush1.msra.mxu0 0.0
      %2544 = vmatprep.subr.mxu0 0.0
      %2545 = vmatpush1.msra.mxu0 0.0
      %2546 = vmatprep.mubr.f32.mxu0 0.0
      %2547 = vmatmul.mubr.f32.gmra.mrb[0].mxu0 %v2480
      %v2548 = vpop.f32.mrb[0].mxu0
      %v2549 = vadd.f32 0.0, %v2548
      %v2550 = vpop.f32.mrb[0].mxu0
      %2551 = vdwg.mxu0
      %v2553 = vsel %vm1750, %v2403, 0
      %2555 = vmatprep.subr.mxu0 0.0
      %2556 = vmatpush1.msra.mxu0 %v2406
      %2557 = vmatprep.subr.mxu0 0.0
      %2558 = vmatpush1.msra.mxu0 0.0
      %2559 = vmatprep.subr.mxu0 0.0
      %2560 = vmatpush1.msra.mxu0 0.0
      %2561 = vmatprep.subr.mxu0 0.0
      %2562 = vmatpush1.msra.mxu0 0.0
      %2563 = vmatprep.subr.mxu0 0.0
      %2564 = vmatpush1.msra.mxu0 0.0
      %2565 = vmatprep.subr.mxu0 0.0
      %2566 = vmatpush1.msra.mxu0 0.0
      %2567 = vmatprep.subr.mxu0 0.0
      %2568 = vmatpush1.msra.mxu0 0.0
      %2569 = vmatprep.subr.mxu0 0.0
      %2570 = vmatpush1.msra.mxu0 0.0
      %2571 = vmatprep.subr.mxu0 0.0
      %2572 = vmatpush1.msra.mxu0 0.0
      %2573 = vmatprep.subr.mxu0 0.0
      %2574 = vmatpush1.msra.mxu0 0.0
      %2575 = vmatprep.subr.mxu0 0.0
      %2576 = vmatpush1.msra.mxu0 0.0
      %2577 = vmatprep.subr.mxu0 0.0
      %2578 = vmatpush1.msra.mxu0 0.0
      %2579 = vmatprep.subr.mxu0 0.0
      %2580 = vmatpush1.msra.mxu0 0.0
      %2581 = vmatprep.subr.mxu0 0.0
      %2582 = vmatpush1.msra.mxu0 0.0
      %2583 = vmatprep.subr.mxu0 0.0
      %2584 = vmatpush1.msra.mxu0 0.0
      %2585 = vmatprep.subr.mxu0 0.0
      %2586 = vmatpush1.msra.mxu0 0.0
      %2587 = vmatprep.subr.mxu0 0.0
      %2588 = vmatpush1.msra.mxu0 0.0
      %2589 = vmatprep.subr.mxu0 0.0
      %2590 = vmatpush1.msra.mxu0 0.0
      %2591 = vmatprep.subr.mxu0 0.0
      %2592 = vmatpush1.msra.mxu0 0.0
      %2593 = vmatprep.subr.mxu0 0.0
      %2594 = vmatpush1.msra.mxu0 0.0
      %2595 = vmatprep.subr.mxu0 0.0
      %2596 = vmatpush1.msra.mxu0 0.0
      %2597 = vmatprep.subr.mxu0 0.0
      %2598 = vmatpush1.msra.mxu0 0.0
      %2599 = vmatprep.subr.mxu0 0.0
      %2600 = vmatpush1.msra.mxu0 0.0
      %2601 = vmatprep.subr.mxu0 0.0
      %2602 = vmatpush1.msra.mxu0 0.0
      %2603 = vmatprep.subr.mxu0 0.0
      %2604 = vmatpush1.msra.mxu0 0.0
      %2605 = vmatprep.subr.mxu0 0.0
      %2606 = vmatpush1.msra.mxu0 0.0
      %2607 = vmatprep.subr.mxu0 0.0
      %2608 = vmatpush1.msra.mxu0 0.0
      %2609 = vmatprep.subr.mxu0 0.0
      %2610 = vmatpush1.msra.mxu0 0.0
      %2611 = vmatprep.subr.mxu0 0.0
      %2612 = vmatpush1.msra.mxu0 0.0
      %2613 = vmatprep.subr.mxu0 0.0
      %2614 = vmatpush1.msra.mxu0 0.0
      %2615 = vmatprep.subr.mxu0 0.0
      %2616 = vmatpush1.msra.mxu0 0.0
      %2617 = vmatprep.subr.mxu0 0.0
      %2618 = vmatpush1.msra.mxu0 0.0
      %2619 = vmatprep.mubr.f32.mxu0 0.0
      %2620 = vmatmul.mubr.f32.gmra.mrb[0].mxu0 %v2553
      %v2621 = vpop.f32.mrb[0].mxu0
      %v2622 = vadd.f32 %v2549, %v2621
      %v2623 = vpop.f32.mrb[0].mxu0
      %2624 = vdwg.mxu0
      %s2625 = scalar_lea.vmem %s19, 8
      %v2626 = vld [vmem:[%s2625] sm:$0xff]
      %v2628 = vsel %vm1750, %v2626, 0
      %2630 = vmatprep.subr.mxu0 0.0
      %2631 = vmatpush1.msra.mxu0 %v2255
      %2632 = vmatprep.subr.mxu0 0.0
      %2633 = vmatpush1.msra.mxu0 0.0
      %2634 = vmatprep.subr.mxu0 0.0
      %2635 = vmatpush1.msra.mxu0 0.0
      %2636 = vmatprep.subr.mxu0 0.0
      %2637 = vmatpush1.msra.mxu0 0.0
      %2638 = vmatprep.subr.mxu0 0.0
      %2639 = vmatpush1.msra.mxu0 0.0
      %2640 = vmatprep.subr.mxu0 0.0
      %2641 = vmatpush1.msra.mxu0 0.0
      %2642 = vmatprep.subr.mxu0 0.0
      %2643 = vmatpush1.msra.mxu0 0.0
      %2644 = vmatprep.subr.mxu0 0.0
      %2645 = vmatpush1.msra.mxu0 0.0
      %2646 = vmatprep.subr.mxu0 0.0
      %2647 = vmatpush1.msra.mxu0 0.0
      %2648 = vmatprep.subr.mxu0 0.0
      %2649 = vmatpush1.msra.mxu0 0.0
      %2650 = vmatprep.subr.mxu0 0.0
      %2651 = vmatpush1.msra.mxu0 0.0
      %2652 = vmatprep.subr.mxu0 0.0
      %2653 = vmatpush1.msra.mxu0 0.0
      %2654 = vmatprep.subr.mxu0 0.0
      %2655 = vmatpush1.msra.mxu0 0.0
      %2656 = vmatprep.subr.mxu0 0.0
      %2657 = vmatpush1.msra.mxu0 0.0
      %2658 = vmatprep.subr.mxu0 0.0
      %2659 = vmatpush1.msra.mxu0 0.0
      %2660 = vmatprep.subr.mxu0 0.0
      %2661 = vmatpush1.msra.mxu0 0.0
      %2662 = vmatprep.subr.mxu0 0.0
      %2663 = vmatpush1.msra.mxu0 0.0
      %2664 = vmatprep.subr.mxu0 0.0
      %2665 = vmatpush1.msra.mxu0 0.0
      %2666 = vmatprep.subr.mxu0 0.0
      %2667 = vmatpush1.msra.mxu0 0.0
      %2668 = vmatprep.subr.mxu0 0.0
      %2669 = vmatpush1.msra.mxu0 0.0
      %2670 = vmatprep.subr.mxu0 0.0
      %2671 = vmatpush1.msra.mxu0 0.0
      %2672 = vmatprep.subr.mxu0 0.0
      %2673 = vmatpush1.msra.mxu0 0.0
      %2674 = vmatprep.subr.mxu0 0.0
      %2675 = vmatpush1.msra.mxu0 0.0
      %2676 = vmatprep.subr.mxu0 0.0
      %2677 = vmatpush1.msra.mxu0 0.0
      %2678 = vmatprep.subr.mxu0 0.0
      %2679 = vmatpush1.msra.mxu0 0.0
      %2680 = vmatprep.subr.mxu0 0.0
      %2681 = vmatpush1.msra.mxu0 0.0
      %2682 = vmatprep.subr.mxu0 0.0
      %2683 = vmatpush1.msra.mxu0 0.0
      %2684 = vmatprep.subr.mxu0 0.0
      %2685 = vmatpush1.msra.mxu0 0.0
      %2686 = vmatprep.subr.mxu0 0.0
      %2687 = vmatpush1.msra.mxu0 0.0
      %2688 = vmatprep.subr.mxu0 0.0
      %2689 = vmatpush1.msra.mxu0 0.0
      %2690 = vmatprep.subr.mxu0 0.0
      %2691 = vmatpush1.msra.mxu0 0.0
      %2692 = vmatprep.subr.mxu0 0.0
      %2693 = vmatpush1.msra.mxu0 0.0
      %2694 = vmatprep.mubr.f32.mxu0 0.0
      %2695 = vmatmul.mubr.f32.gmra.mrb[0].mxu0 %v2628
      %v2696 = vpop.f32.mrb[0].mxu0
      %v2697 = vadd.f32 0.0, %v2696
      %v2698 = vpop.f32.mrb[0].mxu0
      %2699 = vdwg.mxu0
      %s2700 = scalar_lea.vmem %s20, 8
      %v2701 = vld [vmem:[%s2700] sm:$0xff]
      %v2703 = vsel %vm1750, %v2697, 0
      %2705 = vmatprep.subr.mxu0 0.0
      %2706 = vmatpush1.msra.mxu0 %v2701
      %2707 = vmatprep.subr.mxu0 0.0
      %2708 = vmatpush1.msra.mxu0 0.0
      %2709 = vmatprep.subr.mxu0 0.0
      %2710 = vmatpush1.msra.mxu0 0.0
      %2711 = vmatprep.subr.mxu0 0.0
      %2712 = vmatpush1.msra.mxu0 0.0
      %2713 = vmatprep.subr.mxu0 0.0
      %2714 = vmatpush1.msra.mxu0 0.0
      %2715 = vmatprep.subr.mxu0 0.0
      %2716 = vmatpush1.msra.mxu0 0.0
      %2717 = vmatprep.subr.mxu0 0.0
      %2718 = vmatpush1.msra.mxu0 0.0
      %2719 = vmatprep.subr.mxu0 0.0
      %2720 = vmatpush1.msra.mxu0 0.0
      %2721 = vmatprep.subr.mxu0 0.0
      %2722 = vmatpush1.msra.mxu0 0.0
      %2723 = vmatprep.subr.mxu0 0.0
      %2724 = vmatpush1.msra.mxu0 0.0
      %2725 = vmatprep.subr.mxu0 0.0
      %2726 = vmatpush1.msra.mxu0 0.0
      %2727 = vmatprep.subr.mxu0 0.0
      %2728 = vmatpush1.msra.mxu0 0.0
      %2729 = vmatprep.subr.mxu0 0.0
      %2730 = vmatpush1.msra.mxu0 0.0
      %2731 = vmatprep.subr.mxu0 0.0
      %2732 = vmatpush1.msra.mxu0 0.0
      %2733 = vmatprep.subr.mxu0 0.0
      %2734 = vmatpush1.msra.mxu0 0.0
      %2735 = vmatprep.subr.mxu0 0.0
      %2736 = vmatpush1.msra.mxu0 0.0
      %2737 = vmatprep.subr.mxu0 0.0
      %2738 = vmatpush1.msra.mxu0 0.0
      %2739 = vmatprep.subr.mxu0 0.0
      %2740 = vmatpush1.msra.mxu0 0.0
      %2741 = vmatprep.subr.mxu0 0.0
      %2742 = vmatpush1.msra.mxu0 0.0
      %2743 = vmatprep.subr.mxu0 0.0
      %2744 = vmatpush1.msra.mxu0 0.0
      %2745 = vmatprep.subr.mxu0 0.0
      %2746 = vmatpush1.msra.mxu0 0.0
      %2747 = vmatprep.subr.mxu0 0.0
      %2748 = vmatpush1.msra.mxu0 0.0
      %2749 = vmatprep.subr.mxu0 0.0
      %2750 = vmatpush1.msra.mxu0 0.0
      %2751 = vmatprep.subr.mxu0 0.0
      %2752 = vmatpush1.msra.mxu0 0.0
      %2753 = vmatprep.subr.mxu0 0.0
      %2754 = vmatpush1.msra.mxu0 0.0
      %2755 = vmatprep.subr.mxu0 0.0
      %2756 = vmatpush1.msra.mxu0 0.0
      %2757 = vmatprep.subr.mxu0 0.0
      %2758 = vmatpush1.msra.mxu0 0.0
      %2759 = vmatprep.subr.mxu0 0.0
      %2760 = vmatpush1.msra.mxu0 0.0
      %2761 = vmatprep.subr.mxu0 0.0
      %2762 = vmatpush1.msra.mxu0 0.0
      %2763 = vmatprep.subr.mxu0 0.0
      %2764 = vmatpush1.msra.mxu0 0.0
      %2765 = vmatprep.subr.mxu0 0.0
      %2766 = vmatpush1.msra.mxu0 0.0
      %2767 = vmatprep.subr.mxu0 0.0
      %2768 = vmatpush1.msra.mxu0 0.0
      %2769 = vmatprep.mubr.f32.mxu0 0.0
      %2770 = vmatmul.mubr.f32.gmra.mrb[0].mxu0 %v2703
      %v2771 = vpop.f32.mrb[0].mxu0
      %v2772 = vadd.f32 0.0, %v2771
      %v2773 = vpop.f32.mrb[0].mxu0
      %2774 = vdwg.mxu0
      %v2775 = vadd.f32 %v2622, %v2772
      %2776 = vmatprep.subr.mxu0 0.0
      %2777 = vmatpush1.msra.mxu0 %v2329
      %2778 = vmatprep.subr.mxu0 0.0
      %2779 = vmatpush1.msra.mxu0 0.0
      %2780 = vmatprep.subr.mxu0 0.0
      %2781 = vmatpush1.msra.mxu0 0.0
      %2782 = vmatprep.subr.mxu0 0.0
      %2783 = vmatpush1.msra.mxu0 0.0
      %2784 = vmatprep.subr.mxu0 0.0
      %2785 = vmatpush1.msra.mxu0 0.0
      %2786 = vmatprep.subr.mxu0 0.0
      %2787 = vmatpush1.msra.mxu0 0.0
      %2788 = vmatprep.subr.mxu0 0.0
      %2789 = vmatpush1.msra.mxu0 0.0
      %2790 = vmatprep.subr.mxu0 0.0
      %2791 = vmatpush1.msra.mxu0 0.0
      %2792 = vmatprep.subr.mxu0 0.0
      %2793 = vmatpush1.msra.mxu0 0.0
      %2794 = vmatprep.subr.mxu0 0.0
      %2795 = vmatpush1.msra.mxu0 0.0
      %2796 = vmatprep.subr.mxu0 0.0
      %2797 = vmatpush1.msra.mxu0 0.0
      %2798 = vmatprep.subr.mxu0 0.0
      %2799 = vmatpush1.msra.mxu0 0.0
      %2800 = vmatprep.subr.mxu0 0.0
      %2801 = vmatpush1.msra.mxu0 0.0
      %2802 = vmatprep.subr.mxu0 0.0
      %2803 = vmatpush1.msra.mxu0 0.0
      %2804 = vmatprep.subr.mxu0 0.0
      %2805 = vmatpush1.msra.mxu0 0.0
      %2806 = vmatprep.subr.mxu0 0.0
      %2807 = vmatpush1.msra.mxu0 0.0
      %2808 = vmatprep.subr.mxu0 0.0
      %2809 = vmatpush1.msra.mxu0 0.0
      %2810 = vmatprep.subr.mxu0 0.0
      %2811 = vmatpush1.msra.mxu0 0.0
      %2812 = vmatprep.subr.mxu0 0.0
      %2813 = vmatpush1.msra.mxu0 0.0
      %2814 = vmatprep.subr.mxu0 0.0
      %2815 = vmatpush1.msra.mxu0 0.0
      %2816 = vmatprep.subr.mxu0 0.0
      %2817 = vmatpush1.msra.mxu0 0.0
      %2818 = vmatprep.subr.mxu0 0.0
      %2819 = vmatpush1.msra.mxu0 0.0
      %2820 = vmatprep.subr.mxu0 0.0
      %2821 = vmatpush1.msra.mxu0 0.0
      %2822 = vmatprep.subr.mxu0 0.0
      %2823 = vmatpush1.msra.mxu0 0.0
      %2824 = vmatprep.subr.mxu0 0.0
      %2825 = vmatpush1.msra.mxu0 0.0
      %2826 = vmatprep.subr.mxu0 0.0
      %2827 = vmatpush1.msra.mxu0 0.0
      %2828 = vmatprep.subr.mxu0 0.0
      %2829 = vmatpush1.msra.mxu0 0.0
      %2830 = vmatprep.subr.mxu0 0.0
      %2831 = vmatpush1.msra.mxu0 0.0
      %2832 = vmatprep.subr.mxu0 0.0
      %2833 = vmatpush1.msra.mxu0 0.0
      %2834 = vmatprep.subr.mxu0 0.0
      %2835 = vmatpush1.msra.mxu0 0.0
      %2836 = vmatprep.subr.mxu0 0.0
      %2837 = vmatpush1.msra.mxu0 0.0
      %2838 = vmatprep.subr.mxu0 0.0
      %2839 = vmatpush1.msra.mxu0 0.0
      %2840 = vmatprep.mubr.f32.mxu0 0.0
      %2841 = vmatmul.mubr.f32.gmra.mrb[0].mxu0 %v2628
      %v2842 = vpop.f32.mrb[0].mxu0
      %v2843 = vadd.f32 0.0, %v2842
      %v2844 = vpop.f32.mrb[0].mxu0
      %2845 = vdwg.mxu0
      %s2846 = scalar_lea.vmem %s20, 32
      %v2847 = vld [vmem:[%s2846] sm:$0xff]
      %v2849 = vsel %vm1750, %v2843, 0
      %2851 = vmatprep.subr.mxu0 0.0
      %2852 = vmatpush1.msra.mxu0 %v2847
      %2853 = vmatprep.subr.mxu0 0.0
      %2854 = vmatpush1.msra.mxu0 0.0
      %2855 = vmatprep.subr.mxu0 0.0
      %2856 = vmatpush1.msra.mxu0 0.0
      %2857 = vmatprep.subr.mxu0 0.0
      %2858 = vmatpush1.msra.mxu0 0.0
      %2859 = vmatprep.subr.mxu0 0.0
      %2860 = vmatpush1.msra.mxu0 0.0
      %2861 = vmatprep.subr.mxu0 0.0
      %2862 = vmatpush1.msra.mxu0 0.0
      %2863 = vmatprep.subr.mxu0 0.0
      %2864 = vmatpush1.msra.mxu0 0.0
      %2865 = vmatprep.subr.mxu0 0.0
      %2866 = vmatpush1.msra.mxu0 0.0
      %2867 = vmatprep.subr.mxu0 0.0
      %2868 = vmatpush1.msra.mxu0 0.0
      %2869 = vmatprep.subr.mxu0 0.0
      %2870 = vmatpush1.msra.mxu0 0.0
      %2871 = vmatprep.subr.mxu0 0.0
      %2872 = vmatpush1.msra.mxu0 0.0
      %2873 = vmatprep.subr.mxu0 0.0
      %2874 = vmatpush1.msra.mxu0 0.0
      %2875 = vmatprep.subr.mxu0 0.0
      %2876 = vmatpush1.msra.mxu0 0.0
      %2877 = vmatprep.subr.mxu0 0.0
      %2878 = vmatpush1.msra.mxu0 0.0
      %2879 = vmatprep.subr.mxu0 0.0
      %2880 = vmatpush1.msra.mxu0 0.0
      %2881 = vmatprep.subr.mxu0 0.0
      %2882 = vmatpush1.msra.mxu0 0.0
      %2883 = vmatprep.subr.mxu0 0.0
      %2884 = vmatpush1.msra.mxu0 0.0
      %2885 = vmatprep.subr.mxu0 0.0
      %2886 = vmatpush1.msra.mxu0 0.0
      %2887 = vmatprep.subr.mxu0 0.0
      %2888 = vmatpush1.msra.mxu0 0.0
      %2889 = vmatprep.subr.mxu0 0.0
      %2890 = vmatpush1.msra.mxu0 0.0
      %2891 = vmatprep.subr.mxu0 0.0
      %2892 = vmatpush1.msra.mxu0 0.0
      %2893 = vmatprep.subr.mxu0 0.0
      %2894 = vmatpush1.msra.mxu0 0.0
      %2895 = vmatprep.subr.mxu0 0.0
      %2896 = vmatpush1.msra.mxu0 0.0
      %2897 = vmatprep.subr.mxu0 0.0
      %2898 = vmatpush1.msra.mxu0 0.0
      %2899 = vmatprep.subr.mxu0 0.0
      %2900 = vmatpush1.msra.mxu0 0.0
      %2901 = vmatprep.subr.mxu0 0.0
      %2902 = vmatpush1.msra.mxu0 0.0
      %2903 = vmatprep.subr.mxu0 0.0
      %2904 = vmatpush1.msra.mxu0 0.0
      %2905 = vmatprep.subr.mxu0 0.0
      %2906 = vmatpush1.msra.mxu0 0.0
      %2907 = vmatprep.subr.mxu0 0.0
      %2908 = vmatpush1.msra.mxu0 0.0
      %2909 = vmatprep.subr.mxu0 0.0
      %2910 = vmatpush1.msra.mxu0 0.0
      %2911 = vmatprep.subr.mxu0 0.0
      %2912 = vmatpush1.msra.mxu0 0.0
      %2913 = vmatprep.subr.mxu0 0.0
      %2914 = vmatpush1.msra.mxu0 0.0
      %2915 = vmatprep.mubr.f32.mxu0 0.0
      %2916 = vmatmul.mubr.f32.gmra.mrb[0].mxu0 %v2849
      %v2917 = vpop.f32.mrb[0].mxu0
      %v2918 = vadd.f32 0.0, %v2917
      %v2919 = vpop.f32.mrb[0].mxu0
      %2920 = vdwg.mxu0
      %v2921 = vadd.f32 %v2775, %v2918
      %s2922 = scalar_lea.vmem %s19, 16
      %v2923 = vld [vmem:[%s2922] sm:$0xff]
      %v2925 = vsel %vm1750, %v2923, 0
      %2927 = vmatprep.subr.mxu0 0.0
      %2928 = vmatpush1.msra.mxu0 %v2255
      %2929 = vmatprep.subr.mxu0 0.0
      %2930 = vmatpush1.msra.mxu0 0.0
      %2931 = vmatprep.subr.mxu0 0.0
      %2932 = vmatpush1.msra.mxu0 0.0
      %2933 = vmatprep.subr.mxu0 0.0
      %2934 = vmatpush1.msra.mxu0 0.0
      %2935 = vmatprep.subr.mxu0 0.0
      %2936 = vmatpush1.msra.mxu0 0.0
      %2937 = vmatprep.subr.mxu0 0.0
      %2938 = vmatpush1.msra.mxu0 0.0
      %2939 = vmatprep.subr.mxu0 0.0
      %2940 = vmatpush1.msra.mxu0 0.0
      %2941 = vmatprep.subr.mxu0 0.0
      %2942 = vmatpush1.msra.mxu0 0.0
      %2943 = vmatprep.subr.mxu0 0.0
      %2944 = vmatpush1.msra.mxu0 0.0
      %2945 = vmatprep.subr.mxu0 0.0
      %2946 = vmatpush1.msra.mxu0 0.0
      %2947 = vmatprep.subr.mxu0 0.0
      %2948 = vmatpush1.msra.mxu0 0.0
      %2949 = vmatprep.subr.mxu0 0.0
      %2950 = vmatpush1.msra.mxu0 0.0
      %2951 = vmatprep.subr.mxu0 0.0
      %2952 = vmatpush1.msra.mxu0 0.0
      %2953 = vmatprep.subr.mxu0 0.0
      %2954 = vmatpush1.msra.mxu0 0.0
      %2955 = vmatprep.subr.mxu0 0.0
      %2956 = vmatpush1.msra.mxu0 0.0
      %2957 = vmatprep.subr.mxu0 0.0
      %2958 = vmatpush1.msra.mxu0 0.0
      %2959 = vmatprep.subr.mxu0 0.0
      %2960 = vmatpush1.msra.mxu0 0.0
      %2961 = vmatprep.subr.mxu0 0.0
      %2962 = vmatpush1.msra.mxu0 0.0
      %2963 = vmatprep.subr.mxu0 0.0
      %2964 = vmatpush1.msra.mxu0 0.0
      %2965 = vmatprep.subr.mxu0 0.0
      %2966 = vmatpush1.msra.mxu0 0.0
      %2967 = vmatprep.subr.mxu0 0.0
      %2968 = vmatpush1.msra.mxu0 0.0
      %2969 = vmatprep.subr.mxu0 0.0
      %2970 = vmatpush1.msra.mxu0 0.0
      %2971 = vmatprep.subr.mxu0 0.0
      %2972 = vmatpush1.msra.mxu0 0.0
      %2973 = vmatprep.subr.mxu0 0.0
      %2974 = vmatpush1.msra.mxu0 0.0
      %2975 = vmatprep.subr.mxu0 0.0
      %2976 = vmatpush1.msra.mxu0 0.0
      %2977 = vmatprep.subr.mxu0 0.0
      %2978 = vmatpush1.msra.mxu0 0.0
      %2979 = vmatprep.subr.mxu0 0.0
      %2980 = vmatpush1.msra.mxu0 0.0
      %2981 = vmatprep.subr.mxu0 0.0
      %2982 = vmatpush1.msra.mxu0 0.0
      %2983 = vmatprep.subr.mxu0 0.0
      %2984 = vmatpush1.msra.mxu0 0.0
      %2985 = vmatprep.subr.mxu0 0.0
      %2986 = vmatpush1.msra.mxu0 0.0
      %2987 = vmatprep.subr.mxu0 0.0
      %2988 = vmatpush1.msra.mxu0 0.0
      %2989 = vmatprep.subr.mxu0 0.0
      %2990 = vmatpush1.msra.mxu0 0.0
      %2991 = vmatprep.mubr.f32.mxu0 0.0
      %2992 = vmatmul.mubr.f32.gmra.mrb[0].mxu0 %v2925
      %v2993 = vpop.f32.mrb[0].mxu0
      %v2994 = vadd.f32 0.0, %v2993
      %v2995 = vpop.f32.mrb[0].mxu0
      %2996 = vdwg.mxu0
      %s2997 = scalar_lea.vmem %s20, 16
      %v2998 = vld [vmem:[%s2997] sm:$0xff]
      %v3000 = vsel %vm1750, %v2994, 0
      %3002 = vmatprep.subr.mxu0 0.0
      %3003 = vmatpush1.msra.mxu0 %v2998
      %3004 = vmatprep.subr.mxu0 0.0
      %3005 = vmatpush1.msra.mxu0 0.0
      %3006 = vmatprep.subr.mxu0 0.0
      %3007 = vmatpush1.msra.mxu0 0.0
      %3008 = vmatprep.subr.mxu0 0.0
      %3009 = vmatpush1.msra.mxu0 0.0
      %3010 = vmatprep.subr.mxu0 0.0
      %3011 = vmatpush1.msra.mxu0 0.0
      %3012 = vmatprep.subr.mxu0 0.0
      %3013 = vmatpush1.msra.mxu0 0.0
      %3014 = vmatprep.subr.mxu0 0.0
      %3015 = vmatpush1.msra.mxu0 0.0
      %3016 = vmatprep.subr.mxu0 0.0
      %3017 = vmatpush1.msra.mxu0 0.0
      %3018 = vmatprep.subr.mxu0 0.0
      %3019 = vmatpush1.msra.mxu0 0.0
      %3020 = vmatprep.subr.mxu0 0.0
      %3021 = vmatpush1.msra.mxu0 0.0
      %3022 = vmatprep.subr.mxu0 0.0
      %3023 = vmatpush1.msra.mxu0 0.0
      %3024 = vmatprep.subr.mxu0 0.0
      %3025 = vmatpush1.msra.mxu0 0.0
      %3026 = vmatprep.subr.mxu0 0.0
      %3027 = vmatpush1.msra.mxu0 0.0
      %3028 = vmatprep.subr.mxu0 0.0
      %3029 = vmatpush1.msra.mxu0 0.0
      %3030 = vmatprep.subr.mxu0 0.0
      %3031 = vmatpush1.msra.mxu0 0.0
      %3032 = vmatprep.subr.mxu0 0.0
      %3033 = vmatpush1.msra.mxu0 0.0
      %3034 = vmatprep.subr.mxu0 0.0
      %3035 = vmatpush1.msra.mxu0 0.0
      %3036 = vmatprep.subr.mxu0 0.0
      %3037 = vmatpush1.msra.mxu0 0.0
      %3038 = vmatprep.subr.mxu0 0.0
      %3039 = vmatpush1.msra.mxu0 0.0
      %3040 = vmatprep.subr.mxu0 0.0
      %3041 = vmatpush1.msra.mxu0 0.0
      %3042 = vmatprep.subr.mxu0 0.0
      %3043 = vmatpush1.msra.mxu0 0.0
      %3044 = vmatprep.subr.mxu0 0.0
      %3045 = vmatpush1.msra.mxu0 0.0
      %3046 = vmatprep.subr.mxu0 0.0
      %3047 = vmatpush1.msra.mxu0 0.0
      %3048 = vmatprep.subr.mxu0 0.0
      %3049 = vmatpush1.msra.mxu0 0.0
      %3050 = vmatprep.subr.mxu0 0.0
      %3051 = vmatpush1.msra.mxu0 0.0
      %3052 = vmatprep.subr.mxu0 0.0
      %3053 = vmatpush1.msra.mxu0 0.0
      %3054 = vmatprep.subr.mxu0 0.0
      %3055 = vmatpush1.msra.mxu0 0.0
      %3056 = vmatprep.subr.mxu0 0.0
      %3057 = vmatpush1.msra.mxu0 0.0
      %3058 = vmatprep.subr.mxu0 0.0
      %3059 = vmatpush1.msra.mxu0 0.0
      %3060 = vmatprep.subr.mxu0 0.0
      %3061 = vmatpush1.msra.mxu0 0.0
      %3062 = vmatprep.subr.mxu0 0.0
      %3063 = vmatpush1.msra.mxu0 0.0
      %3064 = vmatprep.subr.mxu0 0.0
      %3065 = vmatpush1.msra.mxu0 0.0
      %3066 = vmatprep.mubr.f32.mxu0 0.0
      %3067 = vmatmul.mubr.f32.gmra.mrb[0].mxu0 %v3000
      %v3068 = vpop.f32.mrb[0].mxu0
      %v3069 = vadd.f32 0.0, %v3068
      %v3070 = vpop.f32.mrb[0].mxu0
      %3071 = vdwg.mxu0
      %v3072 = vadd.f32 %v2921, %v3069
      %3073 = vmatprep.subr.mxu0 0.0
      %3074 = vmatpush1.msra.mxu0 %v2329
      %3075 = vmatprep.subr.mxu0 0.0
      %3076 = vmatpush1.msra.mxu0 0.0
      %3077 = vmatprep.subr.mxu0 0.0
      %3078 = vmatpush1.msra.mxu0 0.0
      %3079 = vmatprep.subr.mxu0 0.0
      %3080 = vmatpush1.msra.mxu0 0.0
      %3081 = vmatprep.subr.mxu0 0.0
      %3082 = vmatpush1.msra.mxu0 0.0
      %3083 = vmatprep.subr.mxu0 0.0
      %3084 = vmatpush1.msra.mxu0 0.0
      %3085 = vmatprep.subr.mxu0 0.0
      %3086 = vmatpush1.msra.mxu0 0.0
      %3087 = vmatprep.subr.mxu0 0.0
      %3088 = vmatpush1.msra.mxu0 0.0
      %3089 = vmatprep.subr.mxu0 0.0
      %3090 = vmatpush1.msra.mxu0 0.0
      %3091 = vmatprep.subr.mxu0 0.0
      %3092 = vmatpush1.msra.mxu0 0.0
      %3093 = vmatprep.subr.mxu0 0.0
      %3094 = vmatpush1.msra.mxu0 0.0
      %3095 = vmatprep.subr.mxu0 0.0
      %3096 = vmatpush1.msra.mxu0 0.0
      %3097 = vmatprep.subr.mxu0 0.0
      %3098 = vmatpush1.msra.mxu0 0.0
      %3099 = vmatprep.subr.mxu0 0.0
      %3100 = vmatpush1.msra.mxu0 0.0
      %3101 = vmatprep.subr.mxu0 0.0
      %3102 = vmatpush1.msra.mxu0 0.0
      %3103 = vmatprep.subr.mxu0 0.0
      %3104 = vmatpush1.msra.mxu0 0.0
      %3105 = vmatprep.subr.mxu0 0.0
      %3106 = vmatpush1.msra.mxu0 0.0
      %3107 = vmatprep.subr.mxu0 0.0
      %3108 = vmatpush1.msra.mxu0 0.0
      %3109 = vmatprep.subr.mxu0 0.0
      %3110 = vmatpush1.msra.mxu0 0.0
      %3111 = vmatprep.subr.mxu0 0.0
      %3112 = vmatpush1.msra.mxu0 0.0
      %3113 = vmatprep.subr.mxu0 0.0
      %3114 = vmatpush1.msra.mxu0 0.0
      %3115 = vmatprep.subr.mxu0 0.0
      %3116 = vmatpush1.msra.mxu0 0.0
      %3117 = vmatprep.subr.mxu0 0.0
      %3118 = vmatpush1.msra.mxu0 0.0
      %3119 = vmatprep.subr.mxu0 0.0
      %3120 = vmatpush1.msra.mxu0 0.0
      %3121 = vmatprep.subr.mxu0 0.0
      %3122 = vmatpush1.msra.mxu0 0.0
      %3123 = vmatprep.subr.mxu0 0.0
      %3124 = vmatpush1.msra.mxu0 0.0
      %3125 = vmatprep.subr.mxu0 0.0
      %3126 = vmatpush1.msra.mxu0 0.0
      %3127 = vmatprep.subr.mxu0 0.0
      %3128 = vmatpush1.msra.mxu0 0.0
      %3129 = vmatprep.subr.mxu0 0.0
      %3130 = vmatpush1.msra.mxu0 0.0
      %3131 = vmatprep.subr.mxu0 0.0
      %3132 = vmatpush1.msra.mxu0 0.0
      %3133 = vmatprep.subr.mxu0 0.0
      %3134 = vmatpush1.msra.mxu0 0.0
      %3135 = vmatprep.subr.mxu0 0.0
      %3136 = vmatpush1.msra.mxu0 0.0
      %3137 = vmatprep.mubr.f32.mxu0 0.0
      %3138 = vmatmul.mubr.f32.gmra.mrb[0].mxu0 %v2925
      %v3139 = vpop.f32.mrb[0].mxu0
      %v3140 = vadd.f32 0.0, %v3139
      %v3141 = vpop.f32.mrb[0].mxu0
      %3142 = vdwg.mxu0
      %s3143 = scalar_lea.vmem %s20, 40
      %v3144 = vld [vmem:[%s3143] sm:$0xff]
      %v3146 = vsel %vm1750, %v3140, 0
      %3148 = vmatprep.subr.mxu0 0.0
      %3149 = vmatpush1.msra.mxu0 %v3144
      %3150 = vmatprep.subr.mxu0 0.0
      %3151 = vmatpush1.msra.mxu0 0.0
      %3152 = vmatprep.subr.mxu0 0.0
      %3153 = vmatpush1.msra.mxu0 0.0
      %3154 = vmatprep.subr.mxu0 0.0
      %3155 = vmatpush1.msra.mxu0 0.0
      %3156 = vmatprep.subr.mxu0 0.0
      %3157 = vmatpush1.msra.mxu0 0.0
      %3158 = vmatprep.subr.mxu0 0.0
      %3159 = vmatpush1.msra.mxu0 0.0
      %3160 = vmatprep.subr.mxu0 0.0
      %3161 = vmatpush1.msra.mxu0 0.0
      %3162 = vmatprep.subr.mxu0 0.0
      %3163 = vmatpush1.msra.mxu0 0.0
      %3164 = vmatprep.subr.mxu0 0.0
      %3165 = vmatpush1.msra.mxu0 0.0
      %3166 = vmatprep.subr.mxu0 0.0
      %3167 = vmatpush1.msra.mxu0 0.0
      %3168 = vmatprep.subr.mxu0 0.0
      %3169 = vmatpush1.msra.mxu0 0.0
      %3170 = vmatprep.subr.mxu0 0.0
      %3171 = vmatpush1.msra.mxu0 0.0
      %3172 = vmatprep.subr.mxu0 0.0
      %3173 = vmatpush1.msra.mxu0 0.0
      %3174 = vmatprep.subr.mxu0 0.0
      %3175 = vmatpush1.msra.mxu0 0.0
      %3176 = vmatprep.subr.mxu0 0.0
      %3177 = vmatpush1.msra.mxu0 0.0
      %3178 = vmatprep.subr.mxu0 0.0
      %3179 = vmatpush1.msra.mxu0 0.0
      %3180 = vmatprep.subr.mxu0 0.0
      %3181 = vmatpush1.msra.mxu0 0.0
      %3182 = vmatprep.subr.mxu0 0.0
      %3183 = vmatpush1.msra.mxu0 0.0
      %3184 = vmatprep.subr.mxu0 0.0
      %3185 = vmatpush1.msra.mxu0 0.0
      %3186 = vmatprep.subr.mxu0 0.0
      %3187 = vmatpush1.msra.mxu0 0.0
      %3188 = vmatprep.subr.mxu0 0.0
      %3189 = vmatpush1.msra.mxu0 0.0
      %3190 = vmatprep.subr.mxu0 0.0
      %3191 = vmatpush1.msra.mxu0 0.0
      %3192 = vmatprep.subr.mxu0 0.0
      %3193 = vmatpush1.msra.mxu0 0.0
      %3194 = vmatprep.subr.mxu0 0.0
      %3195 = vmatpush1.msra.mxu0 0.0
      %3196 = vmatprep.subr.mxu0 0.0
      %3197 = vmatpush1.msra.mxu0 0.0
      %3198 = vmatprep.subr.mxu0 0.0
      %3199 = vmatpush1.msra.mxu0 0.0
      %3200 = vmatprep.subr.mxu0 0.0
      %3201 = vmatpush1.msra.mxu0 0.0
      %3202 = vmatprep.subr.mxu0 0.0
      %3203 = vmatpush1.msra.mxu0 0.0
      %3204 = vmatprep.subr.mxu0 0.0
      %3205 = vmatpush1.msra.mxu0 0.0
      %3206 = vmatprep.subr.mxu0 0.0
      %3207 = vmatpush1.msra.mxu0 0.0
      %3208 = vmatprep.subr.mxu0 0.0
      %3209 = vmatpush1.msra.mxu0 0.0
      %3210 = vmatprep.subr.mxu0 0.0
      %3211 = vmatpush1.msra.mxu0 0.0
      %3212 = vmatprep.mubr.f32.mxu0 0.0
      %3213 = vmatmul.mubr.f32.gmra.mrb[0].mxu0 %v3146
      %v3214 = vpop.f32.mrb[0].mxu0
      %v3215 = vadd.f32 0.0, %v3214
      %v3216 = vpop.f32.mrb[0].mxu0
      %3217 = vdwg.mxu0
      %v3218 = vadd.f32 %v3072, %v3215
      %v3219 = vxor.u32 %v3218, 2147483648
      %v3220 = vmul.f32 %v3219, 1.442695
      %v3221 = vpow.pop %v3220
      %v3222 = vadd.f32 %v3221, 1.0
      %v3223 = vrcp.pop %v3222
      %v3224 = vmul.f32 1.0, %v3223
      %v3226 = vsel %vm1750, %v3224, 0
      %3228 = vmatprep.subr.mxu0 0.0
      %3229 = vmatpush1.msra.mxu0 %v1969
      %3230 = vmatprep.subr.mxu0 0.0
      %3231 = vmatpush1.msra.mxu0 0.0
      %3232 = vmatprep.subr.mxu0 0.0
      %3233 = vmatpush1.msra.mxu0 0.0
      %3234 = vmatprep.subr.mxu0 0.0
      %3235 = vmatpush1.msra.mxu0 0.0
      %3236 = vmatprep.subr.mxu0 0.0
      %3237 = vmatpush1.msra.mxu0 0.0
      %3238 = vmatprep.subr.mxu0 0.0
      %3239 = vmatpush1.msra.mxu0 0.0
      %3240 = vmatprep.subr.mxu0 0.0
      %3241 = vmatpush1.msra.mxu0 0.0
      %3242 = vmatprep.subr.mxu0 0.0
      %3243 = vmatpush1.msra.mxu0 0.0
      %3244 = vmatprep.subr.mxu0 0.0
      %3245 = vmatpush1.msra.mxu0 0.0
      %3246 = vmatprep.subr.mxu0 0.0
      %3247 = vmatpush1.msra.mxu0 0.0
      %3248 = vmatprep.subr.mxu0 0.0
      %3249 = vmatpush1.msra.mxu0 0.0
      %3250 = vmatprep.subr.mxu0 0.0
      %3251 = vmatpush1.msra.mxu0 0.0
      %3252 = vmatprep.subr.mxu0 0.0
      %3253 = vmatpush1.msra.mxu0 0.0
      %3254 = vmatprep.subr.mxu0 0.0
      %3255 = vmatpush1.msra.mxu0 0.0
      %3256 = vmatprep.subr.mxu0 0.0
      %3257 = vmatpush1.msra.mxu0 0.0
      %3258 = vmatprep.subr.mxu0 0.0
      %3259 = vmatpush1.msra.mxu0 0.0
      %3260 = vmatprep.subr.mxu0 0.0
      %3261 = vmatpush1.msra.mxu0 0.0
      %3262 = vmatprep.subr.mxu0 0.0
      %3263 = vmatpush1.msra.mxu0 0.0
      %3264 = vmatprep.subr.mxu0 0.0
      %3265 = vmatpush1.msra.mxu0 0.0
      %3266 = vmatprep.subr.mxu0 0.0
      %3267 = vmatpush1.msra.mxu0 0.0
      %3268 = vmatprep.subr.mxu0 0.0
      %3269 = vmatpush1.msra.mxu0 0.0
      %3270 = vmatprep.subr.mxu0 0.0
      %3271 = vmatpush1.msra.mxu0 0.0
      %3272 = vmatprep.subr.mxu0 0.0
      %3273 = vmatpush1.msra.mxu0 0.0
      %3274 = vmatprep.subr.mxu0 0.0
      %3275 = vmatpush1.msra.mxu0 0.0
      %3276 = vmatprep.subr.mxu0 0.0
      %3277 = vmatpush1.msra.mxu0 0.0
      %3278 = vmatprep.subr.mxu0 0.0
      %3279 = vmatpush1.msra.mxu0 0.0
      %3280 = vmatprep.subr.mxu0 0.0
      %3281 = vmatpush1.msra.mxu0 0.0
      %3282 = vmatprep.subr.mxu0 0.0
      %3283 = vmatpush1.msra.mxu0 0.0
      %3284 = vmatprep.subr.mxu0 0.0
      %3285 = vmatpush1.msra.mxu0 0.0
      %3286 = vmatprep.subr.mxu0 0.0
      %3287 = vmatpush1.msra.mxu0 0.0
      %3288 = vmatprep.subr.mxu0 0.0
      %3289 = vmatpush1.msra.mxu0 0.0
      %3290 = vmatprep.subr.mxu0 0.0
      %3291 = vmatpush1.msra.mxu0 0.0
      %3292 = vmatprep.mubr.f32.mxu0 0.0
      %3293 = vmatmul.mubr.f32.gmra.mrb[0].mxu0 %v3226
      %v3294 = vpop.f32.mrb[0].mxu0
      %v3295 = vadd.f32 0.0, %v3294
      %v3296 = vpop.f32.mrb[0].mxu0
      %3297 = vdwg.mxu0
      %v3298 = vmul.f32 %v1749, %v3295
      %v3299 = vsel %vm818, %v3298, 0.0
      %v3300 = vrot.slane %v3299, 4
      %v3301 = vadd.f32 %v3299, %v3300
      %v3302 = vrot.slane %v3301, 2
      %v3303 = vadd.f32 %v3301, %v3302
      %v3304 = vrot.slane %v3303, 1
      %v3305 = vadd.f32 %v3303, %v3304
      %v3306 = vmul.f32 %v2165, %v3305
      %3307 = vst.msk [vmem:[%s654] sm:$0xff] %vm818, %v3306
      %p3308 = scmp.lt.s32.totalorder %s32, 1
      %s3309 = scalar_select %p3308, %s32, 1
      %s3310 = smul.addr %s3309, 8
      %s3311 = scalar_lea.vmem %s21, %s3310
      // Predicated region
      $region105: #{rfccsm_forward.1} parent=103 // pred_check
        %p3312 = pneg %p496
      $region106: #{rfccsm_forward.1} parent=103 // pred_check_branch
        %3314 = sbr.rel (%p3312) target = $region108
      $region107: #{rfccsm_forward.1} parent=103 // pred_region
        _
      $region108: #{rfccsm_forward.1} parent=103 // pred_fallthru
        _
    $region104: #{rfccsm_forward.1} parent=5 // pred_fallthru
      _
    %p3315 = scmp.le.s32.totalorder 2, %s27
    // Predicated region
    $region109: #{rfccsm_forward.1} parent=5 // pred_check
      %p3316 = pneg %p3315
    $region110: #{rfccsm_forward.1} parent=5 // pred_check_branch
      %3318 = sbr.rel (%p3316) target = $region112
    $region111: #{rfccsm_forward.1} parent=5 // pred_region
      %s3319 = ssub.s32 %s27, 2
      // Predicated region
      $region113: #{rfccsm_forward.1} parent=111 // pred_check
        %p3320 = pneg %p502
      $region114: #{rfccsm_forward.1} parent=111 // pred_check_branch
        %3322 = sbr.rel (%p3320) target = $region116
      $region115: #{rfccsm_forward.1} parent=111 // pred_region
        %p3323 = scmp.lt.s32.totalorder %s33, 1
        %s3324 = scalar_select %p3323, %s33, 1
        %s3325 = smul.addr %s3324, 8
        %s3326 = scalar_lea.vmem %s21, %s3325
      $region116: #{rfccsm_forward.1} parent=111 // pred_fallthru
        _
    $region112: #{rfccsm_forward.1} parent=5 // pred_fallthru
      _
  $region6: #{rfccsm_forward.1} parent=0 // loop_footer
    %s31 = sadd.s32 1, %s27
  $region7: #{rfccsm_forward.1} parent=0 // loop_footer_branch
    %26 = sbr.rel target = $region3
  $region8: #{rfccsm_forward.1} parent=0 // loop_exit
    _

</llo_original>
